<compile_context>
chip_gen: v7x
topology: tpu7x:2x2x1
jax: 0.10.0
libtpu: 0.0.40
codegen_flags: <defaults>
</compile_context>

<pallas_src>
import jax
import jax.numpy as jnp
from jax.experimental import pallas as pl
from jax.experimental.pallas import tpu as pltpu


def _zero_halo(pad_ref, H, W):
    """Zero only the 1-pixel border of pad_ref (B, H+2, W+2, C).
    The interior is fully overwritten every grid step, so it is never cleared."""
    B = pad_ref.shape[0]
    C = pad_ref.shape[-1]
    row = jnp.zeros((B, 1, W + 2, C), pad_ref.dtype)
    col = jnp.zeros((B, H + 2, 1, C), pad_ref.dtype)
    pad_ref[:, 0:1, :, :] = row
    pad_ref[:, H + 1:H + 2, :, :] = row
    pad_ref[:, :, 0:1, :] = col
    pad_ref[:, :, W + 1:W + 2, :] = col


def _fill_im2col(pad_ref, col_ref, B, H, W):
    """pad_ref: (B, H+2, W+2, C) f32 VMEM ref with a zero halo.
    col_ref:  (B*H*W, 9*C) bf16 VMEM ref; column index = (kh*3+kw)*C + ci.
    Per-tap windows are sliced straight from the Ref (no whole-buffer load),
    cast f32->bf16 at the store (no separate slab cast pass), and grouped so
    each store covers >=128 lanes when C permits."""
    C = pad_ref.shape[-1]
    group = max(1, min(9, 128 // C)) if C < 128 else 1
    t = 0
    while t < 9:
        g = min(group, 9 - t)
        parts = []
        for tt in range(t, t + g):
            kh, kw = divmod(tt, 3)
            parts.append(
                pad_ref[:, kh:kh + H, kw:kw + W, :]
                .reshape(B * H * W, C).astype(col_ref.dtype))
        blk = parts[0] if g == 1 else jnp.concatenate(parts, axis=-1)
        col_ref[:, t * C:(t + g) * C] = blk
        t += g


def _unet_conv2_kernel(x_ref, w1_ref, b1_ref, w2_ref, b2_ref, o_ref,
                       xpad_ref, col1_ref, ypad_ref, col2_ref):
    # x_ref : (B, H, W, Cin)   f32   input batch-block (NHWC)
    # w1_ref: (9*Cin, Cout)    bf16  row = (kh*3+kw)*Cin + ci
    # b1_ref: (1, Cout)        f32
    # w2_ref: (Cout, 9*Cout)   bf16  col = (kh*3+kw)*Cout + ci
    # b2_ref: (Cout, 1)        f32
    # o_ref : (B, Cout, H*W)   f32   lane-dense NCHW(-flattened) output
    # scratch: xpad (B,H+2,W+2,Cin) f32, col1 (B*H*W,9*Cin) bf16,
    #          ypad (B,H+2,W+2,Cout) f32, col2 (B*H*W,9*Cout) bf16
    B, H, W, _ = x_ref.shape
    Cout = o_ref.shape[1]
    HW = H * W

    # Halo-only zeroing; interiors are fully overwritten below.
    _zero_halo(xpad_ref, H, W)
    _zero_halo(ypad_ref, H, W)

    # ----- layer 1: Conv3x3 (stride 1, pad 1) + ReLU, batched over B -----
    xpad_ref[:, 1:H + 1, 1:W + 1, :] = x_ref[...]
    _fill_im2col(xpad_ref, col1_ref, B, H, W)
    y1 = jnp.dot(col1_ref[...], w1_ref[...],
                 preferred_element_type=jnp.float32)          # (B*H*W, Cout) f32
    y1 = jnp.maximum(y1 + b1_ref[...], 0.0)                   # bias + ReLU

    # ----- layer 2: Conv3x3 + ReLU; intermediate never leaves VMEM -----
    ypad_ref[:, 1:H + 1, 1:W + 1, :] = y1.reshape(B, H, W, Cout)
    _fill_im2col(ypad_ref, col2_ref, B, H, W)
    for b in range(B):   # static unroll; A @ B^T per image -> lane-dense NCHW store
        y2 = jax.lax.dot_general(
            w2_ref[...], col2_ref[b * HW:(b + 1) * HW, :],
            (((1,), (1,)), ((), ())), preferred_element_type=jnp.float32)
        o_ref[b] = jnp.maximum(y2 + b2_ref[...], 0.0).astype(o_ref.dtype)


def _vmem_limit_bytes():
    """~75% of physical VMEM, capped at 100 MiB.
    v5e/v6e (128 MiB physical) -> ~96-100 MiB; v7x (64 MiB) -> 48 MiB."""
    try:
        cap = pltpu.get_tpu_info().vmem_capacity_bytes
    except Exception:
        cap = 64 * 1024 * 1024            # v7x-safe fallback
    return min(int(cap) * 3 // 4, 100 * 1024 * 1024)


def _pick_batch_block(N, H, W, Cin, Cout, budget_bytes):
    """Largest divisor B of N whose per-step VMEM footprint fits the budget."""
    per_img = (4 * (H + 2) * (W + 2) * (Cin + Cout)       # f32 padded scratches
               + 2 * H * W * 9 * (Cin + Cout)             # bf16 im2col slabs
               + 2 * 4 * H * W * Cin                      # double-buffered input block
               + 2 * 4 * Cout * H * W)                    # double-buffered output block
    best = 1
    for b in range(1, N + 1):
        if N % b == 0 and b * per_img <= budget_bytes:
            best = b
    return best


@jax.jit
def unet_conv2_forward(x_nchw, params):
    """unetConv2.forward (is_batchnorm=False, n=2): (Conv3x3+ReLU) x 2.
    x_nchw: (N, Cin, H, W) f32 -> (N, Cout, H, W) f32."""
    (w1, b1), (w2, b2) = params
    N, Cin, H, W = x_nchw.shape
    Cout = w1.shape[1]

    vmem_limit = _vmem_limit_bytes()
    B = _pick_batch_block(N, H, W, Cin, Cout, budget_bytes=vmem_limit // 2)

    # TODO(synk): removable if the surrounding model is kept NHWC end-to-end.
    x_nhwc = jnp.transpose(x_nchw, (0, 2, 3, 1))

    out_flat = pl.pallas_call(
        _unet_conv2_kernel,
        out_shape=jax.ShapeDtypeStruct((N, Cout, H * W), x_nchw.dtype),
        grid_spec=pltpu.PrefetchScalarGridSpec(
            num_scalar_prefetch=0,
            grid=(N // B,),
            in_specs=[
                pl.BlockSpec((B, H, W, Cin), lambda n: (n, 0, 0, 0)),
                pl.BlockSpec((9 * Cin, Cout), lambda n: (0, 0)),
                pl.BlockSpec((1, Cout), lambda n: (0, 0)),
                pl.BlockSpec((Cout, 9 * Cout), lambda n: (0, 0)),
                pl.BlockSpec((Cout, 1), lambda n: (0, 0)),
            ],
            out_specs=pl.BlockSpec((B, Cout, H * W), lambda n: (n, 0, 0)),
            scratch_shapes=[
                pltpu.VMEM((B, H + 2, W + 2, Cin), jnp.float32),
                pltpu.VMEM((B * H * W, 9 * Cin), jnp.bfloat16),
                pltpu.VMEM((B, H + 2, W + 2, Cout), jnp.float32),
                pltpu.VMEM((B * H * W, 9 * Cout), jnp.bfloat16),
            ],
        ),
        compiler_params=pltpu.CompilerParams(
            dimension_semantics=("parallel",),
            vmem_limit_bytes=vmem_limit),
    )(x_nhwc,
      w1.astype(jnp.bfloat16),
      b1.reshape(1, Cout).astype(jnp.float32),
      w2.astype(jnp.bfloat16),
      b2.reshape(Cout, 1).astype(jnp.float32))

    # free: merges trailing contiguous dims of the NCHW-flat output
    return out_flat.reshape(N, Cout, H, W)


def init_unet_conv2_params(key, in_size, out_size, ks=3):
    """kaiming_normal_(a=0, mode='fan_in') weights + PyTorch-default uniform bias.
    Layer-1 weight stored as (ks*ks*Cin, Cout); layer-2 as (Cout, ks*ks*Cout)."""
    k1w, k1b, k2w, k2b = jax.random.split(key, 4)
    fan1 = in_size * ks * ks
    w1 = (2.0 / fan1) ** 0.5 * jax.random.normal(
        k1w, (ks * ks * in_size, out_size), jnp.float32)
    b1 = jax.random.uniform(k1b, (out_size,), jnp.float32,
                            -1.0 / fan1 ** 0.5, 1.0 / fan1 ** 0.5)
    fan2 = out_size * ks * ks
    w2 = (2.0 / fan2) ** 0.5 * jax.random.normal(
        k2w, (out_size, ks * ks * out_size), jnp.float32)
    b2 = jax.random.uniform(k2b, (out_size,), jnp.float32,
                            -1.0 / fan2 ** 0.5, 1.0 / fan2 ** 0.5)
    return ((w1, b1), (w2, b2))


def reference_forward(x_nchw, params, compute_dtype):
    """Plain-JAX reference (lax.conv). compute_dtype=bf16 mirrors the kernel's
    mixed precision; compute_dtype=f32 matches the original f32 PyTorch module."""
    (w1, b1), (w2, b2) = params
    K1, Cout = w1.shape
    Cin = K1 // 9
    x = jnp.transpose(x_nchw, (0, 2, 3, 1)).astype(compute_dtype)
    w1h = w1.reshape(3, 3, Cin, Cout).astype(compute_dtype)          # HWIO
    y = jax.lax.conv_general_dilated(
        x, w1h, (1, 1), ((1, 1), (1, 1)),
        dimension_numbers=("NHWC", "HWIO", "NHWC"),
        preferred_element_type=jnp.float32)
    y = jnp.maximum(y + b1[None, None, None, :], 0.0).astype(compute_dtype)
    w2h = jnp.transpose(w2.reshape(Cout, 3, 3, Cout), (1, 2, 3, 0)).astype(
        compute_dtype)                                               # HWIO
    y = jax.lax.conv_general_dilated(
        y, w2h, (1, 1), ((1, 1), (1, 1)),
        dimension_numbers=("NHWC", "HWIO", "NHWC"),
        preferred_element_type=jnp.float32)
    y = jnp.maximum(y + b2[None, None, None, :], 0.0)
    return jnp.transpose(y, (0, 3, 1, 2)).astype(x_nchw.dtype)


if __name__ == "__main__":
    key = jax.random.PRNGKey(0)
    key, kx = jax.random.split(key)

    N, Cin, H, W = 2, 4, 16, 16
    Cout = 8

    x = jax.random.normal(kx, (N, Cin, H, W), jnp.float32)
    params = init_unet_conv2_params(key, Cin, Cout)

    out = unet_conv2_forward(x, params)
    out = jax.block_until_ready(out)

    # shape must be (N, Cout, H, W) and ReLU => non-negative
    assert out.shape == (N, Cout, H, W), out.shape
    assert bool(jnp.all(out >= 0.0))

    # tight check vs a reference that mirrors the kernel's bf16-operand /
    # f32-accumulate precision
    ref_bf16 = reference_forward(x, params, jnp.bfloat16)
    assert bool(jnp.allclose(out, ref_bf16, atol=2e-3, rtol=2e-3)), (
        float(jnp.max(jnp.abs(out - ref_bf16))))

    # loose check vs the full-f32 module semantics (bf16-vs-f32 tolerance)
    ref_f32 = reference_forward(x, params, jnp.float32)
    assert bool(jnp.allclose(out, ref_f32, atol=1e-1, rtol=1e-1)), (
        float(jnp.max(jnp.abs(out - ref_f32))))

    print("KERNEL_OK")
</pallas_src>

<mosaic_0001>
module attributes {stable_mosaic.version = 11 : i64} {
  func.func @_unet_conv2_kernel(%arg0: i32, %arg1: memref<2x16x16x4xf32, #tpu.memory_space<vmem>>, %arg2: memref<36x8xbf16, #tpu.memory_space<vmem>>, %arg3: memref<1x8xf32, #tpu.memory_space<vmem>>, %arg4: memref<8x72xbf16, #tpu.memory_space<vmem>>, %arg5: memref<8x1xf32, #tpu.memory_space<vmem>>, %arg6: memref<2x8x256xf32, #tpu.memory_space<vmem>>, %arg7: memref<2x18x18x4xf32, #tpu.memory_space<vmem>>, %arg8: memref<512x36xbf16, #tpu.memory_space<vmem>>, %arg9: memref<2x18x18x8xf32, #tpu.memory_space<vmem>>, %arg10: memref<512x72xbf16, #tpu.memory_space<vmem>>) attributes {dimension_semantics = [#tpu.dimension_semantics<parallel>], iteration_bounds = array<i64: 1>, scalar_prefetch = 0 : i64, scratch_operands = 4 : i64, tpu.core_type = #tpu.core_type<tc>, window_params = [{transform_indices = @transform_0, window_bounds = array<i64: 2, 16, 16, 4>}, {pipeline_mode = #tpu.pipeline_mode<synchronous>, transform_indices = @transform_1, window_bounds = array<i64: 36, 8>}, {pipeline_mode = #tpu.pipeline_mode<synchronous>, transform_indices = @transform_2, window_bounds = array<i64: 1, 8>}, {pipeline_mode = #tpu.pipeline_mode<synchronous>, transform_indices = @transform_3, window_bounds = array<i64: 8, 72>}, {pipeline_mode = #tpu.pipeline_mode<synchronous>, transform_indices = @transform_4, window_bounds = array<i64: 8, 1>}, {transform_indices = @transform_5, window_bounds = array<i64: 2, 8, 256>}]} {
    %cst = arith.constant 0.000000e+00 : f32
    %0 = vector.broadcast %cst : f32 to vector<2x1x18x4xf32>
    %cst_0 = arith.constant 0.000000e+00 : f32
    %1 = vector.broadcast %cst_0 : f32 to vector<2x18x1x4xf32>
    %c0 = arith.constant 0 : index
    %c0_1 = arith.constant 0 : index
    %c0_2 = arith.constant 0 : index
    %c0_3 = arith.constant 0 : index
    %2 = vector.load %arg7[%c0, %c0_1, %c0_2, %c0_3] : memref<2x18x18x4xf32, #tpu.memory_space<vmem>>, vector<2x1x18x4xf32>
    tpu.vector_store %arg7[%c0, %c0_1, %c0_2, %c0_3], %0 {strides = array<i32>} : memref<2x18x18x4xf32, #tpu.memory_space<vmem>>, vector<2x1x18x4xf32>,
    %c0_4 = arith.constant 0 : index
    %c17 = arith.constant 17 : index
    %c0_5 = arith.constant 0 : index
    %c0_6 = arith.constant 0 : index
    %3 = vector.load %arg7[%c0_4, %c17, %c0_5, %c0_6] : memref<2x18x18x4xf32, #tpu.memory_space<vmem>>, vector<2x1x18x4xf32>
    tpu.vector_store %arg7[%c0_4, %c17, %c0_5, %c0_6], %0 {strides = array<i32>} : memref<2x18x18x4xf32, #tpu.memory_space<vmem>>, vector<2x1x18x4xf32>,
    %c0_7 = arith.constant 0 : index
    %c0_8 = arith.constant 0 : index
    %c0_9 = arith.constant 0 : index
    %c0_10 = arith.constant 0 : index
    %4 = vector.load %arg7[%c0_7, %c0_8, %c0_9, %c0_10] : memref<2x18x18x4xf32, #tpu.memory_space<vmem>>, vector<2x18x1x4xf32>
    tpu.vector_store %arg7[%c0_7, %c0_8, %c0_9, %c0_10], %1 {strides = array<i32>} : memref<2x18x18x4xf32, #tpu.memory_space<vmem>>, vector<2x18x1x4xf32>,
    %c0_11 = arith.constant 0 : index
    %c0_12 = arith.constant 0 : index
    %c17_13 = arith.constant 17 : index
    %c0_14 = arith.constant 0 : index
    %5 = vector.load %arg7[%c0_11, %c0_12, %c17_13, %c0_14] : memref<2x18x18x4xf32, #tpu.memory_space<vmem>>, vector<2x18x1x4xf32>
    tpu.vector_store %arg7[%c0_11, %c0_12, %c17_13, %c0_14], %1 {strides = array<i32>} : memref<2x18x18x4xf32, #tpu.memory_space<vmem>>, vector<2x18x1x4xf32>,
    %cst_15 = arith.constant 0.000000e+00 : f32
    %6 = vector.broadcast %cst_15 : f32 to vector<2x1x18x8xf32>
    %cst_16 = arith.constant 0.000000e+00 : f32
    %7 = vector.broadcast %cst_16 : f32 to vector<2x18x1x8xf32>
    %c0_17 = arith.constant 0 : index
    %c0_18 = arith.constant 0 : index
    %c0_19 = arith.constant 0 : index
    %c0_20 = arith.constant 0 : index
    %8 = vector.load %arg9[%c0_17, %c0_18, %c0_19, %c0_20] : memref<2x18x18x8xf32, #tpu.memory_space<vmem>>, vector<2x1x18x8xf32>
    tpu.vector_store %arg9[%c0_17, %c0_18, %c0_19, %c0_20], %6 {strides = array<i32>} : memref<2x18x18x8xf32, #tpu.memory_space<vmem>>, vector<2x1x18x8xf32>,
    %c0_21 = arith.constant 0 : index
    %c17_22 = arith.constant 17 : index
    %c0_23 = arith.constant 0 : index
    %c0_24 = arith.constant 0 : index
    %9 = vector.load %arg9[%c0_21, %c17_22, %c0_23, %c0_24] : memref<2x18x18x8xf32, #tpu.memory_space<vmem>>, vector<2x1x18x8xf32>
    tpu.vector_store %arg9[%c0_21, %c17_22, %c0_23, %c0_24], %6 {strides = array<i32>} : memref<2x18x18x8xf32, #tpu.memory_space<vmem>>, vector<2x1x18x8xf32>,
    %c0_25 = arith.constant 0 : index
    %c0_26 = arith.constant 0 : index
    %c0_27 = arith.constant 0 : index
    %c0_28 = arith.constant 0 : index
    %10 = vector.load %arg9[%c0_25, %c0_26, %c0_27, %c0_28] : memref<2x18x18x8xf32, #tpu.memory_space<vmem>>, vector<2x18x1x8xf32>
    tpu.vector_store %arg9[%c0_25, %c0_26, %c0_27, %c0_28], %7 {strides = array<i32>} : memref<2x18x18x8xf32, #tpu.memory_space<vmem>>, vector<2x18x1x8xf32>,
    %c0_29 = arith.constant 0 : index
    %c0_30 = arith.constant 0 : index
    %c17_31 = arith.constant 17 : index
    %c0_32 = arith.constant 0 : index
    %11 = vector.load %arg9[%c0_29, %c0_30, %c17_31, %c0_32] : memref<2x18x18x8xf32, #tpu.memory_space<vmem>>, vector<2x18x1x8xf32>
    tpu.vector_store %arg9[%c0_29, %c0_30, %c17_31, %c0_32], %7 {strides = array<i32>} : memref<2x18x18x8xf32, #tpu.memory_space<vmem>>, vector<2x18x1x8xf32>,
    %c0_33 = arith.constant 0 : index
    %c0_34 = arith.constant 0 : index
    %c0_35 = arith.constant 0 : index
    %c0_36 = arith.constant 0 : index
    %12 = vector.load %arg1[%c0_33, %c0_34, %c0_35, %c0_36] : memref<2x16x16x4xf32, #tpu.memory_space<vmem>>, vector<2x16x16x4xf32>
    %c0_37 = arith.constant 0 : index
    %c1 = arith.constant 1 : index
    %c1_38 = arith.constant 1 : index
    %c0_39 = arith.constant 0 : index
    %13 = vector.load %arg7[%c0_37, %c1, %c1_38, %c0_39] : memref<2x18x18x4xf32, #tpu.memory_space<vmem>>, vector<2x16x16x4xf32>
    tpu.vector_store %arg7[%c0_37, %c1, %c1_38, %c0_39], %12 {strides = array<i32>} : memref<2x18x18x4xf32, #tpu.memory_space<vmem>>, vector<2x16x16x4xf32>,
    %c0_40 = arith.constant 0 : index
    %c0_41 = arith.constant 0 : index
    %c0_42 = arith.constant 0 : index
    %c0_43 = arith.constant 0 : index
    %14 = vector.load %arg7[%c0_40, %c0_41, %c0_42, %c0_43] : memref<2x18x18x4xf32, #tpu.memory_space<vmem>>, vector<2x16x16x4xf32>
    %15 = vector.shape_cast %14 : vector<2x16x16x4xf32> to vector<512x4xf32>
    %16 = arith.truncf %15 : vector<512x4xf32> to vector<512x4xbf16>
    %c0_44 = arith.constant 0 : index
    %c0_45 = arith.constant 0 : index
    %c1_46 = arith.constant 1 : index
    %c0_47 = arith.constant 0 : index
    %17 = vector.load %arg7[%c0_44, %c0_45, %c1_46, %c0_47] : memref<2x18x18x4xf32, #tpu.memory_space<vmem>>, vector<2x16x16x4xf32>
    %18 = vector.shape_cast %17 : vector<2x16x16x4xf32> to vector<512x4xf32>
    %19 = arith.truncf %18 : vector<512x4xf32> to vector<512x4xbf16>
    %c0_48 = arith.constant 0 : index
    %c0_49 = arith.constant 0 : index
    %c2 = arith.constant 2 : index
    %c0_50 = arith.constant 0 : index
    %20 = vector.load %arg7[%c0_48, %c0_49, %c2, %c0_50] : memref<2x18x18x4xf32, #tpu.memory_space<vmem>>, vector<2x16x16x4xf32>
    %21 = vector.shape_cast %20 : vector<2x16x16x4xf32> to vector<512x4xf32>
    %22 = arith.truncf %21 : vector<512x4xf32> to vector<512x4xbf16>
    %c0_51 = arith.constant 0 : index
    %c1_52 = arith.constant 1 : index
    %c0_53 = arith.constant 0 : index
    %c0_54 = arith.constant 0 : index
    %23 = vector.load %arg7[%c0_51, %c1_52, %c0_53, %c0_54] : memref<2x18x18x4xf32, #tpu.memory_space<vmem>>, vector<2x16x16x4xf32>
    %24 = vector.shape_cast %23 : vector<2x16x16x4xf32> to vector<512x4xf32>
    %25 = arith.truncf %24 : vector<512x4xf32> to vector<512x4xbf16>
    %c0_55 = arith.constant 0 : index
    %c1_56 = arith.constant 1 : index
    %c1_57 = arith.constant 1 : index
    %c0_58 = arith.constant 0 : index
    %26 = vector.load %arg7[%c0_55, %c1_56, %c1_57, %c0_58] : memref<2x18x18x4xf32, #tpu.memory_space<vmem>>, vector<2x16x16x4xf32>
    %27 = vector.shape_cast %26 : vector<2x16x16x4xf32> to vector<512x4xf32>
    %28 = arith.truncf %27 : vector<512x4xf32> to vector<512x4xbf16>
    %c0_59 = arith.constant 0 : index
    %c1_60 = arith.constant 1 : index
    %c2_61 = arith.constant 2 : index
    %c0_62 = arith.constant 0 : index
    %29 = vector.load %arg7[%c0_59, %c1_60, %c2_61, %c0_62] : memref<2x18x18x4xf32, #tpu.memory_space<vmem>>, vector<2x16x16x4xf32>
    %30 = vector.shape_cast %29 : vector<2x16x16x4xf32> to vector<512x4xf32>
    %31 = arith.truncf %30 : vector<512x4xf32> to vector<512x4xbf16>
    %c0_63 = arith.constant 0 : index
    %c2_64 = arith.constant 2 : index
    %c0_65 = arith.constant 0 : index
    %c0_66 = arith.constant 0 : index
    %32 = vector.load %arg7[%c0_63, %c2_64, %c0_65, %c0_66] : memref<2x18x18x4xf32, #tpu.memory_space<vmem>>, vector<2x16x16x4xf32>
    %33 = vector.shape_cast %32 : vector<2x16x16x4xf32> to vector<512x4xf32>
    %34 = arith.truncf %33 : vector<512x4xf32> to vector<512x4xbf16>
    %c0_67 = arith.constant 0 : index
    %c2_68 = arith.constant 2 : index
    %c1_69 = arith.constant 1 : index
    %c0_70 = arith.constant 0 : index
    %35 = vector.load %arg7[%c0_67, %c2_68, %c1_69, %c0_70] : memref<2x18x18x4xf32, #tpu.memory_space<vmem>>, vector<2x16x16x4xf32>
    %36 = vector.shape_cast %35 : vector<2x16x16x4xf32> to vector<512x4xf32>
    %37 = arith.truncf %36 : vector<512x4xf32> to vector<512x4xbf16>
    %c0_71 = arith.constant 0 : index
    %c2_72 = arith.constant 2 : index
    %c2_73 = arith.constant 2 : index
    %c0_74 = arith.constant 0 : index
    %38 = vector.load %arg7[%c0_71, %c2_72, %c2_73, %c0_74] : memref<2x18x18x4xf32, #tpu.memory_space<vmem>>, vector<2x16x16x4xf32>
    %39 = vector.shape_cast %38 : vector<2x16x16x4xf32> to vector<512x4xf32>
    %40 = arith.truncf %39 : vector<512x4xf32> to vector<512x4xbf16>
    %41 = tpu.concatenate %16, %19, %22, %25, %28, %31, %34, %37, %40 in 1 : vector<512x4xbf16>, vector<512x4xbf16>, vector<512x4xbf16>, vector<512x4xbf16>, vector<512x4xbf16>, vector<512x4xbf16>, vector<512x4xbf16>, vector<512x4xbf16>, vector<512x4xbf16> -> vector<512x36xbf16>
    %c0_75 = arith.constant 0 : index
    %c0_76 = arith.constant 0 : index
    %42 = vector.load %arg8[%c0_75, %c0_76] : memref<512x36xbf16, #tpu.memory_space<vmem>>, vector<512x36xbf16>
    tpu.vector_store %arg8[%c0_75, %c0_76], %41 {strides = array<i32>} : memref<512x36xbf16, #tpu.memory_space<vmem>>, vector<512x36xbf16>,
    %c0_77 = arith.constant 0 : index
    %c0_78 = arith.constant 0 : index
    %43 = vector.load %arg8[%c0_77, %c0_78] : memref<512x36xbf16, #tpu.memory_space<vmem>>, vector<512x36xbf16>
    %c0_79 = arith.constant 0 : index
    %c0_80 = arith.constant 0 : index
    %44 = vector.load %arg2[%c0_79, %c0_80] : memref<36x8xbf16, #tpu.memory_space<vmem>>, vector<36x8xbf16>
    %cst_81 = arith.constant dense<0.000000e+00> : vector<512x8xf32>
    %45 = tpu.matmul %43, %44, %cst_81 {dimension_numbers = #tpu.dot_dimension_numbers<[1], [0], [0], [1], [0, 0, 1, 1], [], []>} : vector<512x36xbf16>, vector<36x8xbf16>, vector<512x8xf32> -> vector<512x8xf32>
    %c0_82 = arith.constant 0 : index
    %c0_83 = arith.constant 0 : index
    %46 = vector.load %arg3[%c0_82, %c0_83] : memref<1x8xf32, #tpu.memory_space<vmem>>, vector<1x8xf32>
    %47 = vector.broadcast %46 : vector<1x8xf32> to vector<512x8xf32>
    %48 = arith.addf %45, %47 : vector<512x8xf32>
    %cst_84 = arith.constant 0.000000e+00 : f32
    %49 = vector.broadcast %cst_84 : f32 to vector<512x8xf32>
    %50 = arith.maximumf %48, %49 : vector<512x8xf32>
    %51 = vector.shape_cast %50 : vector<512x8xf32> to vector<2x16x16x8xf32>
    %c0_85 = arith.constant 0 : index
    %c1_86 = arith.constant 1 : index
    %c1_87 = arith.constant 1 : index
    %c0_88 = arith.constant 0 : index
    %52 = vector.load %arg9[%c0_85, %c1_86, %c1_87, %c0_88] : memref<2x18x18x8xf32, #tpu.memory_space<vmem>>, vector<2x16x16x8xf32>
    tpu.vector_store %arg9[%c0_85, %c1_86, %c1_87, %c0_88], %51 {strides = array<i32>} : memref<2x18x18x8xf32, #tpu.memory_space<vmem>>, vector<2x16x16x8xf32>,
    %c0_89 = arith.constant 0 : index
    %c0_90 = arith.constant 0 : index
    %c0_91 = arith.constant 0 : index
    %c0_92 = arith.constant 0 : index
    %53 = vector.load %arg9[%c0_89, %c0_90, %c0_91, %c0_92] : memref<2x18x18x8xf32, #tpu.memory_space<vmem>>, vector<2x16x16x8xf32>
    %54 = vector.shape_cast %53 : vector<2x16x16x8xf32> to vector<512x8xf32>
    %55 = arith.truncf %54 : vector<512x8xf32> to vector<512x8xbf16>
    %c0_93 = arith.constant 0 : index
    %c0_94 = arith.constant 0 : index
    %c1_95 = arith.constant 1 : index
    %c0_96 = arith.constant 0 : index
    %56 = vector.load %arg9[%c0_93, %c0_94, %c1_95, %c0_96] : memref<2x18x18x8xf32, #tpu.memory_space<vmem>>, vector<2x16x16x8xf32>
    %57 = vector.shape_cast %56 : vector<2x16x16x8xf32> to vector<512x8xf32>
    %58 = arith.truncf %57 : vector<512x8xf32> to vector<512x8xbf16>
    %c0_97 = arith.constant 0 : index
    %c0_98 = arith.constant 0 : index
    %c2_99 = arith.constant 2 : index
    %c0_100 = arith.constant 0 : index
    %59 = vector.load %arg9[%c0_97, %c0_98, %c2_99, %c0_100] : memref<2x18x18x8xf32, #tpu.memory_space<vmem>>, vector<2x16x16x8xf32>
    %60 = vector.shape_cast %59 : vector<2x16x16x8xf32> to vector<512x8xf32>
    %61 = arith.truncf %60 : vector<512x8xf32> to vector<512x8xbf16>
    %c0_101 = arith.constant 0 : index
    %c1_102 = arith.constant 1 : index
    %c0_103 = arith.constant 0 : index
    %c0_104 = arith.constant 0 : index
    %62 = vector.load %arg9[%c0_101, %c1_102, %c0_103, %c0_104] : memref<2x18x18x8xf32, #tpu.memory_space<vmem>>, vector<2x16x16x8xf32>
    %63 = vector.shape_cast %62 : vector<2x16x16x8xf32> to vector<512x8xf32>
    %64 = arith.truncf %63 : vector<512x8xf32> to vector<512x8xbf16>
    %c0_105 = arith.constant 0 : index
    %c1_106 = arith.constant 1 : index
    %c1_107 = arith.constant 1 : index
    %c0_108 = arith.constant 0 : index
    %65 = vector.load %arg9[%c0_105, %c1_106, %c1_107, %c0_108] : memref<2x18x18x8xf32, #tpu.memory_space<vmem>>, vector<2x16x16x8xf32>
    %66 = vector.shape_cast %65 : vector<2x16x16x8xf32> to vector<512x8xf32>
    %67 = arith.truncf %66 : vector<512x8xf32> to vector<512x8xbf16>
    %c0_109 = arith.constant 0 : index
    %c1_110 = arith.constant 1 : index
    %c2_111 = arith.constant 2 : index
    %c0_112 = arith.constant 0 : index
    %68 = vector.load %arg9[%c0_109, %c1_110, %c2_111, %c0_112] : memref<2x18x18x8xf32, #tpu.memory_space<vmem>>, vector<2x16x16x8xf32>
    %69 = vector.shape_cast %68 : vector<2x16x16x8xf32> to vector<512x8xf32>
    %70 = arith.truncf %69 : vector<512x8xf32> to vector<512x8xbf16>
    %c0_113 = arith.constant 0 : index
    %c2_114 = arith.constant 2 : index
    %c0_115 = arith.constant 0 : index
    %c0_116 = arith.constant 0 : index
    %71 = vector.load %arg9[%c0_113, %c2_114, %c0_115, %c0_116] : memref<2x18x18x8xf32, #tpu.memory_space<vmem>>, vector<2x16x16x8xf32>
    %72 = vector.shape_cast %71 : vector<2x16x16x8xf32> to vector<512x8xf32>
    %73 = arith.truncf %72 : vector<512x8xf32> to vector<512x8xbf16>
    %c0_117 = arith.constant 0 : index
    %c2_118 = arith.constant 2 : index
    %c1_119 = arith.constant 1 : index
    %c0_120 = arith.constant 0 : index
    %74 = vector.load %arg9[%c0_117, %c2_118, %c1_119, %c0_120] : memref<2x18x18x8xf32, #tpu.memory_space<vmem>>, vector<2x16x16x8xf32>
    %75 = vector.shape_cast %74 : vector<2x16x16x8xf32> to vector<512x8xf32>
    %76 = arith.truncf %75 : vector<512x8xf32> to vector<512x8xbf16>
    %c0_121 = arith.constant 0 : index
    %c2_122 = arith.constant 2 : index
    %c2_123 = arith.constant 2 : index
    %c0_124 = arith.constant 0 : index
    %77 = vector.load %arg9[%c0_121, %c2_122, %c2_123, %c0_124] : memref<2x18x18x8xf32, #tpu.memory_space<vmem>>, vector<2x16x16x8xf32>
    %78 = vector.shape_cast %77 : vector<2x16x16x8xf32> to vector<512x8xf32>
    %79 = arith.truncf %78 : vector<512x8xf32> to vector<512x8xbf16>
    %80 = tpu.concatenate %55, %58, %61, %64, %67, %70, %73, %76, %79 in 1 : vector<512x8xbf16>, vector<512x8xbf16>, vector<512x8xbf16>, vector<512x8xbf16>, vector<512x8xbf16>, vector<512x8xbf16>, vector<512x8xbf16>, vector<512x8xbf16>, vector<512x8xbf16> -> vector<512x72xbf16>
    %c0_125 = arith.constant 0 : index
    %c0_126 = arith.constant 0 : index
    %81 = vector.load %arg10[%c0_125, %c0_126] : memref<512x72xbf16, #tpu.memory_space<vmem>>, vector<512x72xbf16>
    tpu.vector_store %arg10[%c0_125, %c0_126], %80 {strides = array<i32>} : memref<512x72xbf16, #tpu.memory_space<vmem>>, vector<512x72xbf16>,
    %c0_127 = arith.constant 0 : index
    %c0_128 = arith.constant 0 : index
    %82 = vector.load %arg4[%c0_127, %c0_128] : memref<8x72xbf16, #tpu.memory_space<vmem>>, vector<8x72xbf16>
    %c0_129 = arith.constant 0 : index
    %c0_130 = arith.constant 0 : index
    %83 = vector.load %arg10[%c0_129, %c0_130] : memref<512x72xbf16, #tpu.memory_space<vmem>>, vector<256x72xbf16>
    %cst_131 = arith.constant dense<0.000000e+00> : vector<8x256xf32>
    %84 = tpu.matmul %82, %83, %cst_131 {dimension_numbers = #tpu.dot_dimension_numbers<[1], [1], [0], [0], [0, 0, 1, 0], [], []>} : vector<8x72xbf16>, vector<256x72xbf16>, vector<8x256xf32> -> vector<8x256xf32>
    %c0_132 = arith.constant 0 : index
    %c0_133 = arith.constant 0 : index
    %85 = vector.load %arg5[%c0_132, %c0_133] : memref<8x1xf32, #tpu.memory_space<vmem>>, vector<8x1xf32>
    %86 = vector.broadcast %85 : vector<8x1xf32> to vector<8x256xf32>
    %87 = arith.addf %84, %86 : vector<8x256xf32>
    %cst_134 = arith.constant 0.000000e+00 : f32
    %88 = vector.broadcast %cst_134 : f32 to vector<8x256xf32>
    %89 = arith.maximumf %87, %88 : vector<8x256xf32>
    %c0_135 = arith.constant 0 : index
    %c0_136 = arith.constant 0 : index
    %c0_137 = arith.constant 0 : index
    %90 = vector.load %arg6[%c0_135, %c0_136, %c0_137] : memref<2x8x256xf32, #tpu.memory_space<vmem>>, vector<1x8x256xf32>
    %91 = vector.shape_cast %90 : vector<1x8x256xf32> to vector<8x256xf32>
    %92 = vector.shape_cast %89 : vector<8x256xf32> to vector<1x8x256xf32>
    tpu.vector_store %arg6[%c0_135, %c0_136, %c0_137], %92 {strides = array<i32>} : memref<2x8x256xf32, #tpu.memory_space<vmem>>, vector<1x8x256xf32>,
    %c0_138 = arith.constant 0 : index
    %c0_139 = arith.constant 0 : index
    %93 = vector.load %arg4[%c0_138, %c0_139] : memref<8x72xbf16, #tpu.memory_space<vmem>>, vector<8x72xbf16>
    %c256 = arith.constant 256 : index
    %c0_140 = arith.constant 0 : index
    %94 = vector.load %arg10[%c256, %c0_140] : memref<512x72xbf16, #tpu.memory_space<vmem>>, vector<256x72xbf16>
    %cst_141 = arith.constant dense<0.000000e+00> : vector<8x256xf32>
    %95 = tpu.matmul %93, %94, %cst_141 {dimension_numbers = #tpu.dot_dimension_numbers<[1], [1], [0], [0], [0, 0, 1, 0], [], []>} : vector<8x72xbf16>, vector<256x72xbf16>, vector<8x256xf32> -> vector<8x256xf32>
    %c0_142 = arith.constant 0 : index
    %c0_143 = arith.constant 0 : index
    %96 = vector.load %arg5[%c0_142, %c0_143] : memref<8x1xf32, #tpu.memory_space<vmem>>, vector<8x1xf32>
    %97 = vector.broadcast %96 : vector<8x1xf32> to vector<8x256xf32>
    %98 = arith.addf %95, %97 : vector<8x256xf32>
    %cst_144 = arith.constant 0.000000e+00 : f32
    %99 = vector.broadcast %cst_144 : f32 to vector<8x256xf32>
    %100 = arith.maximumf %98, %99 : vector<8x256xf32>
    %c1_145 = arith.constant 1 : index
    %c0_146 = arith.constant 0 : index
    %c0_147 = arith.constant 0 : index
    %101 = vector.load %arg6[%c1_145, %c0_146, %c0_147] : memref<2x8x256xf32, #tpu.memory_space<vmem>>, vector<1x8x256xf32>
    %102 = vector.shape_cast %101 : vector<1x8x256xf32> to vector<8x256xf32>
    %103 = vector.shape_cast %100 : vector<8x256xf32> to vector<1x8x256xf32>
    tpu.vector_store %arg6[%c1_145, %c0_146, %c0_147], %103 {strides = array<i32>} : memref<2x8x256xf32, #tpu.memory_space<vmem>>, vector<1x8x256xf32>,
    return
  }
  func.func @transform_0(%arg0: i32) -> (i32, i32, i32, i32) {
    %c0_i32 = arith.constant 0 : i32
    %c0_i32_0 = arith.constant 0 : i32
    %c0_i32_1 = arith.constant 0 : i32
    %c0_i32_2 = arith.constant 0 : i32
    return %arg0, %c0_i32, %c0_i32_0, %c0_i32_1 : i32, i32, i32, i32
  }
  func.func @transform_1(%arg0: i32) -> (i32, i32) {
    %c0_i32 = arith.constant 0 : i32
    %c0_i32_0 = arith.constant 0 : i32
    %c0_i32_1 = arith.constant 0 : i32
    return %c0_i32, %c0_i32_0 : i32, i32
  }
  func.func @transform_2(%arg0: i32) -> (i32, i32) {
    %c0_i32 = arith.constant 0 : i32
    %c0_i32_0 = arith.constant 0 : i32
    %c0_i32_1 = arith.constant 0 : i32
    return %c0_i32, %c0_i32_0 : i32, i32
  }
  func.func @transform_3(%arg0: i32) -> (i32, i32) {
    %c0_i32 = arith.constant 0 : i32
    %c0_i32_0 = arith.constant 0 : i32
    %c0_i32_1 = arith.constant 0 : i32
    return %c0_i32, %c0_i32_0 : i32, i32
  }
  func.func @transform_4(%arg0: i32) -> (i32, i32) {
    %c0_i32 = arith.constant 0 : i32
    %c0_i32_0 = arith.constant 0 : i32
    %c0_i32_1 = arith.constant 0 : i32
    return %c0_i32, %c0_i32_0 : i32, i32
  }
  func.func @transform_5(%arg0: i32) -> (i32, i32, i32) {
    %c0_i32 = arith.constant 0 : i32
    %c0_i32_0 = arith.constant 0 : i32
    %c0_i32_1 = arith.constant 0 : i32
    return %arg0, %c0_i32, %c0_i32_0 : i32, i32, i32
  }
}

</mosaic_0001>

<llo_original>
// kernel: unet_conv2_forward.1
$region0: #{unet_conv2_forward.1}
  #allocation0 [shape = 'u32[]', space=smem, size = 0x4, offset = 0x4, fixed_abs, tag = 'smem constant byte address 0x4 - core index']
  #allocation1 [shape = 'u32[144,128]{1,0:T(1,128)}', space=vmem, size = 0x12000, scoped, tag = 'internal scratch']
  #allocation2 [shape = 'f32[2,18,18,4]{3,2,1,0:T(8,128)}', space=vmem, size = 0x6c000, scoped, tag = 'scratch operand']
  #allocation3 [shape = 'bf16[512,36]{1,0:T(16,128)(2,1)}', space=vmem, size = 0x20000, scoped, tag = 'scratch operand']
  #allocation4 [shape = 'f32[2,18,18,8]{3,2,1,0:T(8,128)}', space=vmem, size = 0x6c000, scoped, tag = 'scratch operand']
  #allocation5 [shape = 'bf16[512,72]{1,0:T(16,128)(2,1)}', space=vmem, size = 0x20000, scoped, tag = 'scratch operand']
  %s0 = inlined_call_operand.vmem [shape: f32[2,16,16,4], index: 0, kind: input, shape index: {}]
  %s1 = inlined_call_operand.vmem [shape: bf16[36,8], index: 1, kind: input, shape index: {}]
  %s2 = inlined_call_operand.vmem [shape: f32[1,8], index: 2, kind: input, shape index: {}]
  %s3 = inlined_call_operand.vmem [shape: bf16[8,72], index: 3, kind: input, shape index: {}]
  %s4 = inlined_call_operand.vmem [shape: f32[8,1], index: 4, kind: input, shape index: {}]
  %s5 = inlined_call_operand.vmem [shape: f32[2,8,256], index: 5, kind: output, shape index: {}]
  %s6 = sld [smem:[#allocation0]]
  $region30: #{unet_conv2_forward.1} parent=0
    _
  %s8 = ssub.s32 1, %s6
  %s9 = scalar_select 0, %s8, %s6
  // Predicated region
  $region2: #{unet_conv2_forward.1} parent=0 // pred_check
    _
  $region3: #{unet_conv2_forward.1} parent=0 // pred_check_branch
    %11 = sbr.rel (0) target = $region5
  $region4: #{unet_conv2_forward.1} parent=0 // pred_region
    _
  $region5: #{unet_conv2_forward.1} parent=0 // pred_fallthru
    _
  // Predicated region
  $region6: #{unet_conv2_forward.1} parent=0 // pred_check
    _
  $region7: #{unet_conv2_forward.1} parent=0 // pred_check_branch
    %13 = sbr.rel (0) target = $region9
  $region8: #{unet_conv2_forward.1} parent=0 // pred_region
    _
  $region9: #{unet_conv2_forward.1} parent=0 // pred_fallthru
    _
  // Predicated region
  $region10: #{unet_conv2_forward.1} parent=0 // pred_check
    _
  $region11: #{unet_conv2_forward.1} parent=0 // pred_check_branch
    %15 = sbr.rel (0) target = $region13
  $region12: #{unet_conv2_forward.1} parent=0 // pred_region
    _
  $region13: #{unet_conv2_forward.1} parent=0 // pred_fallthru
    _
  // Predicated region
  $region14: #{unet_conv2_forward.1} parent=0 // pred_check
    _
  $region15: #{unet_conv2_forward.1} parent=0 // pred_check_branch
    %17 = sbr.rel (0) target = $region17
  $region16: #{unet_conv2_forward.1} parent=0 // pred_region
    _
  $region17: #{unet_conv2_forward.1} parent=0 // pred_fallthru
    _
  // Predicated region
  $region18: #{unet_conv2_forward.1} parent=0 // pred_check
    _
  $region19: #{unet_conv2_forward.1} parent=0 // pred_check_branch
    %19 = sbr.rel (0) target = $region21
  $region20: #{unet_conv2_forward.1} parent=0 // pred_region
    _
  $region21: #{unet_conv2_forward.1} parent=0 // pred_fallthru
    _
  %vm21 = vcmask 31744
  %22 = vst.msk [vmem:[#allocation2] sm:$0xff] %vm21, 0.0
  %23 = vst.msk [vmem:[#allocation2 + $0x8] sm:$0xff] %vm21, 0.0
  %vm24 = vcmask 25600
  %25 = vst.msk [vmem:[#allocation2 + $0x10] sm:$0x3] %vm24, 0.0
  %26 = vst.msk [vmem:[#allocation2 + $0x1b0] sm:$0xff] %vm21, 0.0
  %27 = vst.msk [vmem:[#allocation2 + $0x1b8] sm:$0xff] %vm21, 0.0
  %28 = vst.msk [vmem:[#allocation2 + $0x1c0] sm:$0x3] %vm24, 0.0
  %s29 = scalar_lea.vmem [#allocation2], 408
  %30 = vst.msk [vmem:[%s29] sm:$0xff] %vm21, 0.0
  %31 = vst.msk [vmem:[%s29 + $0x8] sm:$0xff] %vm21, 0.0
  %32 = vst.msk [vmem:[%s29 + $0x10] sm:$0x3] %vm24, 0.0
  %33 = vst.msk [vmem:[%s29 + $0x1b0] sm:$0xff] %vm21, 0.0
  %34 = vst.msk [vmem:[%s29 + $0x1b8] sm:$0xff] %vm21, 0.0
  %35 = vst.msk [vmem:[%s29 + $0x1c0] sm:$0x3] %vm24, 0.0
  %vm36 = vcmask 24576
  %37 = vst.msk [vmem:[#allocation2] sm:$0x1] %vm36, 0.0
  %38 = vst.msk [vmem:[#allocation2 + $0x18] sm:$0x1] %vm36, 0.0
  %39 = vst.msk [vmem:[#allocation2 + $0x30] sm:$0x1] %vm36, 0.0
  %40 = vst.msk [vmem:[#allocation2 + $0x48] sm:$0x1] %vm36, 0.0
  %41 = vst.msk [vmem:[#allocation2 + $0x60] sm:$0x1] %vm36, 0.0
  %42 = vst.msk [vmem:[#allocation2 + $0x78] sm:$0x1] %vm36, 0.0
  %43 = vst.msk [vmem:[#allocation2 + $0x90] sm:$0x1] %vm36, 0.0
  %44 = vst.msk [vmem:[#allocation2 + $0xa8] sm:$0x1] %vm36, 0.0
  %45 = vst.msk [vmem:[#allocation2 + $0xc0] sm:$0x1] %vm36, 0.0
  %46 = vst.msk [vmem:[#allocation2 + $0xd8] sm:$0x1] %vm36, 0.0
  %47 = vst.msk [vmem:[#allocation2 + $0xf0] sm:$0x1] %vm36, 0.0
  %48 = vst.msk [vmem:[#allocation2 + $0x108] sm:$0x1] %vm36, 0.0
  %49 = vst.msk [vmem:[#allocation2 + $0x120] sm:$0x1] %vm36, 0.0
  %50 = vst.msk [vmem:[#allocation2 + $0x138] sm:$0x1] %vm36, 0.0
  %51 = vst.msk [vmem:[#allocation2 + $0x150] sm:$0x1] %vm36, 0.0
  %52 = vst.msk [vmem:[#allocation2 + $0x168] sm:$0x1] %vm36, 0.0
  %53 = vst.msk [vmem:[#allocation2 + $0x180] sm:$0x1] %vm36, 0.0
  %54 = vst.msk [vmem:[#allocation2 + $0x198] sm:$0x1] %vm36, 0.0
  %55 = vst.msk [vmem:[#allocation2 + $0x1b0] sm:$0x1] %vm36, 0.0
  %56 = vst.msk [vmem:[#allocation2 + $0x1c8] sm:$0x1] %vm36, 0.0
  %57 = vst.msk [vmem:[#allocation2 + $0x1e0] sm:$0x1] %vm36, 0.0
  %58 = vst.msk [vmem:[#allocation2 + $0x1f8] sm:$0x1] %vm36, 0.0
  %59 = vst.msk [vmem:[#allocation2 + $0x210] sm:$0x1] %vm36, 0.0
  %60 = vst.msk [vmem:[#allocation2 + $0x228] sm:$0x1] %vm36, 0.0
  %61 = vst.msk [vmem:[#allocation2 + $0x240] sm:$0x1] %vm36, 0.0
  %62 = vst.msk [vmem:[#allocation2 + $0x258] sm:$0x1] %vm36, 0.0
  %63 = vst.msk [vmem:[#allocation2 + $0x270] sm:$0x1] %vm36, 0.0
  %64 = vst.msk [vmem:[#allocation2 + $0x288] sm:$0x1] %vm36, 0.0
  %65 = vst.msk [vmem:[#allocation2 + $0x2a0] sm:$0x1] %vm36, 0.0
  %66 = vst.msk [vmem:[#allocation2 + $0x2b8] sm:$0x1] %vm36, 0.0
  %67 = vst.msk [vmem:[#allocation2 + $0x2d0] sm:$0x1] %vm36, 0.0
  %68 = vst.msk [vmem:[#allocation2 + $0x2e8] sm:$0x1] %vm36, 0.0
  %69 = vst.msk [vmem:[#allocation2 + $0x300] sm:$0x1] %vm36, 0.0
  %70 = vst.msk [vmem:[#allocation2 + $0x318] sm:$0x1] %vm36, 0.0
  %71 = vst.msk [vmem:[#allocation2 + $0x330] sm:$0x1] %vm36, 0.0
  %72 = vst.msk [vmem:[#allocation2 + $0x348] sm:$0x1] %vm36, 0.0
  %73 = vst.msk [vmem:[#allocation2 + $0x11] sm:$0x1] %vm36, 0.0
  %74 = vst.msk [vmem:[#allocation2 + $0x29] sm:$0x1] %vm36, 0.0
  %75 = vst.msk [vmem:[#allocation2 + $0x41] sm:$0x1] %vm36, 0.0
  %76 = vst.msk [vmem:[#allocation2 + $0x59] sm:$0x1] %vm36, 0.0
  %77 = vst.msk [vmem:[#allocation2 + $0x71] sm:$0x1] %vm36, 0.0
  %78 = vst.msk [vmem:[#allocation2 + $0x89] sm:$0x1] %vm36, 0.0
  %79 = vst.msk [vmem:[#allocation2 + $0xa1] sm:$0x1] %vm36, 0.0
  %80 = vst.msk [vmem:[#allocation2 + $0xb9] sm:$0x1] %vm36, 0.0
  %81 = vst.msk [vmem:[#allocation2 + $0xd1] sm:$0x1] %vm36, 0.0
  %82 = vst.msk [vmem:[#allocation2 + $0xe9] sm:$0x1] %vm36, 0.0
  %83 = vst.msk [vmem:[#allocation2 + $0x101] sm:$0x1] %vm36, 0.0
  %84 = vst.msk [vmem:[#allocation2 + $0x119] sm:$0x1] %vm36, 0.0
  %85 = vst.msk [vmem:[#allocation2 + $0x131] sm:$0x1] %vm36, 0.0
  %86 = vst.msk [vmem:[#allocation2 + $0x149] sm:$0x1] %vm36, 0.0
  %87 = vst.msk [vmem:[#allocation2 + $0x161] sm:$0x1] %vm36, 0.0
  %88 = vst.msk [vmem:[#allocation2 + $0x179] sm:$0x1] %vm36, 0.0
  %89 = vst.msk [vmem:[#allocation2 + $0x191] sm:$0x1] %vm36, 0.0
  %90 = vst.msk [vmem:[#allocation2 + $0x1a9] sm:$0x1] %vm36, 0.0
  %91 = vst.msk [vmem:[#allocation2 + $0x1c1] sm:$0x1] %vm36, 0.0
  %92 = vst.msk [vmem:[#allocation2 + $0x1d9] sm:$0x1] %vm36, 0.0
  %93 = vst.msk [vmem:[#allocation2 + $0x1f1] sm:$0x1] %vm36, 0.0
  %94 = vst.msk [vmem:[#allocation2 + $0x209] sm:$0x1] %vm36, 0.0
  %95 = vst.msk [vmem:[#allocation2 + $0x221] sm:$0x1] %vm36, 0.0
  %96 = vst.msk [vmem:[#allocation2 + $0x239] sm:$0x1] %vm36, 0.0
  %97 = vst.msk [vmem:[#allocation2 + $0x251] sm:$0x1] %vm36, 0.0
  %98 = vst.msk [vmem:[#allocation2 + $0x269] sm:$0x1] %vm36, 0.0
  %99 = vst.msk [vmem:[#allocation2 + $0x281] sm:$0x1] %vm36, 0.0
  %100 = vst.msk [vmem:[#allocation2 + $0x299] sm:$0x1] %vm36, 0.0
  %101 = vst.msk [vmem:[#allocation2 + $0x2b1] sm:$0x1] %vm36, 0.0
  %102 = vst.msk [vmem:[#allocation2 + $0x2c9] sm:$0x1] %vm36, 0.0
  %103 = vst.msk [vmem:[#allocation2 + $0x2e1] sm:$0x1] %vm36, 0.0
  %104 = vst.msk [vmem:[#allocation2 + $0x2f9] sm:$0x1] %vm36, 0.0
  %105 = vst.msk [vmem:[#allocation2 + $0x311] sm:$0x1] %vm36, 0.0
  %106 = vst.msk [vmem:[#allocation2 + $0x329] sm:$0x1] %vm36, 0.0
  %107 = vst.msk [vmem:[#allocation2 + $0x341] sm:$0x1] %vm36, 0.0
  %108 = vst.msk [vmem:[#allocation2 + $0x359] sm:$0x1] %vm36, 0.0
  %vm109 = vcmask 64512
  %110 = vst.msk [vmem:[#allocation4] sm:$0xff] %vm109, 0.0
  %111 = vst.msk [vmem:[#allocation4 + $0x8] sm:$0xff] %vm109, 0.0
  %vm112 = vcmask 58368
  %113 = vst.msk [vmem:[#allocation4 + $0x10] sm:$0x3] %vm112, 0.0
  %114 = vst.msk [vmem:[#allocation4 + $0x1b0] sm:$0xff] %vm109, 0.0
  %115 = vst.msk [vmem:[#allocation4 + $0x1b8] sm:$0xff] %vm109, 0.0
  %116 = vst.msk [vmem:[#allocation4 + $0x1c0] sm:$0x3] %vm112, 0.0
  %s117 = scalar_lea.vmem [#allocation4], 408
  %118 = vst.msk [vmem:[%s117] sm:$0xff] %vm109, 0.0
  %119 = vst.msk [vmem:[%s117 + $0x8] sm:$0xff] %vm109, 0.0
  %120 = vst.msk [vmem:[%s117 + $0x10] sm:$0x3] %vm112, 0.0
  %121 = vst.msk [vmem:[%s117 + $0x1b0] sm:$0xff] %vm109, 0.0
  %122 = vst.msk [vmem:[%s117 + $0x1b8] sm:$0xff] %vm109, 0.0
  %123 = vst.msk [vmem:[%s117 + $0x1c0] sm:$0x3] %vm112, 0.0
  %vm124 = vcmask 57344
  %125 = vst.msk [vmem:[#allocation4] sm:$0x1] %vm124, 0.0
  %126 = vst.msk [vmem:[#allocation4 + $0x18] sm:$0x1] %vm124, 0.0
  %127 = vst.msk [vmem:[#allocation4 + $0x30] sm:$0x1] %vm124, 0.0
  %128 = vst.msk [vmem:[#allocation4 + $0x48] sm:$0x1] %vm124, 0.0
  %129 = vst.msk [vmem:[#allocation4 + $0x60] sm:$0x1] %vm124, 0.0
  %130 = vst.msk [vmem:[#allocation4 + $0x78] sm:$0x1] %vm124, 0.0
  %131 = vst.msk [vmem:[#allocation4 + $0x90] sm:$0x1] %vm124, 0.0
  %132 = vst.msk [vmem:[#allocation4 + $0xa8] sm:$0x1] %vm124, 0.0
  %133 = vst.msk [vmem:[#allocation4 + $0xc0] sm:$0x1] %vm124, 0.0
  %134 = vst.msk [vmem:[#allocation4 + $0xd8] sm:$0x1] %vm124, 0.0
  %135 = vst.msk [vmem:[#allocation4 + $0xf0] sm:$0x1] %vm124, 0.0
  %136 = vst.msk [vmem:[#allocation4 + $0x108] sm:$0x1] %vm124, 0.0
  %137 = vst.msk [vmem:[#allocation4 + $0x120] sm:$0x1] %vm124, 0.0
  %138 = vst.msk [vmem:[#allocation4 + $0x138] sm:$0x1] %vm124, 0.0
  %139 = vst.msk [vmem:[#allocation4 + $0x150] sm:$0x1] %vm124, 0.0
  %140 = vst.msk [vmem:[#allocation4 + $0x168] sm:$0x1] %vm124, 0.0
  %141 = vst.msk [vmem:[#allocation4 + $0x180] sm:$0x1] %vm124, 0.0
  %142 = vst.msk [vmem:[#allocation4 + $0x198] sm:$0x1] %vm124, 0.0
  %143 = vst.msk [vmem:[#allocation4 + $0x1b0] sm:$0x1] %vm124, 0.0
  %144 = vst.msk [vmem:[#allocation4 + $0x1c8] sm:$0x1] %vm124, 0.0
  %145 = vst.msk [vmem:[#allocation4 + $0x1e0] sm:$0x1] %vm124, 0.0
  %146 = vst.msk [vmem:[#allocation4 + $0x1f8] sm:$0x1] %vm124, 0.0
  %147 = vst.msk [vmem:[#allocation4 + $0x210] sm:$0x1] %vm124, 0.0
  %148 = vst.msk [vmem:[#allocation4 + $0x228] sm:$0x1] %vm124, 0.0
  %149 = vst.msk [vmem:[#allocation4 + $0x240] sm:$0x1] %vm124, 0.0
  %150 = vst.msk [vmem:[#allocation4 + $0x258] sm:$0x1] %vm124, 0.0
  %151 = vst.msk [vmem:[#allocation4 + $0x270] sm:$0x1] %vm124, 0.0
  %152 = vst.msk [vmem:[#allocation4 + $0x288] sm:$0x1] %vm124, 0.0
  %153 = vst.msk [vmem:[#allocation4 + $0x2a0] sm:$0x1] %vm124, 0.0
  %154 = vst.msk [vmem:[#allocation4 + $0x2b8] sm:$0x1] %vm124, 0.0
  %155 = vst.msk [vmem:[#allocation4 + $0x2d0] sm:$0x1] %vm124, 0.0
  %156 = vst.msk [vmem:[#allocation4 + $0x2e8] sm:$0x1] %vm124, 0.0
  %157 = vst.msk [vmem:[#allocation4 + $0x300] sm:$0x1] %vm124, 0.0
  %158 = vst.msk [vmem:[#allocation4 + $0x318] sm:$0x1] %vm124, 0.0
  %159 = vst.msk [vmem:[#allocation4 + $0x330] sm:$0x1] %vm124, 0.0
  %160 = vst.msk [vmem:[#allocation4 + $0x348] sm:$0x1] %vm124, 0.0
  %161 = vst.msk [vmem:[#allocation4 + $0x11] sm:$0x1] %vm124, 0.0
  %162 = vst.msk [vmem:[#allocation4 + $0x29] sm:$0x1] %vm124, 0.0
  %163 = vst.msk [vmem:[#allocation4 + $0x41] sm:$0x1] %vm124, 0.0
  %164 = vst.msk [vmem:[#allocation4 + $0x59] sm:$0x1] %vm124, 0.0
  %165 = vst.msk [vmem:[#allocation4 + $0x71] sm:$0x1] %vm124, 0.0
  %166 = vst.msk [vmem:[#allocation4 + $0x89] sm:$0x1] %vm124, 0.0
  %167 = vst.msk [vmem:[#allocation4 + $0xa1] sm:$0x1] %vm124, 0.0
  %168 = vst.msk [vmem:[#allocation4 + $0xb9] sm:$0x1] %vm124, 0.0
  %169 = vst.msk [vmem:[#allocation4 + $0xd1] sm:$0x1] %vm124, 0.0
  %170 = vst.msk [vmem:[#allocation4 + $0xe9] sm:$0x1] %vm124, 0.0
  %171 = vst.msk [vmem:[#allocation4 + $0x101] sm:$0x1] %vm124, 0.0
  %172 = vst.msk [vmem:[#allocation4 + $0x119] sm:$0x1] %vm124, 0.0
  %173 = vst.msk [vmem:[#allocation4 + $0x131] sm:$0x1] %vm124, 0.0
  %174 = vst.msk [vmem:[#allocation4 + $0x149] sm:$0x1] %vm124, 0.0
  %175 = vst.msk [vmem:[#allocation4 + $0x161] sm:$0x1] %vm124, 0.0
  %176 = vst.msk [vmem:[#allocation4 + $0x179] sm:$0x1] %vm124, 0.0
  %177 = vst.msk [vmem:[#allocation4 + $0x191] sm:$0x1] %vm124, 0.0
  %178 = vst.msk [vmem:[#allocation4 + $0x1a9] sm:$0x1] %vm124, 0.0
  %179 = vst.msk [vmem:[#allocation4 + $0x1c1] sm:$0x1] %vm124, 0.0
  %180 = vst.msk [vmem:[#allocation4 + $0x1d9] sm:$0x1] %vm124, 0.0
  %181 = vst.msk [vmem:[#allocation4 + $0x1f1] sm:$0x1] %vm124, 0.0
  %182 = vst.msk [vmem:[#allocation4 + $0x209] sm:$0x1] %vm124, 0.0
  %183 = vst.msk [vmem:[#allocation4 + $0x221] sm:$0x1] %vm124, 0.0
  %184 = vst.msk [vmem:[#allocation4 + $0x239] sm:$0x1] %vm124, 0.0
  %185 = vst.msk [vmem:[#allocation4 + $0x251] sm:$0x1] %vm124, 0.0
  %186 = vst.msk [vmem:[#allocation4 + $0x269] sm:$0x1] %vm124, 0.0
  %187 = vst.msk [vmem:[#allocation4 + $0x281] sm:$0x1] %vm124, 0.0
  %188 = vst.msk [vmem:[#allocation4 + $0x299] sm:$0x1] %vm124, 0.0
  %189 = vst.msk [vmem:[#allocation4 + $0x2b1] sm:$0x1] %vm124, 0.0
  %190 = vst.msk [vmem:[#allocation4 + $0x2c9] sm:$0x1] %vm124, 0.0
  %191 = vst.msk [vmem:[#allocation4 + $0x2e1] sm:$0x1] %vm124, 0.0
  %192 = vst.msk [vmem:[#allocation4 + $0x2f9] sm:$0x1] %vm124, 0.0
  %193 = vst.msk [vmem:[#allocation4 + $0x311] sm:$0x1] %vm124, 0.0
  %194 = vst.msk [vmem:[#allocation4 + $0x329] sm:$0x1] %vm124, 0.0
  %195 = vst.msk [vmem:[#allocation4 + $0x341] sm:$0x1] %vm124, 0.0
  %196 = vst.msk [vmem:[#allocation4 + $0x359] sm:$0x1] %vm124, 0.0
  %v197 = vld [vmem:[%s0] sm:$0xff]
  %v198 = vld [vmem:[%s0 + $0x8] sm:$0xff]
  %v199 = vld [vmem:[%s0 + $0x10] sm:$0xff]
  %v200 = vld [vmem:[%s0 + $0x18] sm:$0xff]
  %v201 = vld [vmem:[%s0 + $0x20] sm:$0xff]
  %v202 = vld [vmem:[%s0 + $0x28] sm:$0xff]
  %v203 = vld [vmem:[%s0 + $0x30] sm:$0xff]
  %v204 = vld [vmem:[%s0 + $0x38] sm:$0xff]
  %v205 = vld [vmem:[%s0 + $0x40] sm:$0xff]
  %v206 = vld [vmem:[%s0 + $0x48] sm:$0xff]
  %v207 = vld [vmem:[%s0 + $0x50] sm:$0xff]
  %v208 = vld [vmem:[%s0 + $0x58] sm:$0xff]
  %v209 = vld [vmem:[%s0 + $0x60] sm:$0xff]
  %v210 = vld [vmem:[%s0 + $0x68] sm:$0xff]
  %v211 = vld [vmem:[%s0 + $0x70] sm:$0xff]
  %v212 = vld [vmem:[%s0 + $0x78] sm:$0xff]
  %v213 = vld [vmem:[%s0 + $0x80] sm:$0xff]
  %v214 = vld [vmem:[%s0 + $0x88] sm:$0xff]
  %v215 = vld [vmem:[%s0 + $0x90] sm:$0xff]
  %v216 = vld [vmem:[%s0 + $0x98] sm:$0xff]
  %v217 = vld [vmem:[%s0 + $0xa0] sm:$0xff]
  %v218 = vld [vmem:[%s0 + $0xa8] sm:$0xff]
  %v219 = vld [vmem:[%s0 + $0xb0] sm:$0xff]
  %v220 = vld [vmem:[%s0 + $0xb8] sm:$0xff]
  %v221 = vld [vmem:[%s0 + $0xc0] sm:$0xff]
  %v222 = vld [vmem:[%s0 + $0xc8] sm:$0xff]
  %v223 = vld [vmem:[%s0 + $0xd0] sm:$0xff]
  %v224 = vld [vmem:[%s0 + $0xd8] sm:$0xff]
  %v225 = vld [vmem:[%s0 + $0xe0] sm:$0xff]
  %v226 = vld [vmem:[%s0 + $0xe8] sm:$0xff]
  %v227 = vld [vmem:[%s0 + $0xf0] sm:$0xff]
  %v228 = vld [vmem:[%s0 + $0xf8] sm:$0xff]
  %v229 = vld [vmem:[%s0 + $0x100] sm:$0xff]
  %v230 = vld [vmem:[%s0 + $0x108] sm:$0xff]
  %v231 = vld [vmem:[%s0 + $0x110] sm:$0xff]
  %v232 = vld [vmem:[%s0 + $0x118] sm:$0xff]
  %v233 = vld [vmem:[%s0 + $0x120] sm:$0xff]
  %v234 = vld [vmem:[%s0 + $0x128] sm:$0xff]
  %v235 = vld [vmem:[%s0 + $0x130] sm:$0xff]
  %v236 = vld [vmem:[%s0 + $0x138] sm:$0xff]
  %v237 = vld [vmem:[%s0 + $0x140] sm:$0xff]
  %v238 = vld [vmem:[%s0 + $0x148] sm:$0xff]
  %v239 = vld [vmem:[%s0 + $0x150] sm:$0xff]
  %v240 = vld [vmem:[%s0 + $0x158] sm:$0xff]
  %v241 = vld [vmem:[%s0 + $0x160] sm:$0xff]
  %v242 = vld [vmem:[%s0 + $0x168] sm:$0xff]
  %v243 = vld [vmem:[%s0 + $0x170] sm:$0xff]
  %v244 = vld [vmem:[%s0 + $0x178] sm:$0xff]
  %v245 = vld [vmem:[%s0 + $0x180] sm:$0xff]
  %v246 = vld [vmem:[%s0 + $0x188] sm:$0xff]
  %v247 = vld [vmem:[%s0 + $0x190] sm:$0xff]
  %v248 = vld [vmem:[%s0 + $0x198] sm:$0xff]
  %v249 = vld [vmem:[%s0 + $0x1a0] sm:$0xff]
  %v250 = vld [vmem:[%s0 + $0x1a8] sm:$0xff]
  %v251 = vld [vmem:[%s0 + $0x1b0] sm:$0xff]
  %v252 = vld [vmem:[%s0 + $0x1b8] sm:$0xff]
  %v253 = vld [vmem:[%s0 + $0x1c0] sm:$0xff]
  %v254 = vld [vmem:[%s0 + $0x1c8] sm:$0xff]
  %v255 = vld [vmem:[%s0 + $0x1d0] sm:$0xff]
  %v256 = vld [vmem:[%s0 + $0x1d8] sm:$0xff]
  %v257 = vld [vmem:[%s0 + $0x1e0] sm:$0xff]
  %v258 = vld [vmem:[%s0 + $0x1e8] sm:$0xff]
  %v259 = vld [vmem:[%s0 + $0x1f0] sm:$0xff]
  %v260 = vld [vmem:[%s0 + $0x1f8] sm:$0xff]
  %s261 = scalar_lea.vmem [#allocation2], 24
  %262 = vst.msk [vmem:[%s261 + $0x1] sm:$0xff] %vm21, %v197
  %263 = vst.msk [vmem:[%s261 + $0x9] sm:$0xff] %vm21, %v198
  %264 = vst.msk [vmem:[%s261 + $0x19] sm:$0xff] %vm21, %v199
  %265 = vst.msk [vmem:[%s261 + $0x21] sm:$0xff] %vm21, %v200
  %266 = vst.msk [vmem:[%s261 + $0x31] sm:$0xff] %vm21, %v201
  %267 = vst.msk [vmem:[%s261 + $0x39] sm:$0xff] %vm21, %v202
  %268 = vst.msk [vmem:[%s261 + $0x49] sm:$0xff] %vm21, %v203
  %269 = vst.msk [vmem:[%s261 + $0x51] sm:$0xff] %vm21, %v204
  %270 = vst.msk [vmem:[%s261 + $0x61] sm:$0xff] %vm21, %v205
  %271 = vst.msk [vmem:[%s261 + $0x69] sm:$0xff] %vm21, %v206
  %272 = vst.msk [vmem:[%s261 + $0x79] sm:$0xff] %vm21, %v207
  %273 = vst.msk [vmem:[%s261 + $0x81] sm:$0xff] %vm21, %v208
  %274 = vst.msk [vmem:[%s261 + $0x91] sm:$0xff] %vm21, %v209
  %275 = vst.msk [vmem:[%s261 + $0x99] sm:$0xff] %vm21, %v210
  %276 = vst.msk [vmem:[%s261 + $0xa9] sm:$0xff] %vm21, %v211
  %277 = vst.msk [vmem:[%s261 + $0xb1] sm:$0xff] %vm21, %v212
  %278 = vst.msk [vmem:[%s261 + $0xc1] sm:$0xff] %vm21, %v213
  %279 = vst.msk [vmem:[%s261 + $0xc9] sm:$0xff] %vm21, %v214
  %280 = vst.msk [vmem:[%s261 + $0xd9] sm:$0xff] %vm21, %v215
  %281 = vst.msk [vmem:[%s261 + $0xe1] sm:$0xff] %vm21, %v216
  %282 = vst.msk [vmem:[%s261 + $0xf1] sm:$0xff] %vm21, %v217
  %283 = vst.msk [vmem:[%s261 + $0xf9] sm:$0xff] %vm21, %v218
  %284 = vst.msk [vmem:[%s261 + $0x109] sm:$0xff] %vm21, %v219
  %285 = vst.msk [vmem:[%s261 + $0x111] sm:$0xff] %vm21, %v220
  %286 = vst.msk [vmem:[%s261 + $0x121] sm:$0xff] %vm21, %v221
  %287 = vst.msk [vmem:[%s261 + $0x129] sm:$0xff] %vm21, %v222
  %288 = vst.msk [vmem:[%s261 + $0x139] sm:$0xff] %vm21, %v223
  %289 = vst.msk [vmem:[%s261 + $0x141] sm:$0xff] %vm21, %v224
  %290 = vst.msk [vmem:[%s261 + $0x151] sm:$0xff] %vm21, %v225
  %291 = vst.msk [vmem:[%s261 + $0x159] sm:$0xff] %vm21, %v226
  %292 = vst.msk [vmem:[%s261 + $0x169] sm:$0xff] %vm21, %v227
  %293 = vst.msk [vmem:[%s261 + $0x171] sm:$0xff] %vm21, %v228
  %294 = vst.msk [vmem:[%s261 + $0x1b1] sm:$0xff] %vm21, %v229
  %295 = vst.msk [vmem:[%s261 + $0x1b9] sm:$0xff] %vm21, %v230
  %296 = vst.msk [vmem:[%s261 + $0x1c9] sm:$0xff] %vm21, %v231
  %297 = vst.msk [vmem:[%s261 + $0x1d1] sm:$0xff] %vm21, %v232
  %298 = vst.msk [vmem:[%s261 + $0x1e1] sm:$0xff] %vm21, %v233
  %299 = vst.msk [vmem:[%s261 + $0x1e9] sm:$0xff] %vm21, %v234
  %300 = vst.msk [vmem:[%s261 + $0x1f9] sm:$0xff] %vm21, %v235
  %301 = vst.msk [vmem:[%s261 + $0x201] sm:$0xff] %vm21, %v236
  %302 = vst.msk [vmem:[%s261 + $0x211] sm:$0xff] %vm21, %v237
  %303 = vst.msk [vmem:[%s261 + $0x219] sm:$0xff] %vm21, %v238
  %304 = vst.msk [vmem:[%s261 + $0x229] sm:$0xff] %vm21, %v239
  %305 = vst.msk [vmem:[%s261 + $0x231] sm:$0xff] %vm21, %v240
  %306 = vst.msk [vmem:[%s261 + $0x241] sm:$0xff] %vm21, %v241
  %307 = vst.msk [vmem:[%s261 + $0x249] sm:$0xff] %vm21, %v242
  %308 = vst.msk [vmem:[%s261 + $0x259] sm:$0xff] %vm21, %v243
  %309 = vst.msk [vmem:[%s261 + $0x261] sm:$0xff] %vm21, %v244
  %310 = vst.msk [vmem:[%s261 + $0x271] sm:$0xff] %vm21, %v245
  %311 = vst.msk [vmem:[%s261 + $0x279] sm:$0xff] %vm21, %v246
  %312 = vst.msk [vmem:[%s261 + $0x289] sm:$0xff] %vm21, %v247
  %313 = vst.msk [vmem:[%s261 + $0x291] sm:$0xff] %vm21, %v248
  %314 = vst.msk [vmem:[%s261 + $0x2a1] sm:$0xff] %vm21, %v249
  %315 = vst.msk [vmem:[%s261 + $0x2a9] sm:$0xff] %vm21, %v250
  %316 = vst.msk [vmem:[%s261 + $0x2b9] sm:$0xff] %vm21, %v251
  %317 = vst.msk [vmem:[%s261 + $0x2c1] sm:$0xff] %vm21, %v252
  %318 = vst.msk [vmem:[%s261 + $0x2d1] sm:$0xff] %vm21, %v253
  %319 = vst.msk [vmem:[%s261 + $0x2d9] sm:$0xff] %vm21, %v254
  %320 = vst.msk [vmem:[%s261 + $0x2e9] sm:$0xff] %vm21, %v255
  %321 = vst.msk [vmem:[%s261 + $0x2f1] sm:$0xff] %vm21, %v256
  %322 = vst.msk [vmem:[%s261 + $0x301] sm:$0xff] %vm21, %v257
  %323 = vst.msk [vmem:[%s261 + $0x309] sm:$0xff] %vm21, %v258
  %324 = vst.msk [vmem:[%s261 + $0x319] sm:$0xff] %vm21, %v259
  %325 = vst.msk [vmem:[%s261 + $0x321] sm:$0xff] %vm21, %v260
  %v326 = vld [vmem:[#allocation2] sm:$0xff]
  %v327 = vld [vmem:[#allocation2 + $0x8] sm:$0xff]
  %v328 = vld [vmem:[#allocation2 + $0x18] sm:$0xff]
  %v329 = vld [vmem:[#allocation2 + $0x20] sm:$0xff]
  %v330 = vld [vmem:[#allocation2 + $0x30] sm:$0xff]
  %v331 = vld [vmem:[#allocation2 + $0x38] sm:$0xff]
  %v332 = vld [vmem:[#allocation2 + $0x48] sm:$0xff]
  %v333 = vld [vmem:[#allocation2 + $0x50] sm:$0xff]
  %v334 = vld [vmem:[#allocation2 + $0x60] sm:$0xff]
  %v335 = vld [vmem:[#allocation2 + $0x68] sm:$0xff]
  %v336 = vld [vmem:[#allocation2 + $0x78] sm:$0xff]
  %v337 = vld [vmem:[#allocation2 + $0x80] sm:$0xff]
  %v338 = vld [vmem:[#allocation2 + $0x90] sm:$0xff]
  %v339 = vld [vmem:[#allocation2 + $0x98] sm:$0xff]
  %v340 = vld [vmem:[#allocation2 + $0xa8] sm:$0xff]
  %v341 = vld [vmem:[#allocation2 + $0xb0] sm:$0xff]
  %v342 = vld [vmem:[#allocation2 + $0xc0] sm:$0xff]
  %v343 = vld [vmem:[#allocation2 + $0xc8] sm:$0xff]
  %v344 = vld [vmem:[#allocation2 + $0xd8] sm:$0xff]
  %v345 = vld [vmem:[#allocation2 + $0xe0] sm:$0xff]
  %v346 = vld [vmem:[#allocation2 + $0xf0] sm:$0xff]
  %v347 = vld [vmem:[#allocation2 + $0xf8] sm:$0xff]
  %v348 = vld [vmem:[#allocation2 + $0x108] sm:$0xff]
  %v349 = vld [vmem:[#allocation2 + $0x110] sm:$0xff]
  %v350 = vld [vmem:[#allocation2 + $0x120] sm:$0xff]
  %v351 = vld [vmem:[#allocation2 + $0x128] sm:$0xff]
  %v352 = vld [vmem:[#allocation2 + $0x138] sm:$0xff]
  %v353 = vld [vmem:[#allocation2 + $0x140] sm:$0xff]
  %v354 = vld [vmem:[#allocation2 + $0x150] sm:$0xff]
  %v355 = vld [vmem:[#allocation2 + $0x158] sm:$0xff]
  %v356 = vld [vmem:[#allocation2 + $0x168] sm:$0xff]
  %v357 = vld [vmem:[#allocation2 + $0x170] sm:$0xff]
  %v358 = vld [vmem:[#allocation2 + $0x1b0] sm:$0xff]
  %v359 = vld [vmem:[#allocation2 + $0x1b8] sm:$0xff]
  %v360 = vld [vmem:[#allocation2 + $0x1c8] sm:$0xff]
  %v361 = vld [vmem:[#allocation2 + $0x1d0] sm:$0xff]
  %v362 = vld [vmem:[#allocation2 + $0x1e0] sm:$0xff]
  %v363 = vld [vmem:[#allocation2 + $0x1e8] sm:$0xff]
  %v364 = vld [vmem:[#allocation2 + $0x1f8] sm:$0xff]
  %v365 = vld [vmem:[#allocation2 + $0x200] sm:$0xff]
  %v366 = vld [vmem:[#allocation2 + $0x210] sm:$0xff]
  %v367 = vld [vmem:[#allocation2 + $0x218] sm:$0xff]
  %v368 = vld [vmem:[#allocation2 + $0x228] sm:$0xff]
  %v369 = vld [vmem:[#allocation2 + $0x230] sm:$0xff]
  %v370 = vld [vmem:[#allocation2 + $0x240] sm:$0xff]
  %v371 = vld [vmem:[#allocation2 + $0x248] sm:$0xff]
  %v372 = vld [vmem:[#allocation2 + $0x258] sm:$0xff]
  %v373 = vld [vmem:[#allocation2 + $0x260] sm:$0xff]
  %v374 = vld [vmem:[#allocation2 + $0x270] sm:$0xff]
  %v375 = vld [vmem:[#allocation2 + $0x278] sm:$0xff]
  %v376 = vld [vmem:[#allocation2 + $0x288] sm:$0xff]
  %v377 = vld [vmem:[#allocation2 + $0x290] sm:$0xff]
  %v378 = vld [vmem:[#allocation2 + $0x2a0] sm:$0xff]
  %v379 = vld [vmem:[#allocation2 + $0x2a8] sm:$0xff]
  %v380 = vld [vmem:[#allocation2 + $0x2b8] sm:$0xff]
  %v381 = vld [vmem:[#allocation2 + $0x2c0] sm:$0xff]
  %v382 = vld [vmem:[#allocation2 + $0x2d0] sm:$0xff]
  %v383 = vld [vmem:[#allocation2 + $0x2d8] sm:$0xff]
  %v384 = vld [vmem:[#allocation2 + $0x2e8] sm:$0xff]
  %v385 = vld [vmem:[#allocation2 + $0x2f0] sm:$0xff]
  %v386 = vld [vmem:[#allocation2 + $0x300] sm:$0xff]
  %v387 = vld [vmem:[#allocation2 + $0x308] sm:$0xff]
  %v388 = vld [vmem:[#allocation2 + $0x318] sm:$0xff]
  %v389 = vld [vmem:[#allocation2 + $0x320] sm:$0xff]
  %v390 = vpack.c.bf16 %v327, %v326
  %v391 = vpack.c.bf16 %v329, %v328
  %v392 = vpack.c.bf16 %v331, %v330
  %v393 = vpack.c.bf16 %v333, %v332
  %v394 = vpack.c.bf16 %v335, %v334
  %v395 = vpack.c.bf16 %v337, %v336
  %v396 = vpack.c.bf16 %v339, %v338
  %v397 = vpack.c.bf16 %v341, %v340
  %v398 = vpack.c.bf16 %v343, %v342
  %v399 = vpack.c.bf16 %v345, %v344
  %v400 = vpack.c.bf16 %v347, %v346
  %v401 = vpack.c.bf16 %v349, %v348
  %v402 = vpack.c.bf16 %v351, %v350
  %v403 = vpack.c.bf16 %v353, %v352
  %v404 = vpack.c.bf16 %v355, %v354
  %v405 = vpack.c.bf16 %v357, %v356
  %v406 = vpack.c.bf16 %v359, %v358
  %v407 = vpack.c.bf16 %v361, %v360
  %v408 = vpack.c.bf16 %v363, %v362
  %v409 = vpack.c.bf16 %v365, %v364
  %v410 = vpack.c.bf16 %v367, %v366
  %v411 = vpack.c.bf16 %v369, %v368
  %v412 = vpack.c.bf16 %v371, %v370
  %v413 = vpack.c.bf16 %v373, %v372
  %v414 = vpack.c.bf16 %v375, %v374
  %v415 = vpack.c.bf16 %v377, %v376
  %v416 = vpack.c.bf16 %v379, %v378
  %v417 = vpack.c.bf16 %v381, %v380
  %v418 = vpack.c.bf16 %v383, %v382
  %v419 = vpack.c.bf16 %v385, %v384
  %v420 = vpack.c.bf16 %v387, %v386
  %v421 = vpack.c.bf16 %v389, %v388
  %v422 = vld [vmem:[#allocation2 + $0x1] sm:$0xff]
  %v423 = vld [vmem:[#allocation2 + $0x9] sm:$0xff]
  %v424 = vld [vmem:[#allocation2 + $0x19] sm:$0xff]
  %v425 = vld [vmem:[#allocation2 + $0x21] sm:$0xff]
  %v426 = vld [vmem:[#allocation2 + $0x31] sm:$0xff]
  %v427 = vld [vmem:[#allocation2 + $0x39] sm:$0xff]
  %v428 = vld [vmem:[#allocation2 + $0x49] sm:$0xff]
  %v429 = vld [vmem:[#allocation2 + $0x51] sm:$0xff]
  %v430 = vld [vmem:[#allocation2 + $0x61] sm:$0xff]
  %v431 = vld [vmem:[#allocation2 + $0x69] sm:$0xff]
  %v432 = vld [vmem:[#allocation2 + $0x79] sm:$0xff]
  %v433 = vld [vmem:[#allocation2 + $0x81] sm:$0xff]
  %v434 = vld [vmem:[#allocation2 + $0x91] sm:$0xff]
  %v435 = vld [vmem:[#allocation2 + $0x99] sm:$0xff]
  %v436 = vld [vmem:[#allocation2 + $0xa9] sm:$0xff]
  %v437 = vld [vmem:[#allocation2 + $0xb1] sm:$0xff]
  %v438 = vld [vmem:[#allocation2 + $0xc1] sm:$0xff]
  %v439 = vld [vmem:[#allocation2 + $0xc9] sm:$0xff]
  %v440 = vld [vmem:[#allocation2 + $0xd9] sm:$0xff]
  %v441 = vld [vmem:[#allocation2 + $0xe1] sm:$0xff]
  %v442 = vld [vmem:[#allocation2 + $0xf1] sm:$0xff]
  %v443 = vld [vmem:[#allocation2 + $0xf9] sm:$0xff]
  %v444 = vld [vmem:[#allocation2 + $0x109] sm:$0xff]
  %v445 = vld [vmem:[#allocation2 + $0x111] sm:$0xff]
  %v446 = vld [vmem:[#allocation2 + $0x121] sm:$0xff]
  %v447 = vld [vmem:[#allocation2 + $0x129] sm:$0xff]
  %v448 = vld [vmem:[#allocation2 + $0x139] sm:$0xff]
  %v449 = vld [vmem:[#allocation2 + $0x141] sm:$0xff]
  %v450 = vld [vmem:[#allocation2 + $0x151] sm:$0xff]
  %v451 = vld [vmem:[#allocation2 + $0x159] sm:$0xff]
  %v452 = vld [vmem:[#allocation2 + $0x169] sm:$0xff]
  %v453 = vld [vmem:[#allocation2 + $0x171] sm:$0xff]
  %v454 = vld [vmem:[#allocation2 + $0x1b1] sm:$0xff]
  %v455 = vld [vmem:[#allocation2 + $0x1b9] sm:$0xff]
  %v456 = vld [vmem:[#allocation2 + $0x1c9] sm:$0xff]
  %v457 = vld [vmem:[#allocation2 + $0x1d1] sm:$0xff]
  %v458 = vld [vmem:[#allocation2 + $0x1e1] sm:$0xff]
  %v459 = vld [vmem:[#allocation2 + $0x1e9] sm:$0xff]
  %v460 = vld [vmem:[#allocation2 + $0x1f9] sm:$0xff]
  %v461 = vld [vmem:[#allocation2 + $0x201] sm:$0xff]
  %v462 = vld [vmem:[#allocation2 + $0x211] sm:$0xff]
  %v463 = vld [vmem:[#allocation2 + $0x219] sm:$0xff]
  %v464 = vld [vmem:[#allocation2 + $0x229] sm:$0xff]
  %v465 = vld [vmem:[#allocation2 + $0x231] sm:$0xff]
  %v466 = vld [vmem:[#allocation2 + $0x241] sm:$0xff]
  %v467 = vld [vmem:[#allocation2 + $0x249] sm:$0xff]
  %v468 = vld [vmem:[#allocation2 + $0x259] sm:$0xff]
  %v469 = vld [vmem:[#allocation2 + $0x261] sm:$0xff]
  %v470 = vld [vmem:[#allocation2 + $0x271] sm:$0xff]
  %v471 = vld [vmem:[#allocation2 + $0x279] sm:$0xff]
  %v472 = vld [vmem:[#allocation2 + $0x289] sm:$0xff]
  %v473 = vld [vmem:[#allocation2 + $0x291] sm:$0xff]
  %v474 = vld [vmem:[#allocation2 + $0x2a1] sm:$0xff]
  %v475 = vld [vmem:[#allocation2 + $0x2a9] sm:$0xff]
  %v476 = vld [vmem:[#allocation2 + $0x2b9] sm:$0xff]
  %v477 = vld [vmem:[#allocation2 + $0x2c1] sm:$0xff]
  %v478 = vld [vmem:[#allocation2 + $0x2d1] sm:$0xff]
  %v479 = vld [vmem:[#allocation2 + $0x2d9] sm:$0xff]
  %v480 = vld [vmem:[#allocation2 + $0x2e9] sm:$0xff]
  %v481 = vld [vmem:[#allocation2 + $0x2f1] sm:$0xff]
  %v482 = vld [vmem:[#allocation2 + $0x301] sm:$0xff]
  %v483 = vld [vmem:[#allocation2 + $0x309] sm:$0xff]
  %v484 = vld [vmem:[#allocation2 + $0x319] sm:$0xff]
  %v485 = vld [vmem:[#allocation2 + $0x321] sm:$0xff]
  %v486 = vpack.c.bf16 %v423, %v422
  %v487 = vpack.c.bf16 %v425, %v424
  %v488 = vpack.c.bf16 %v427, %v426
  %v489 = vpack.c.bf16 %v429, %v428
  %v490 = vpack.c.bf16 %v431, %v430
  %v491 = vpack.c.bf16 %v433, %v432
  %v492 = vpack.c.bf16 %v435, %v434
  %v493 = vpack.c.bf16 %v437, %v436
  %v494 = vpack.c.bf16 %v439, %v438
  %v495 = vpack.c.bf16 %v441, %v440
  %v496 = vpack.c.bf16 %v443, %v442
  %v497 = vpack.c.bf16 %v445, %v444
  %v498 = vpack.c.bf16 %v447, %v446
  %v499 = vpack.c.bf16 %v449, %v448
  %v500 = vpack.c.bf16 %v451, %v450
  %v501 = vpack.c.bf16 %v453, %v452
  %v502 = vpack.c.bf16 %v455, %v454
  %v503 = vpack.c.bf16 %v457, %v456
  %v504 = vpack.c.bf16 %v459, %v458
  %v505 = vpack.c.bf16 %v461, %v460
  %v506 = vpack.c.bf16 %v463, %v462
  %v507 = vpack.c.bf16 %v465, %v464
  %v508 = vpack.c.bf16 %v467, %v466
  %v509 = vpack.c.bf16 %v469, %v468
  %v510 = vpack.c.bf16 %v471, %v470
  %v511 = vpack.c.bf16 %v473, %v472
  %v512 = vpack.c.bf16 %v475, %v474
  %v513 = vpack.c.bf16 %v477, %v476
  %v514 = vpack.c.bf16 %v479, %v478
  %v515 = vpack.c.bf16 %v481, %v480
  %v516 = vpack.c.bf16 %v483, %v482
  %v517 = vpack.c.bf16 %v485, %v484
  %v518 = vld [vmem:[#allocation2 + $0x2] sm:$0xff]
  %v519 = vld [vmem:[#allocation2 + $0xa] sm:$0xff]
  %v520 = vld [vmem:[#allocation2 + $0x1a] sm:$0xff]
  %v521 = vld [vmem:[#allocation2 + $0x22] sm:$0xff]
  %v522 = vld [vmem:[#allocation2 + $0x32] sm:$0xff]
  %v523 = vld [vmem:[#allocation2 + $0x3a] sm:$0xff]
  %v524 = vld [vmem:[#allocation2 + $0x4a] sm:$0xff]
  %v525 = vld [vmem:[#allocation2 + $0x52] sm:$0xff]
  %v526 = vld [vmem:[#allocation2 + $0x62] sm:$0xff]
  %v527 = vld [vmem:[#allocation2 + $0x6a] sm:$0xff]
  %v528 = vld [vmem:[#allocation2 + $0x7a] sm:$0xff]
  %v529 = vld [vmem:[#allocation2 + $0x82] sm:$0xff]
  %v530 = vld [vmem:[#allocation2 + $0x92] sm:$0xff]
  %v531 = vld [vmem:[#allocation2 + $0x9a] sm:$0xff]
  %v532 = vld [vmem:[#allocation2 + $0xaa] sm:$0xff]
  %v533 = vld [vmem:[#allocation2 + $0xb2] sm:$0xff]
  %v534 = vld [vmem:[#allocation2 + $0xc2] sm:$0xff]
  %v535 = vld [vmem:[#allocation2 + $0xca] sm:$0xff]
  %v536 = vld [vmem:[#allocation2 + $0xda] sm:$0xff]
  %v537 = vld [vmem:[#allocation2 + $0xe2] sm:$0xff]
  %v538 = vld [vmem:[#allocation2 + $0xf2] sm:$0xff]
  %v539 = vld [vmem:[#allocation2 + $0xfa] sm:$0xff]
  %v540 = vld [vmem:[#allocation2 + $0x10a] sm:$0xff]
  %v541 = vld [vmem:[#allocation2 + $0x112] sm:$0xff]
  %v542 = vld [vmem:[#allocation2 + $0x122] sm:$0xff]
  %v543 = vld [vmem:[#allocation2 + $0x12a] sm:$0xff]
  %v544 = vld [vmem:[#allocation2 + $0x13a] sm:$0xff]
  %v545 = vld [vmem:[#allocation2 + $0x142] sm:$0xff]
  %v546 = vld [vmem:[#allocation2 + $0x152] sm:$0xff]
  %v547 = vld [vmem:[#allocation2 + $0x15a] sm:$0xff]
  %v548 = vld [vmem:[#allocation2 + $0x16a] sm:$0xff]
  %v549 = vld [vmem:[#allocation2 + $0x172] sm:$0xff]
  %v550 = vld [vmem:[#allocation2 + $0x1b2] sm:$0xff]
  %v551 = vld [vmem:[#allocation2 + $0x1ba] sm:$0xff]
  %v552 = vld [vmem:[#allocation2 + $0x1ca] sm:$0xff]
  %v553 = vld [vmem:[#allocation2 + $0x1d2] sm:$0xff]
  %v554 = vld [vmem:[#allocation2 + $0x1e2] sm:$0xff]
  %v555 = vld [vmem:[#allocation2 + $0x1ea] sm:$0xff]
  %v556 = vld [vmem:[#allocation2 + $0x1fa] sm:$0xff]
  %v557 = vld [vmem:[#allocation2 + $0x202] sm:$0xff]
  %v558 = vld [vmem:[#allocation2 + $0x212] sm:$0xff]
  %v559 = vld [vmem:[#allocation2 + $0x21a] sm:$0xff]
  %v560 = vld [vmem:[#allocation2 + $0x22a] sm:$0xff]
  %v561 = vld [vmem:[#allocation2 + $0x232] sm:$0xff]
  %v562 = vld [vmem:[#allocation2 + $0x242] sm:$0xff]
  %v563 = vld [vmem:[#allocation2 + $0x24a] sm:$0xff]
  %v564 = vld [vmem:[#allocation2 + $0x25a] sm:$0xff]
  %v565 = vld [vmem:[#allocation2 + $0x262] sm:$0xff]
  %v566 = vld [vmem:[#allocation2 + $0x272] sm:$0xff]
  %v567 = vld [vmem:[#allocation2 + $0x27a] sm:$0xff]
  %v568 = vld [vmem:[#allocation2 + $0x28a] sm:$0xff]
  %v569 = vld [vmem:[#allocation2 + $0x292] sm:$0xff]
  %v570 = vld [vmem:[#allocation2 + $0x2a2] sm:$0xff]
  %v571 = vld [vmem:[#allocation2 + $0x2aa] sm:$0xff]
  %v572 = vld [vmem:[#allocation2 + $0x2ba] sm:$0xff]
  %v573 = vld [vmem:[#allocation2 + $0x2c2] sm:$0xff]
  %v574 = vld [vmem:[#allocation2 + $0x2d2] sm:$0xff]
  %v575 = vld [vmem:[#allocation2 + $0x2da] sm:$0xff]
  %v576 = vld [vmem:[#allocation2 + $0x2ea] sm:$0xff]
  %v577 = vld [vmem:[#allocation2 + $0x2f2] sm:$0xff]
  %v578 = vld [vmem:[#allocation2 + $0x302] sm:$0xff]
  %v579 = vld [vmem:[#allocation2 + $0x30a] sm:$0xff]
  %v580 = vld [vmem:[#allocation2 + $0x31a] sm:$0xff]
  %v581 = vld [vmem:[#allocation2 + $0x322] sm:$0xff]
  %v582 = vpack.c.bf16 %v519, %v518
  %v583 = vpack.c.bf16 %v521, %v520
  %v584 = vpack.c.bf16 %v523, %v522
  %v585 = vpack.c.bf16 %v525, %v524
  %v586 = vpack.c.bf16 %v527, %v526
  %v587 = vpack.c.bf16 %v529, %v528
  %v588 = vpack.c.bf16 %v531, %v530
  %v589 = vpack.c.bf16 %v533, %v532
  %v590 = vpack.c.bf16 %v535, %v534
  %v591 = vpack.c.bf16 %v537, %v536
  %v592 = vpack.c.bf16 %v539, %v538
  %v593 = vpack.c.bf16 %v541, %v540
  %v594 = vpack.c.bf16 %v543, %v542
  %v595 = vpack.c.bf16 %v545, %v544
  %v596 = vpack.c.bf16 %v547, %v546
  %v597 = vpack.c.bf16 %v549, %v548
  %v598 = vpack.c.bf16 %v551, %v550
  %v599 = vpack.c.bf16 %v553, %v552
  %v600 = vpack.c.bf16 %v555, %v554
  %v601 = vpack.c.bf16 %v557, %v556
  %v602 = vpack.c.bf16 %v559, %v558
  %v603 = vpack.c.bf16 %v561, %v560
  %v604 = vpack.c.bf16 %v563, %v562
  %v605 = vpack.c.bf16 %v565, %v564
  %v606 = vpack.c.bf16 %v567, %v566
  %v607 = vpack.c.bf16 %v569, %v568
  %v608 = vpack.c.bf16 %v571, %v570
  %v609 = vpack.c.bf16 %v573, %v572
  %v610 = vpack.c.bf16 %v575, %v574
  %v611 = vpack.c.bf16 %v577, %v576
  %v612 = vpack.c.bf16 %v579, %v578
  %v613 = vpack.c.bf16 %v581, %v580
  %v614 = vld [vmem:[%s261] sm:$0xff]
  %v615 = vld [vmem:[%s261 + $0x8] sm:$0xff]
  %v616 = vld [vmem:[%s261 + $0x18] sm:$0xff]
  %v617 = vld [vmem:[%s261 + $0x20] sm:$0xff]
  %v618 = vld [vmem:[%s261 + $0x30] sm:$0xff]
  %v619 = vld [vmem:[%s261 + $0x38] sm:$0xff]
  %v620 = vld [vmem:[%s261 + $0x48] sm:$0xff]
  %v621 = vld [vmem:[%s261 + $0x50] sm:$0xff]
  %v622 = vld [vmem:[%s261 + $0x60] sm:$0xff]
  %v623 = vld [vmem:[%s261 + $0x68] sm:$0xff]
  %v624 = vld [vmem:[%s261 + $0x78] sm:$0xff]
  %v625 = vld [vmem:[%s261 + $0x80] sm:$0xff]
  %v626 = vld [vmem:[%s261 + $0x90] sm:$0xff]
  %v627 = vld [vmem:[%s261 + $0x98] sm:$0xff]
  %v628 = vld [vmem:[%s261 + $0xa8] sm:$0xff]
  %v629 = vld [vmem:[%s261 + $0xb0] sm:$0xff]
  %v630 = vld [vmem:[%s261 + $0xc0] sm:$0xff]
  %v631 = vld [vmem:[%s261 + $0xc8] sm:$0xff]
  %v632 = vld [vmem:[%s261 + $0xd8] sm:$0xff]
  %v633 = vld [vmem:[%s261 + $0xe0] sm:$0xff]
  %v634 = vld [vmem:[%s261 + $0xf0] sm:$0xff]
  %v635 = vld [vmem:[%s261 + $0xf8] sm:$0xff]
  %v636 = vld [vmem:[%s261 + $0x108] sm:$0xff]
  %v637 = vld [vmem:[%s261 + $0x110] sm:$0xff]
  %v638 = vld [vmem:[%s261 + $0x120] sm:$0xff]
  %v639 = vld [vmem:[%s261 + $0x128] sm:$0xff]
  %v640 = vld [vmem:[%s261 + $0x138] sm:$0xff]
  %v641 = vld [vmem:[%s261 + $0x140] sm:$0xff]
  %v642 = vld [vmem:[%s261 + $0x150] sm:$0xff]
  %v643 = vld [vmem:[%s261 + $0x158] sm:$0xff]
  %v644 = vld [vmem:[%s261 + $0x168] sm:$0xff]
  %v645 = vld [vmem:[%s261 + $0x170] sm:$0xff]
  %v646 = vld [vmem:[%s261 + $0x1b0] sm:$0xff]
  %v647 = vld [vmem:[%s261 + $0x1b8] sm:$0xff]
  %v648 = vld [vmem:[%s261 + $0x1c8] sm:$0xff]
  %v649 = vld [vmem:[%s261 + $0x1d0] sm:$0xff]
  %v650 = vld [vmem:[%s261 + $0x1e0] sm:$0xff]
  %v651 = vld [vmem:[%s261 + $0x1e8] sm:$0xff]
  %v652 = vld [vmem:[%s261 + $0x1f8] sm:$0xff]
  %v653 = vld [vmem:[%s261 + $0x200] sm:$0xff]
  %v654 = vld [vmem:[%s261 + $0x210] sm:$0xff]
  %v655 = vld [vmem:[%s261 + $0x218] sm:$0xff]
  %v656 = vld [vmem:[%s261 + $0x228] sm:$0xff]
  %v657 = vld [vmem:[%s261 + $0x230] sm:$0xff]
  %v658 = vld [vmem:[%s261 + $0x240] sm:$0xff]
  %v659 = vld [vmem:[%s261 + $0x248] sm:$0xff]
  %v660 = vld [vmem:[%s261 + $0x258] sm:$0xff]
  %v661 = vld [vmem:[%s261 + $0x260] sm:$0xff]
  %v662 = vld [vmem:[%s261 + $0x270] sm:$0xff]
  %v663 = vld [vmem:[%s261 + $0x278] sm:$0xff]
  %v664 = vld [vmem:[%s261 + $0x288] sm:$0xff]
  %v665 = vld [vmem:[%s261 + $0x290] sm:$0xff]
  %v666 = vld [vmem:[%s261 + $0x2a0] sm:$0xff]
  %v667 = vld [vmem:[%s261 + $0x2a8] sm:$0xff]
  %v668 = vld [vmem:[%s261 + $0x2b8] sm:$0xff]
  %v669 = vld [vmem:[%s261 + $0x2c0] sm:$0xff]
  %v670 = vld [vmem:[%s261 + $0x2d0] sm:$0xff]
  %v671 = vld [vmem:[%s261 + $0x2d8] sm:$0xff]
  %v672 = vld [vmem:[%s261 + $0x2e8] sm:$0xff]
  %v673 = vld [vmem:[%s261 + $0x2f0] sm:$0xff]
  %v674 = vld [vmem:[%s261 + $0x300] sm:$0xff]
  %v675 = vld [vmem:[%s261 + $0x308] sm:$0xff]
  %v676 = vld [vmem:[%s261 + $0x318] sm:$0xff]
  %v677 = vld [vmem:[%s261 + $0x320] sm:$0xff]
  %v678 = vpack.c.bf16 %v615, %v614
  %v679 = vpack.c.bf16 %v617, %v616
  %v680 = vpack.c.bf16 %v619, %v618
  %v681 = vpack.c.bf16 %v621, %v620
  %v682 = vpack.c.bf16 %v623, %v622
  %v683 = vpack.c.bf16 %v625, %v624
  %v684 = vpack.c.bf16 %v627, %v626
  %v685 = vpack.c.bf16 %v629, %v628
  %v686 = vpack.c.bf16 %v631, %v630
  %v687 = vpack.c.bf16 %v633, %v632
  %v688 = vpack.c.bf16 %v635, %v634
  %v689 = vpack.c.bf16 %v637, %v636
  %v690 = vpack.c.bf16 %v639, %v638
  %v691 = vpack.c.bf16 %v641, %v640
  %v692 = vpack.c.bf16 %v643, %v642
  %v693 = vpack.c.bf16 %v645, %v644
  %v694 = vpack.c.bf16 %v647, %v646
  %v695 = vpack.c.bf16 %v649, %v648
  %v696 = vpack.c.bf16 %v651, %v650
  %v697 = vpack.c.bf16 %v653, %v652
  %v698 = vpack.c.bf16 %v655, %v654
  %v699 = vpack.c.bf16 %v657, %v656
  %v700 = vpack.c.bf16 %v659, %v658
  %v701 = vpack.c.bf16 %v661, %v660
  %v702 = vpack.c.bf16 %v663, %v662
  %v703 = vpack.c.bf16 %v665, %v664
  %v704 = vpack.c.bf16 %v667, %v666
  %v705 = vpack.c.bf16 %v669, %v668
  %v706 = vpack.c.bf16 %v671, %v670
  %v707 = vpack.c.bf16 %v673, %v672
  %v708 = vpack.c.bf16 %v675, %v674
  %v709 = vpack.c.bf16 %v677, %v676
  %v710 = vld [vmem:[%s261 + $0x1] sm:$0xff]
  %v711 = vld [vmem:[%s261 + $0x9] sm:$0xff]
  %v712 = vld [vmem:[%s261 + $0x19] sm:$0xff]
  %v713 = vld [vmem:[%s261 + $0x21] sm:$0xff]
  %v714 = vld [vmem:[%s261 + $0x31] sm:$0xff]
  %v715 = vld [vmem:[%s261 + $0x39] sm:$0xff]
  %v716 = vld [vmem:[%s261 + $0x49] sm:$0xff]
  %v717 = vld [vmem:[%s261 + $0x51] sm:$0xff]
  %v718 = vld [vmem:[%s261 + $0x61] sm:$0xff]
  %v719 = vld [vmem:[%s261 + $0x69] sm:$0xff]
  %v720 = vld [vmem:[%s261 + $0x79] sm:$0xff]
  %v721 = vld [vmem:[%s261 + $0x81] sm:$0xff]
  %v722 = vld [vmem:[%s261 + $0x91] sm:$0xff]
  %v723 = vld [vmem:[%s261 + $0x99] sm:$0xff]
  %v724 = vld [vmem:[%s261 + $0xa9] sm:$0xff]
  %v725 = vld [vmem:[%s261 + $0xb1] sm:$0xff]
  %v726 = vld [vmem:[%s261 + $0xc1] sm:$0xff]
  %v727 = vld [vmem:[%s261 + $0xc9] sm:$0xff]
  %v728 = vld [vmem:[%s261 + $0xd9] sm:$0xff]
  %v729 = vld [vmem:[%s261 + $0xe1] sm:$0xff]
  %v730 = vld [vmem:[%s261 + $0xf1] sm:$0xff]
  %v731 = vld [vmem:[%s261 + $0xf9] sm:$0xff]
  %v732 = vld [vmem:[%s261 + $0x109] sm:$0xff]
  %v733 = vld [vmem:[%s261 + $0x111] sm:$0xff]
  %v734 = vld [vmem:[%s261 + $0x121] sm:$0xff]
  %v735 = vld [vmem:[%s261 + $0x129] sm:$0xff]
  %v736 = vld [vmem:[%s261 + $0x139] sm:$0xff]
  %v737 = vld [vmem:[%s261 + $0x141] sm:$0xff]
  %v738 = vld [vmem:[%s261 + $0x151] sm:$0xff]
  %v739 = vld [vmem:[%s261 + $0x159] sm:$0xff]
  %v740 = vld [vmem:[%s261 + $0x169] sm:$0xff]
  %v741 = vld [vmem:[%s261 + $0x171] sm:$0xff]
  %v742 = vld [vmem:[%s261 + $0x1b1] sm:$0xff]
  %v743 = vld [vmem:[%s261 + $0x1b9] sm:$0xff]
  %v744 = vld [vmem:[%s261 + $0x1c9] sm:$0xff]
  %v745 = vld [vmem:[%s261 + $0x1d1] sm:$0xff]
  %v746 = vld [vmem:[%s261 + $0x1e1] sm:$0xff]
  %v747 = vld [vmem:[%s261 + $0x1e9] sm:$0xff]
  %v748 = vld [vmem:[%s261 + $0x1f9] sm:$0xff]
  %v749 = vld [vmem:[%s261 + $0x201] sm:$0xff]
  %v750 = vld [vmem:[%s261 + $0x211] sm:$0xff]
  %v751 = vld [vmem:[%s261 + $0x219] sm:$0xff]
  %v752 = vld [vmem:[%s261 + $0x229] sm:$0xff]
  %v753 = vld [vmem:[%s261 + $0x231] sm:$0xff]
  %v754 = vld [vmem:[%s261 + $0x241] sm:$0xff]
  %v755 = vld [vmem:[%s261 + $0x249] sm:$0xff]
  %v756 = vld [vmem:[%s261 + $0x259] sm:$0xff]
  %v757 = vld [vmem:[%s261 + $0x261] sm:$0xff]
  %v758 = vld [vmem:[%s261 + $0x271] sm:$0xff]
  %v759 = vld [vmem:[%s261 + $0x279] sm:$0xff]
  %v760 = vld [vmem:[%s261 + $0x289] sm:$0xff]
  %v761 = vld [vmem:[%s261 + $0x291] sm:$0xff]
  %v762 = vld [vmem:[%s261 + $0x2a1] sm:$0xff]
  %v763 = vld [vmem:[%s261 + $0x2a9] sm:$0xff]
  %v764 = vld [vmem:[%s261 + $0x2b9] sm:$0xff]
  %v765 = vld [vmem:[%s261 + $0x2c1] sm:$0xff]
  %v766 = vld [vmem:[%s261 + $0x2d1] sm:$0xff]
  %v767 = vld [vmem:[%s261 + $0x2d9] sm:$0xff]
  %v768 = vld [vmem:[%s261 + $0x2e9] sm:$0xff]
  %v769 = vld [vmem:[%s261 + $0x2f1] sm:$0xff]
  %v770 = vld [vmem:[%s261 + $0x301] sm:$0xff]
  %v771 = vld [vmem:[%s261 + $0x309] sm:$0xff]
  %v772 = vld [vmem:[%s261 + $0x319] sm:$0xff]
  %v773 = vld [vmem:[%s261 + $0x321] sm:$0xff]
  %v774 = vpack.c.bf16 %v711, %v710
  %v775 = vpack.c.bf16 %v713, %v712
  %v776 = vpack.c.bf16 %v715, %v714
  %v777 = vpack.c.bf16 %v717, %v716
  %v778 = vpack.c.bf16 %v719, %v718
  %v779 = vpack.c.bf16 %v721, %v720
  %v780 = vpack.c.bf16 %v723, %v722
  %v781 = vpack.c.bf16 %v725, %v724
  %v782 = vpack.c.bf16 %v727, %v726
  %v783 = vpack.c.bf16 %v729, %v728
  %v784 = vpack.c.bf16 %v731, %v730
  %v785 = vpack.c.bf16 %v733, %v732
  %v786 = vpack.c.bf16 %v735, %v734
  %v787 = vpack.c.bf16 %v737, %v736
  %v788 = vpack.c.bf16 %v739, %v738
  %v789 = vpack.c.bf16 %v741, %v740
  %v790 = vpack.c.bf16 %v743, %v742
  %v791 = vpack.c.bf16 %v745, %v744
  %v792 = vpack.c.bf16 %v747, %v746
  %v793 = vpack.c.bf16 %v749, %v748
  %v794 = vpack.c.bf16 %v751, %v750
  %v795 = vpack.c.bf16 %v753, %v752
  %v796 = vpack.c.bf16 %v755, %v754
  %v797 = vpack.c.bf16 %v757, %v756
  %v798 = vpack.c.bf16 %v759, %v758
  %v799 = vpack.c.bf16 %v761, %v760
  %v800 = vpack.c.bf16 %v763, %v762
  %v801 = vpack.c.bf16 %v765, %v764
  %v802 = vpack.c.bf16 %v767, %v766
  %v803 = vpack.c.bf16 %v769, %v768
  %v804 = vpack.c.bf16 %v771, %v770
  %v805 = vpack.c.bf16 %v773, %v772
  %v806 = vld [vmem:[%s261 + $0x2] sm:$0xff]
  %v807 = vld [vmem:[%s261 + $0xa] sm:$0xff]
  %v808 = vld [vmem:[%s261 + $0x1a] sm:$0xff]
  %v809 = vld [vmem:[%s261 + $0x22] sm:$0xff]
  %v810 = vld [vmem:[%s261 + $0x32] sm:$0xff]
  %v811 = vld [vmem:[%s261 + $0x3a] sm:$0xff]
  %v812 = vld [vmem:[%s261 + $0x4a] sm:$0xff]
  %v813 = vld [vmem:[%s261 + $0x52] sm:$0xff]
  %v814 = vld [vmem:[%s261 + $0x62] sm:$0xff]
  %v815 = vld [vmem:[%s261 + $0x6a] sm:$0xff]
  %v816 = vld [vmem:[%s261 + $0x7a] sm:$0xff]
  %v817 = vld [vmem:[%s261 + $0x82] sm:$0xff]
  %v818 = vld [vmem:[%s261 + $0x92] sm:$0xff]
  %v819 = vld [vmem:[%s261 + $0x9a] sm:$0xff]
  %v820 = vld [vmem:[%s261 + $0xaa] sm:$0xff]
  %v821 = vld [vmem:[%s261 + $0xb2] sm:$0xff]
  %v822 = vld [vmem:[%s261 + $0xc2] sm:$0xff]
  %v823 = vld [vmem:[%s261 + $0xca] sm:$0xff]
  %v824 = vld [vmem:[%s261 + $0xda] sm:$0xff]
  %v825 = vld [vmem:[%s261 + $0xe2] sm:$0xff]
  %v826 = vld [vmem:[%s261 + $0xf2] sm:$0xff]
  %v827 = vld [vmem:[%s261 + $0xfa] sm:$0xff]
  %v828 = vld [vmem:[%s261 + $0x10a] sm:$0xff]
  %v829 = vld [vmem:[%s261 + $0x112] sm:$0xff]
  %v830 = vld [vmem:[%s261 + $0x122] sm:$0xff]
  %v831 = vld [vmem:[%s261 + $0x12a] sm:$0xff]
  %v832 = vld [vmem:[%s261 + $0x13a] sm:$0xff]
  %v833 = vld [vmem:[%s261 + $0x142] sm:$0xff]
  %v834 = vld [vmem:[%s261 + $0x152] sm:$0xff]
  %v835 = vld [vmem:[%s261 + $0x15a] sm:$0xff]
  %v836 = vld [vmem:[%s261 + $0x16a] sm:$0xff]
  %v837 = vld [vmem:[%s261 + $0x172] sm:$0xff]
  %v838 = vld [vmem:[%s261 + $0x1b2] sm:$0xff]
  %v839 = vld [vmem:[%s261 + $0x1ba] sm:$0xff]
  %v840 = vld [vmem:[%s261 + $0x1ca] sm:$0xff]
  %v841 = vld [vmem:[%s261 + $0x1d2] sm:$0xff]
  %v842 = vld [vmem:[%s261 + $0x1e2] sm:$0xff]
  %v843 = vld [vmem:[%s261 + $0x1ea] sm:$0xff]
  %v844 = vld [vmem:[%s261 + $0x1fa] sm:$0xff]
  %v845 = vld [vmem:[%s261 + $0x202] sm:$0xff]
  %v846 = vld [vmem:[%s261 + $0x212] sm:$0xff]
  %v847 = vld [vmem:[%s261 + $0x21a] sm:$0xff]
  %v848 = vld [vmem:[%s261 + $0x22a] sm:$0xff]
  %v849 = vld [vmem:[%s261 + $0x232] sm:$0xff]
  %v850 = vld [vmem:[%s261 + $0x242] sm:$0xff]
  %v851 = vld [vmem:[%s261 + $0x24a] sm:$0xff]
  %v852 = vld [vmem:[%s261 + $0x25a] sm:$0xff]
  %v853 = vld [vmem:[%s261 + $0x262] sm:$0xff]
  %v854 = vld [vmem:[%s261 + $0x272] sm:$0xff]
  %v855 = vld [vmem:[%s261 + $0x27a] sm:$0xff]
  %v856 = vld [vmem:[%s261 + $0x28a] sm:$0xff]
  %v857 = vld [vmem:[%s261 + $0x292] sm:$0xff]
  %v858 = vld [vmem:[%s261 + $0x2a2] sm:$0xff]
  %v859 = vld [vmem:[%s261 + $0x2aa] sm:$0xff]
  %v860 = vld [vmem:[%s261 + $0x2ba] sm:$0xff]
  %v861 = vld [vmem:[%s261 + $0x2c2] sm:$0xff]
  %v862 = vld [vmem:[%s261 + $0x2d2] sm:$0xff]
  %v863 = vld [vmem:[%s261 + $0x2da] sm:$0xff]
  %v864 = vld [vmem:[%s261 + $0x2ea] sm:$0xff]
  %v865 = vld [vmem:[%s261 + $0x2f2] sm:$0xff]
  %v866 = vld [vmem:[%s261 + $0x302] sm:$0xff]
  %v867 = vld [vmem:[%s261 + $0x30a] sm:$0xff]
  %v868 = vld [vmem:[%s261 + $0x31a] sm:$0xff]
  %v869 = vld [vmem:[%s261 + $0x322] sm:$0xff]
  %v870 = vpack.c.bf16 %v807, %v806
  %v871 = vpack.c.bf16 %v809, %v808
  %v872 = vpack.c.bf16 %v811, %v810
  %v873 = vpack.c.bf16 %v813, %v812
  %v874 = vpack.c.bf16 %v815, %v814
  %v875 = vpack.c.bf16 %v817, %v816
  %v876 = vpack.c.bf16 %v819, %v818
  %v877 = vpack.c.bf16 %v821, %v820
  %v878 = vpack.c.bf16 %v823, %v822
  %v879 = vpack.c.bf16 %v825, %v824
  %v880 = vpack.c.bf16 %v827, %v826
  %v881 = vpack.c.bf16 %v829, %v828
  %v882 = vpack.c.bf16 %v831, %v830
  %v883 = vpack.c.bf16 %v833, %v832
  %v884 = vpack.c.bf16 %v835, %v834
  %v885 = vpack.c.bf16 %v837, %v836
  %v886 = vpack.c.bf16 %v839, %v838
  %v887 = vpack.c.bf16 %v841, %v840
  %v888 = vpack.c.bf16 %v843, %v842
  %v889 = vpack.c.bf16 %v845, %v844
  %v890 = vpack.c.bf16 %v847, %v846
  %v891 = vpack.c.bf16 %v849, %v848
  %v892 = vpack.c.bf16 %v851, %v850
  %v893 = vpack.c.bf16 %v853, %v852
  %v894 = vpack.c.bf16 %v855, %v854
  %v895 = vpack.c.bf16 %v857, %v856
  %v896 = vpack.c.bf16 %v859, %v858
  %v897 = vpack.c.bf16 %v861, %v860
  %v898 = vpack.c.bf16 %v863, %v862
  %v899 = vpack.c.bf16 %v865, %v864
  %v900 = vpack.c.bf16 %v867, %v866
  %v901 = vpack.c.bf16 %v869, %v868
  %s902 = scalar_lea.vmem [#allocation2], 48
  %v903 = vld [vmem:[%s902] sm:$0xff]
  %v904 = vld [vmem:[%s902 + $0x8] sm:$0xff]
  %v905 = vld [vmem:[%s902 + $0x18] sm:$0xff]
  %v906 = vld [vmem:[%s902 + $0x20] sm:$0xff]
  %v907 = vld [vmem:[%s902 + $0x30] sm:$0xff]
  %v908 = vld [vmem:[%s902 + $0x38] sm:$0xff]
  %v909 = vld [vmem:[%s902 + $0x48] sm:$0xff]
  %v910 = vld [vmem:[%s902 + $0x50] sm:$0xff]
  %v911 = vld [vmem:[%s902 + $0x60] sm:$0xff]
  %v912 = vld [vmem:[%s902 + $0x68] sm:$0xff]
  %v913 = vld [vmem:[%s902 + $0x78] sm:$0xff]
  %v914 = vld [vmem:[%s902 + $0x80] sm:$0xff]
  %v915 = vld [vmem:[%s902 + $0x90] sm:$0xff]
  %v916 = vld [vmem:[%s902 + $0x98] sm:$0xff]
  %v917 = vld [vmem:[%s902 + $0xa8] sm:$0xff]
  %v918 = vld [vmem:[%s902 + $0xb0] sm:$0xff]
  %v919 = vld [vmem:[%s902 + $0xc0] sm:$0xff]
  %v920 = vld [vmem:[%s902 + $0xc8] sm:$0xff]
  %v921 = vld [vmem:[%s902 + $0xd8] sm:$0xff]
  %v922 = vld [vmem:[%s902 + $0xe0] sm:$0xff]
  %v923 = vld [vmem:[%s902 + $0xf0] sm:$0xff]
  %v924 = vld [vmem:[%s902 + $0xf8] sm:$0xff]
  %v925 = vld [vmem:[%s902 + $0x108] sm:$0xff]
  %v926 = vld [vmem:[%s902 + $0x110] sm:$0xff]
  %v927 = vld [vmem:[%s902 + $0x120] sm:$0xff]
  %v928 = vld [vmem:[%s902 + $0x128] sm:$0xff]
  %v929 = vld [vmem:[%s902 + $0x138] sm:$0xff]
  %v930 = vld [vmem:[%s902 + $0x140] sm:$0xff]
  %v931 = vld [vmem:[%s902 + $0x150] sm:$0xff]
  %v932 = vld [vmem:[%s902 + $0x158] sm:$0xff]
  %v933 = vld [vmem:[%s902 + $0x168] sm:$0xff]
  %v934 = vld [vmem:[%s902 + $0x170] sm:$0xff]
  %v935 = vld [vmem:[%s902 + $0x1b0] sm:$0xff]
  %v936 = vld [vmem:[%s902 + $0x1b8] sm:$0xff]
  %v937 = vld [vmem:[%s902 + $0x1c8] sm:$0xff]
  %v938 = vld [vmem:[%s902 + $0x1d0] sm:$0xff]
  %v939 = vld [vmem:[%s902 + $0x1e0] sm:$0xff]
  %v940 = vld [vmem:[%s902 + $0x1e8] sm:$0xff]
  %v941 = vld [vmem:[%s902 + $0x1f8] sm:$0xff]
  %v942 = vld [vmem:[%s902 + $0x200] sm:$0xff]
  %v943 = vld [vmem:[%s902 + $0x210] sm:$0xff]
  %v944 = vld [vmem:[%s902 + $0x218] sm:$0xff]
  %v945 = vld [vmem:[%s902 + $0x228] sm:$0xff]
  %v946 = vld [vmem:[%s902 + $0x230] sm:$0xff]
  %v947 = vld [vmem:[%s902 + $0x240] sm:$0xff]
  %v948 = vld [vmem:[%s902 + $0x248] sm:$0xff]
  %v949 = vld [vmem:[%s902 + $0x258] sm:$0xff]
  %v950 = vld [vmem:[%s902 + $0x260] sm:$0xff]
  %v951 = vld [vmem:[%s902 + $0x270] sm:$0xff]
  %v952 = vld [vmem:[%s902 + $0x278] sm:$0xff]
  %v953 = vld [vmem:[%s902 + $0x288] sm:$0xff]
  %v954 = vld [vmem:[%s902 + $0x290] sm:$0xff]
  %v955 = vld [vmem:[%s902 + $0x2a0] sm:$0xff]
  %v956 = vld [vmem:[%s902 + $0x2a8] sm:$0xff]
  %v957 = vld [vmem:[%s902 + $0x2b8] sm:$0xff]
  %v958 = vld [vmem:[%s902 + $0x2c0] sm:$0xff]
  %v959 = vld [vmem:[%s902 + $0x2d0] sm:$0xff]
  %v960 = vld [vmem:[%s902 + $0x2d8] sm:$0xff]
  %v961 = vld [vmem:[%s902 + $0x2e8] sm:$0xff]
  %v962 = vld [vmem:[%s902 + $0x2f0] sm:$0xff]
  %v963 = vld [vmem:[%s902 + $0x300] sm:$0xff]
  %v964 = vld [vmem:[%s902 + $0x308] sm:$0xff]
  %v965 = vld [vmem:[%s902 + $0x318] sm:$0xff]
  %v966 = vld [vmem:[%s902 + $0x320] sm:$0xff]
  %v967 = vpack.c.bf16 %v904, %v903
  %v968 = vpack.c.bf16 %v906, %v905
  %v969 = vpack.c.bf16 %v908, %v907
  %v970 = vpack.c.bf16 %v910, %v909
  %v971 = vpack.c.bf16 %v912, %v911
  %v972 = vpack.c.bf16 %v914, %v913
  %v973 = vpack.c.bf16 %v916, %v915
  %v974 = vpack.c.bf16 %v918, %v917
  %v975 = vpack.c.bf16 %v920, %v919
  %v976 = vpack.c.bf16 %v922, %v921
  %v977 = vpack.c.bf16 %v924, %v923
  %v978 = vpack.c.bf16 %v926, %v925
  %v979 = vpack.c.bf16 %v928, %v927
  %v980 = vpack.c.bf16 %v930, %v929
  %v981 = vpack.c.bf16 %v932, %v931
  %v982 = vpack.c.bf16 %v934, %v933
  %v983 = vpack.c.bf16 %v936, %v935
  %v984 = vpack.c.bf16 %v938, %v937
  %v985 = vpack.c.bf16 %v940, %v939
  %v986 = vpack.c.bf16 %v942, %v941
  %v987 = vpack.c.bf16 %v944, %v943
  %v988 = vpack.c.bf16 %v946, %v945
  %v989 = vpack.c.bf16 %v948, %v947
  %v990 = vpack.c.bf16 %v950, %v949
  %v991 = vpack.c.bf16 %v952, %v951
  %v992 = vpack.c.bf16 %v954, %v953
  %v993 = vpack.c.bf16 %v956, %v955
  %v994 = vpack.c.bf16 %v958, %v957
  %v995 = vpack.c.bf16 %v960, %v959
  %v996 = vpack.c.bf16 %v962, %v961
  %v997 = vpack.c.bf16 %v964, %v963
  %v998 = vpack.c.bf16 %v966, %v965
  %v999 = vld [vmem:[%s902 + $0x1] sm:$0xff]
  %v1000 = vld [vmem:[%s902 + $0x9] sm:$0xff]
  %v1001 = vld [vmem:[%s902 + $0x19] sm:$0xff]
  %v1002 = vld [vmem:[%s902 + $0x21] sm:$0xff]
  %v1003 = vld [vmem:[%s902 + $0x31] sm:$0xff]
  %v1004 = vld [vmem:[%s902 + $0x39] sm:$0xff]
  %v1005 = vld [vmem:[%s902 + $0x49] sm:$0xff]
  %v1006 = vld [vmem:[%s902 + $0x51] sm:$0xff]
  %v1007 = vld [vmem:[%s902 + $0x61] sm:$0xff]
  %v1008 = vld [vmem:[%s902 + $0x69] sm:$0xff]
  %v1009 = vld [vmem:[%s902 + $0x79] sm:$0xff]
  %v1010 = vld [vmem:[%s902 + $0x81] sm:$0xff]
  %v1011 = vld [vmem:[%s902 + $0x91] sm:$0xff]
  %v1012 = vld [vmem:[%s902 + $0x99] sm:$0xff]
  %v1013 = vld [vmem:[%s902 + $0xa9] sm:$0xff]
  %v1014 = vld [vmem:[%s902 + $0xb1] sm:$0xff]
  %v1015 = vld [vmem:[%s902 + $0xc1] sm:$0xff]
  %v1016 = vld [vmem:[%s902 + $0xc9] sm:$0xff]
  %v1017 = vld [vmem:[%s902 + $0xd9] sm:$0xff]
  %v1018 = vld [vmem:[%s902 + $0xe1] sm:$0xff]
  %v1019 = vld [vmem:[%s902 + $0xf1] sm:$0xff]
  %v1020 = vld [vmem:[%s902 + $0xf9] sm:$0xff]
  %v1021 = vld [vmem:[%s902 + $0x109] sm:$0xff]
  %v1022 = vld [vmem:[%s902 + $0x111] sm:$0xff]
  %v1023 = vld [vmem:[%s902 + $0x121] sm:$0xff]
  %v1024 = vld [vmem:[%s902 + $0x129] sm:$0xff]
  %v1025 = vld [vmem:[%s902 + $0x139] sm:$0xff]
  %v1026 = vld [vmem:[%s902 + $0x141] sm:$0xff]
  %v1027 = vld [vmem:[%s902 + $0x151] sm:$0xff]
  %v1028 = vld [vmem:[%s902 + $0x159] sm:$0xff]
  %v1029 = vld [vmem:[%s902 + $0x169] sm:$0xff]
  %v1030 = vld [vmem:[%s902 + $0x171] sm:$0xff]
  %v1031 = vld [vmem:[%s902 + $0x1b1] sm:$0xff]
  %v1032 = vld [vmem:[%s902 + $0x1b9] sm:$0xff]
  %v1033 = vld [vmem:[%s902 + $0x1c9] sm:$0xff]
  %v1034 = vld [vmem:[%s902 + $0x1d1] sm:$0xff]
  %v1035 = vld [vmem:[%s902 + $0x1e1] sm:$0xff]
  %v1036 = vld [vmem:[%s902 + $0x1e9] sm:$0xff]
  %v1037 = vld [vmem:[%s902 + $0x1f9] sm:$0xff]
  %v1038 = vld [vmem:[%s902 + $0x201] sm:$0xff]
  %v1039 = vld [vmem:[%s902 + $0x211] sm:$0xff]
  %v1040 = vld [vmem:[%s902 + $0x219] sm:$0xff]
  %v1041 = vld [vmem:[%s902 + $0x229] sm:$0xff]
  %v1042 = vld [vmem:[%s902 + $0x231] sm:$0xff]
  %v1043 = vld [vmem:[%s902 + $0x241] sm:$0xff]
  %v1044 = vld [vmem:[%s902 + $0x249] sm:$0xff]
  %v1045 = vld [vmem:[%s902 + $0x259] sm:$0xff]
  %v1046 = vld [vmem:[%s902 + $0x261] sm:$0xff]
  %v1047 = vld [vmem:[%s902 + $0x271] sm:$0xff]
  %v1048 = vld [vmem:[%s902 + $0x279] sm:$0xff]
  %v1049 = vld [vmem:[%s902 + $0x289] sm:$0xff]
  %v1050 = vld [vmem:[%s902 + $0x291] sm:$0xff]
  %v1051 = vld [vmem:[%s902 + $0x2a1] sm:$0xff]
  %v1052 = vld [vmem:[%s902 + $0x2a9] sm:$0xff]
  %v1053 = vld [vmem:[%s902 + $0x2b9] sm:$0xff]
  %v1054 = vld [vmem:[%s902 + $0x2c1] sm:$0xff]
  %v1055 = vld [vmem:[%s902 + $0x2d1] sm:$0xff]
  %v1056 = vld [vmem:[%s902 + $0x2d9] sm:$0xff]
  %v1057 = vld [vmem:[%s902 + $0x2e9] sm:$0xff]
  %v1058 = vld [vmem:[%s902 + $0x2f1] sm:$0xff]
  %v1059 = vld [vmem:[%s902 + $0x301] sm:$0xff]
  %v1060 = vld [vmem:[%s902 + $0x309] sm:$0xff]
  %v1061 = vld [vmem:[%s902 + $0x319] sm:$0xff]
  %v1062 = vld [vmem:[%s902 + $0x321] sm:$0xff]
  %v1063 = vpack.c.bf16 %v1000, %v999
  %v1064 = vpack.c.bf16 %v1002, %v1001
  %v1065 = vpack.c.bf16 %v1004, %v1003
  %v1066 = vpack.c.bf16 %v1006, %v1005
  %v1067 = vpack.c.bf16 %v1008, %v1007
  %v1068 = vpack.c.bf16 %v1010, %v1009
  %v1069 = vpack.c.bf16 %v1012, %v1011
  %v1070 = vpack.c.bf16 %v1014, %v1013
  %v1071 = vpack.c.bf16 %v1016, %v1015
  %v1072 = vpack.c.bf16 %v1018, %v1017
  %v1073 = vpack.c.bf16 %v1020, %v1019
  %v1074 = vpack.c.bf16 %v1022, %v1021
  %v1075 = vpack.c.bf16 %v1024, %v1023
  %v1076 = vpack.c.bf16 %v1026, %v1025
  %v1077 = vpack.c.bf16 %v1028, %v1027
  %v1078 = vpack.c.bf16 %v1030, %v1029
  %v1079 = vpack.c.bf16 %v1032, %v1031
  %v1080 = vpack.c.bf16 %v1034, %v1033
  %v1081 = vpack.c.bf16 %v1036, %v1035
  %v1082 = vpack.c.bf16 %v1038, %v1037
  %v1083 = vpack.c.bf16 %v1040, %v1039
  %v1084 = vpack.c.bf16 %v1042, %v1041
  %v1085 = vpack.c.bf16 %v1044, %v1043
  %v1086 = vpack.c.bf16 %v1046, %v1045
  %v1087 = vpack.c.bf16 %v1048, %v1047
  %v1088 = vpack.c.bf16 %v1050, %v1049
  %v1089 = vpack.c.bf16 %v1052, %v1051
  %v1090 = vpack.c.bf16 %v1054, %v1053
  %v1091 = vpack.c.bf16 %v1056, %v1055
  %v1092 = vpack.c.bf16 %v1058, %v1057
  %v1093 = vpack.c.bf16 %v1060, %v1059
  %v1094 = vpack.c.bf16 %v1062, %v1061
  %v1095 = vld [vmem:[%s902 + $0x2] sm:$0xff]
  %v1096 = vld [vmem:[%s902 + $0xa] sm:$0xff]
  %v1097 = vld [vmem:[%s902 + $0x1a] sm:$0xff]
  %v1098 = vld [vmem:[%s902 + $0x22] sm:$0xff]
  %v1099 = vld [vmem:[%s902 + $0x32] sm:$0xff]
  %v1100 = vld [vmem:[%s902 + $0x3a] sm:$0xff]
  %v1101 = vld [vmem:[%s902 + $0x4a] sm:$0xff]
  %v1102 = vld [vmem:[%s902 + $0x52] sm:$0xff]
  %v1103 = vld [vmem:[%s902 + $0x62] sm:$0xff]
  %v1104 = vld [vmem:[%s902 + $0x6a] sm:$0xff]
  %v1105 = vld [vmem:[%s902 + $0x7a] sm:$0xff]
  %v1106 = vld [vmem:[%s902 + $0x82] sm:$0xff]
  %v1107 = vld [vmem:[%s902 + $0x92] sm:$0xff]
  %v1108 = vld [vmem:[%s902 + $0x9a] sm:$0xff]
  %v1109 = vld [vmem:[%s902 + $0xaa] sm:$0xff]
  %v1110 = vld [vmem:[%s902 + $0xb2] sm:$0xff]
  %v1111 = vld [vmem:[%s902 + $0xc2] sm:$0xff]
  %v1112 = vld [vmem:[%s902 + $0xca] sm:$0xff]
  %v1113 = vld [vmem:[%s902 + $0xda] sm:$0xff]
  %v1114 = vld [vmem:[%s902 + $0xe2] sm:$0xff]
  %v1115 = vld [vmem:[%s902 + $0xf2] sm:$0xff]
  %v1116 = vld [vmem:[%s902 + $0xfa] sm:$0xff]
  %v1117 = vld [vmem:[%s902 + $0x10a] sm:$0xff]
  %v1118 = vld [vmem:[%s902 + $0x112] sm:$0xff]
  %v1119 = vld [vmem:[%s902 + $0x122] sm:$0xff]
  %v1120 = vld [vmem:[%s902 + $0x12a] sm:$0xff]
  %v1121 = vld [vmem:[%s902 + $0x13a] sm:$0xff]
  %v1122 = vld [vmem:[%s902 + $0x142] sm:$0xff]
  %v1123 = vld [vmem:[%s902 + $0x152] sm:$0xff]
  %v1124 = vld [vmem:[%s902 + $0x15a] sm:$0xff]
  %v1125 = vld [vmem:[%s902 + $0x16a] sm:$0xff]
  %v1126 = vld [vmem:[%s902 + $0x172] sm:$0xff]
  %v1127 = vld [vmem:[%s902 + $0x1b2] sm:$0xff]
  %v1128 = vld [vmem:[%s902 + $0x1ba] sm:$0xff]
  %v1129 = vld [vmem:[%s902 + $0x1ca] sm:$0xff]
  %v1130 = vld [vmem:[%s902 + $0x1d2] sm:$0xff]
  %v1131 = vld [vmem:[%s902 + $0x1e2] sm:$0xff]
  %v1132 = vld [vmem:[%s902 + $0x1ea] sm:$0xff]
  %v1133 = vld [vmem:[%s902 + $0x1fa] sm:$0xff]
  %v1134 = vld [vmem:[%s902 + $0x202] sm:$0xff]
  %v1135 = vld [vmem:[%s902 + $0x212] sm:$0xff]
  %v1136 = vld [vmem:[%s902 + $0x21a] sm:$0xff]
  %v1137 = vld [vmem:[%s902 + $0x22a] sm:$0xff]
  %v1138 = vld [vmem:[%s902 + $0x232] sm:$0xff]
  %v1139 = vld [vmem:[%s902 + $0x242] sm:$0xff]
  %v1140 = vld [vmem:[%s902 + $0x24a] sm:$0xff]
  %v1141 = vld [vmem:[%s902 + $0x25a] sm:$0xff]
  %v1142 = vld [vmem:[%s902 + $0x262] sm:$0xff]
  %v1143 = vld [vmem:[%s902 + $0x272] sm:$0xff]
  %v1144 = vld [vmem:[%s902 + $0x27a] sm:$0xff]
  %v1145 = vld [vmem:[%s902 + $0x28a] sm:$0xff]
  %v1146 = vld [vmem:[%s902 + $0x292] sm:$0xff]
  %v1147 = vld [vmem:[%s902 + $0x2a2] sm:$0xff]
  %v1148 = vld [vmem:[%s902 + $0x2aa] sm:$0xff]
  %v1149 = vld [vmem:[%s902 + $0x2ba] sm:$0xff]
  %v1150 = vld [vmem:[%s902 + $0x2c2] sm:$0xff]
  %v1151 = vld [vmem:[%s902 + $0x2d2] sm:$0xff]
  %v1152 = vld [vmem:[%s902 + $0x2da] sm:$0xff]
  %v1153 = vld [vmem:[%s902 + $0x2ea] sm:$0xff]
  %v1154 = vld [vmem:[%s902 + $0x2f2] sm:$0xff]
  %v1155 = vld [vmem:[%s902 + $0x302] sm:$0xff]
  %v1156 = vld [vmem:[%s902 + $0x30a] sm:$0xff]
  %v1157 = vld [vmem:[%s902 + $0x31a] sm:$0xff]
  %v1158 = vld [vmem:[%s902 + $0x322] sm:$0xff]
  %v1159 = vpack.c.bf16 %v1096, %v1095
  %v1160 = vpack.c.bf16 %v1098, %v1097
  %v1161 = vpack.c.bf16 %v1100, %v1099
  %v1162 = vpack.c.bf16 %v1102, %v1101
  %v1163 = vpack.c.bf16 %v1104, %v1103
  %v1164 = vpack.c.bf16 %v1106, %v1105
  %v1165 = vpack.c.bf16 %v1108, %v1107
  %v1166 = vpack.c.bf16 %v1110, %v1109
  %v1167 = vpack.c.bf16 %v1112, %v1111
  %v1168 = vpack.c.bf16 %v1114, %v1113
  %v1169 = vpack.c.bf16 %v1116, %v1115
  %v1170 = vpack.c.bf16 %v1118, %v1117
  %v1171 = vpack.c.bf16 %v1120, %v1119
  %v1172 = vpack.c.bf16 %v1122, %v1121
  %v1173 = vpack.c.bf16 %v1124, %v1123
  %v1174 = vpack.c.bf16 %v1126, %v1125
  %v1175 = vpack.c.bf16 %v1128, %v1127
  %v1176 = vpack.c.bf16 %v1130, %v1129
  %v1177 = vpack.c.bf16 %v1132, %v1131
  %v1178 = vpack.c.bf16 %v1134, %v1133
  %v1179 = vpack.c.bf16 %v1136, %v1135
  %v1180 = vpack.c.bf16 %v1138, %v1137
  %v1181 = vpack.c.bf16 %v1140, %v1139
  %v1182 = vpack.c.bf16 %v1142, %v1141
  %v1183 = vpack.c.bf16 %v1144, %v1143
  %v1184 = vpack.c.bf16 %v1146, %v1145
  %v1185 = vpack.c.bf16 %v1148, %v1147
  %v1186 = vpack.c.bf16 %v1150, %v1149
  %v1187 = vpack.c.bf16 %v1152, %v1151
  %v1188 = vpack.c.bf16 %v1154, %v1153
  %v1189 = vpack.c.bf16 %v1156, %v1155
  %v1190 = vpack.c.bf16 %v1158, %v1157
  %1223 = vrot.lane.b32.xlu0 %v486, 4
  %v1224 = vpop.permute.xlu0 %1223
  %1225 = vrot.lane.b32.xlu0 %v487, 4
  %v1226 = vpop.permute.xlu0 %1225
  %1227 = vrot.lane.b32.xlu0 %v488, 4
  %v1228 = vpop.permute.xlu0 %1227
  %1229 = vrot.lane.b32.xlu0 %v489, 4
  %v1230 = vpop.permute.xlu0 %1229
  %1231 = vrot.lane.b32.xlu0 %v490, 4
  %v1232 = vpop.permute.xlu0 %1231
  %1233 = vrot.lane.b32.xlu0 %v491, 4
  %v1234 = vpop.permute.xlu0 %1233
  %1235 = vrot.lane.b32.xlu0 %v492, 4
  %v1236 = vpop.permute.xlu0 %1235
  %1237 = vrot.lane.b32.xlu0 %v493, 4
  %v1238 = vpop.permute.xlu0 %1237
  %1239 = vrot.lane.b32.xlu0 %v494, 4
  %v1240 = vpop.permute.xlu0 %1239
  %1241 = vrot.lane.b32.xlu0 %v495, 4
  %v1242 = vpop.permute.xlu0 %1241
  %1243 = vrot.lane.b32.xlu0 %v496, 4
  %v1244 = vpop.permute.xlu0 %1243
  %1245 = vrot.lane.b32.xlu0 %v497, 4
  %v1246 = vpop.permute.xlu0 %1245
  %1247 = vrot.lane.b32.xlu0 %v498, 4
  %v1248 = vpop.permute.xlu0 %1247
  %1249 = vrot.lane.b32.xlu0 %v499, 4
  %v1250 = vpop.permute.xlu0 %1249
  %1251 = vrot.lane.b32.xlu0 %v500, 4
  %v1252 = vpop.permute.xlu0 %1251
  %1253 = vrot.lane.b32.xlu0 %v501, 4
  %v1254 = vpop.permute.xlu0 %1253
  %1255 = vrot.lane.b32.xlu0 %v502, 4
  %v1256 = vpop.permute.xlu0 %1255
  %1257 = vrot.lane.b32.xlu0 %v503, 4
  %v1258 = vpop.permute.xlu0 %1257
  %1259 = vrot.lane.b32.xlu0 %v504, 4
  %v1260 = vpop.permute.xlu0 %1259
  %1261 = vrot.lane.b32.xlu0 %v505, 4
  %v1262 = vpop.permute.xlu0 %1261
  %1263 = vrot.lane.b32.xlu0 %v506, 4
  %v1264 = vpop.permute.xlu0 %1263
  %1265 = vrot.lane.b32.xlu0 %v507, 4
  %v1266 = vpop.permute.xlu0 %1265
  %1267 = vrot.lane.b32.xlu0 %v508, 4
  %v1268 = vpop.permute.xlu0 %1267
  %1269 = vrot.lane.b32.xlu0 %v509, 4
  %v1270 = vpop.permute.xlu0 %1269
  %1271 = vrot.lane.b32.xlu0 %v510, 4
  %v1272 = vpop.permute.xlu0 %1271
  %1273 = vrot.lane.b32.xlu0 %v511, 4
  %v1274 = vpop.permute.xlu0 %1273
  %1275 = vrot.lane.b32.xlu0 %v512, 4
  %v1276 = vpop.permute.xlu0 %1275
  %1277 = vrot.lane.b32.xlu0 %v513, 4
  %v1278 = vpop.permute.xlu0 %1277
  %1279 = vrot.lane.b32.xlu0 %v514, 4
  %v1280 = vpop.permute.xlu0 %1279
  %1281 = vrot.lane.b32.xlu0 %v515, 4
  %v1282 = vpop.permute.xlu0 %1281
  %1283 = vrot.lane.b32.xlu0 %v516, 4
  %v1284 = vpop.permute.xlu0 %1283
  %1285 = vrot.lane.b32.xlu0 %v517, 4
  %v1286 = vpop.permute.xlu0 %1285
  %1319 = vrot.lane.b32.xlu0 %v582, 8
  %v1320 = vpop.permute.xlu0 %1319
  %1321 = vrot.lane.b32.xlu0 %v583, 8
  %v1322 = vpop.permute.xlu0 %1321
  %1323 = vrot.lane.b32.xlu0 %v584, 8
  %v1324 = vpop.permute.xlu0 %1323
  %1325 = vrot.lane.b32.xlu0 %v585, 8
  %v1326 = vpop.permute.xlu0 %1325
  %1327 = vrot.lane.b32.xlu0 %v586, 8
  %v1328 = vpop.permute.xlu0 %1327
  %1329 = vrot.lane.b32.xlu0 %v587, 8
  %v1330 = vpop.permute.xlu0 %1329
  %1331 = vrot.lane.b32.xlu0 %v588, 8
  %v1332 = vpop.permute.xlu0 %1331
  %1333 = vrot.lane.b32.xlu0 %v589, 8
  %v1334 = vpop.permute.xlu0 %1333
  %1335 = vrot.lane.b32.xlu0 %v590, 8
  %v1336 = vpop.permute.xlu0 %1335
  %1337 = vrot.lane.b32.xlu0 %v591, 8
  %v1338 = vpop.permute.xlu0 %1337
  %1339 = vrot.lane.b32.xlu0 %v592, 8
  %v1340 = vpop.permute.xlu0 %1339
  %1341 = vrot.lane.b32.xlu0 %v593, 8
  %v1342 = vpop.permute.xlu0 %1341
  %1343 = vrot.lane.b32.xlu0 %v594, 8
  %v1344 = vpop.permute.xlu0 %1343
  %1345 = vrot.lane.b32.xlu0 %v595, 8
  %v1346 = vpop.permute.xlu0 %1345
  %1347 = vrot.lane.b32.xlu0 %v596, 8
  %v1348 = vpop.permute.xlu0 %1347
  %1349 = vrot.lane.b32.xlu0 %v597, 8
  %v1350 = vpop.permute.xlu0 %1349
  %1351 = vrot.lane.b32.xlu0 %v598, 8
  %v1352 = vpop.permute.xlu0 %1351
  %1353 = vrot.lane.b32.xlu0 %v599, 8
  %v1354 = vpop.permute.xlu0 %1353
  %1355 = vrot.lane.b32.xlu0 %v600, 8
  %v1356 = vpop.permute.xlu0 %1355
  %1357 = vrot.lane.b32.xlu0 %v601, 8
  %v1358 = vpop.permute.xlu0 %1357
  %1359 = vrot.lane.b32.xlu0 %v602, 8
  %v1360 = vpop.permute.xlu0 %1359
  %1361 = vrot.lane.b32.xlu0 %v603, 8
  %v1362 = vpop.permute.xlu0 %1361
  %1363 = vrot.lane.b32.xlu0 %v604, 8
  %v1364 = vpop.permute.xlu0 %1363
  %1365 = vrot.lane.b32.xlu0 %v605, 8
  %v1366 = vpop.permute.xlu0 %1365
  %1367 = vrot.lane.b32.xlu0 %v606, 8
  %v1368 = vpop.permute.xlu0 %1367
  %1369 = vrot.lane.b32.xlu0 %v607, 8
  %v1370 = vpop.permute.xlu0 %1369
  %1371 = vrot.lane.b32.xlu0 %v608, 8
  %v1372 = vpop.permute.xlu0 %1371
  %1373 = vrot.lane.b32.xlu0 %v609, 8
  %v1374 = vpop.permute.xlu0 %1373
  %1375 = vrot.lane.b32.xlu0 %v610, 8
  %v1376 = vpop.permute.xlu0 %1375
  %1377 = vrot.lane.b32.xlu0 %v611, 8
  %v1378 = vpop.permute.xlu0 %1377
  %1379 = vrot.lane.b32.xlu0 %v612, 8
  %v1380 = vpop.permute.xlu0 %1379
  %1381 = vrot.lane.b32.xlu0 %v613, 8
  %v1382 = vpop.permute.xlu0 %1381
  %1415 = vrot.lane.b32.xlu0 %v678, 12
  %v1416 = vpop.permute.xlu0 %1415
  %1417 = vrot.lane.b32.xlu0 %v679, 12
  %v1418 = vpop.permute.xlu0 %1417
  %1419 = vrot.lane.b32.xlu0 %v680, 12
  %v1420 = vpop.permute.xlu0 %1419
  %1421 = vrot.lane.b32.xlu0 %v681, 12
  %v1422 = vpop.permute.xlu0 %1421
  %1423 = vrot.lane.b32.xlu0 %v682, 12
  %v1424 = vpop.permute.xlu0 %1423
  %1425 = vrot.lane.b32.xlu0 %v683, 12
  %v1426 = vpop.permute.xlu0 %1425
  %1427 = vrot.lane.b32.xlu0 %v684, 12
  %v1428 = vpop.permute.xlu0 %1427
  %1429 = vrot.lane.b32.xlu0 %v685, 12
  %v1430 = vpop.permute.xlu0 %1429
  %1431 = vrot.lane.b32.xlu0 %v686, 12
  %v1432 = vpop.permute.xlu0 %1431
  %1433 = vrot.lane.b32.xlu0 %v687, 12
  %v1434 = vpop.permute.xlu0 %1433
  %1435 = vrot.lane.b32.xlu0 %v688, 12
  %v1436 = vpop.permute.xlu0 %1435
  %1437 = vrot.lane.b32.xlu0 %v689, 12
  %v1438 = vpop.permute.xlu0 %1437
  %1439 = vrot.lane.b32.xlu0 %v690, 12
  %v1440 = vpop.permute.xlu0 %1439
  %1441 = vrot.lane.b32.xlu0 %v691, 12
  %v1442 = vpop.permute.xlu0 %1441
  %1443 = vrot.lane.b32.xlu0 %v692, 12
  %v1444 = vpop.permute.xlu0 %1443
  %1445 = vrot.lane.b32.xlu0 %v693, 12
  %v1446 = vpop.permute.xlu0 %1445
  %1447 = vrot.lane.b32.xlu0 %v694, 12
  %v1448 = vpop.permute.xlu0 %1447
  %1449 = vrot.lane.b32.xlu0 %v695, 12
  %v1450 = vpop.permute.xlu0 %1449
  %1451 = vrot.lane.b32.xlu0 %v696, 12
  %v1452 = vpop.permute.xlu0 %1451
  %1453 = vrot.lane.b32.xlu0 %v697, 12
  %v1454 = vpop.permute.xlu0 %1453
  %1455 = vrot.lane.b32.xlu0 %v698, 12
  %v1456 = vpop.permute.xlu0 %1455
  %1457 = vrot.lane.b32.xlu0 %v699, 12
  %v1458 = vpop.permute.xlu0 %1457
  %1459 = vrot.lane.b32.xlu0 %v700, 12
  %v1460 = vpop.permute.xlu0 %1459
  %1461 = vrot.lane.b32.xlu0 %v701, 12
  %v1462 = vpop.permute.xlu0 %1461
  %1463 = vrot.lane.b32.xlu0 %v702, 12
  %v1464 = vpop.permute.xlu0 %1463
  %1465 = vrot.lane.b32.xlu0 %v703, 12
  %v1466 = vpop.permute.xlu0 %1465
  %1467 = vrot.lane.b32.xlu0 %v704, 12
  %v1468 = vpop.permute.xlu0 %1467
  %1469 = vrot.lane.b32.xlu0 %v705, 12
  %v1470 = vpop.permute.xlu0 %1469
  %1471 = vrot.lane.b32.xlu0 %v706, 12
  %v1472 = vpop.permute.xlu0 %1471
  %1473 = vrot.lane.b32.xlu0 %v707, 12
  %v1474 = vpop.permute.xlu0 %1473
  %1475 = vrot.lane.b32.xlu0 %v708, 12
  %v1476 = vpop.permute.xlu0 %1475
  %1477 = vrot.lane.b32.xlu0 %v709, 12
  %v1478 = vpop.permute.xlu0 %1477
  %1511 = vrot.lane.b32.xlu0 %v774, 16
  %v1512 = vpop.permute.xlu0 %1511
  %1513 = vrot.lane.b32.xlu0 %v775, 16
  %v1514 = vpop.permute.xlu0 %1513
  %1515 = vrot.lane.b32.xlu0 %v776, 16
  %v1516 = vpop.permute.xlu0 %1515
  %1517 = vrot.lane.b32.xlu0 %v777, 16
  %v1518 = vpop.permute.xlu0 %1517
  %1519 = vrot.lane.b32.xlu0 %v778, 16
  %v1520 = vpop.permute.xlu0 %1519
  %1521 = vrot.lane.b32.xlu0 %v779, 16
  %v1522 = vpop.permute.xlu0 %1521
  %1523 = vrot.lane.b32.xlu0 %v780, 16
  %v1524 = vpop.permute.xlu0 %1523
  %1525 = vrot.lane.b32.xlu0 %v781, 16
  %v1526 = vpop.permute.xlu0 %1525
  %1527 = vrot.lane.b32.xlu0 %v782, 16
  %v1528 = vpop.permute.xlu0 %1527
  %1529 = vrot.lane.b32.xlu0 %v783, 16
  %v1530 = vpop.permute.xlu0 %1529
  %1531 = vrot.lane.b32.xlu0 %v784, 16
  %v1532 = vpop.permute.xlu0 %1531
  %1533 = vrot.lane.b32.xlu0 %v785, 16
  %v1534 = vpop.permute.xlu0 %1533
  %1535 = vrot.lane.b32.xlu0 %v786, 16
  %v1536 = vpop.permute.xlu0 %1535
  %1537 = vrot.lane.b32.xlu0 %v787, 16
  %v1538 = vpop.permute.xlu0 %1537
  %1539 = vrot.lane.b32.xlu0 %v788, 16
  %v1540 = vpop.permute.xlu0 %1539
  %1541 = vrot.lane.b32.xlu0 %v789, 16
  %v1542 = vpop.permute.xlu0 %1541
  %1543 = vrot.lane.b32.xlu0 %v790, 16
  %v1544 = vpop.permute.xlu0 %1543
  %1545 = vrot.lane.b32.xlu0 %v791, 16
  %v1546 = vpop.permute.xlu0 %1545
  %1547 = vrot.lane.b32.xlu0 %v792, 16
  %v1548 = vpop.permute.xlu0 %1547
  %1549 = vrot.lane.b32.xlu0 %v793, 16
  %v1550 = vpop.permute.xlu0 %1549
  %1551 = vrot.lane.b32.xlu0 %v794, 16
  %v1552 = vpop.permute.xlu0 %1551
  %1553 = vrot.lane.b32.xlu0 %v795, 16
  %v1554 = vpop.permute.xlu0 %1553
  %1555 = vrot.lane.b32.xlu0 %v796, 16
  %v1556 = vpop.permute.xlu0 %1555
  %1557 = vrot.lane.b32.xlu0 %v797, 16
  %v1558 = vpop.permute.xlu0 %1557
  %1559 = vrot.lane.b32.xlu0 %v798, 16
  %v1560 = vpop.permute.xlu0 %1559
  %1561 = vrot.lane.b32.xlu0 %v799, 16
  %v1562 = vpop.permute.xlu0 %1561
  %1563 = vrot.lane.b32.xlu0 %v800, 16
  %v1564 = vpop.permute.xlu0 %1563
  %1565 = vrot.lane.b32.xlu0 %v801, 16
  %v1566 = vpop.permute.xlu0 %1565
  %1567 = vrot.lane.b32.xlu0 %v802, 16
  %v1568 = vpop.permute.xlu0 %1567
  %1569 = vrot.lane.b32.xlu0 %v803, 16
  %v1570 = vpop.permute.xlu0 %1569
  %1571 = vrot.lane.b32.xlu0 %v804, 16
  %v1572 = vpop.permute.xlu0 %1571
  %1573 = vrot.lane.b32.xlu0 %v805, 16
  %v1574 = vpop.permute.xlu0 %1573
  %1607 = vrot.lane.b32.xlu0 %v870, 20
  %v1608 = vpop.permute.xlu0 %1607
  %1609 = vrot.lane.b32.xlu0 %v871, 20
  %v1610 = vpop.permute.xlu0 %1609
  %1611 = vrot.lane.b32.xlu0 %v872, 20
  %v1612 = vpop.permute.xlu0 %1611
  %1613 = vrot.lane.b32.xlu0 %v873, 20
  %v1614 = vpop.permute.xlu0 %1613
  %1615 = vrot.lane.b32.xlu0 %v874, 20
  %v1616 = vpop.permute.xlu0 %1615
  %1617 = vrot.lane.b32.xlu0 %v875, 20
  %v1618 = vpop.permute.xlu0 %1617
  %1619 = vrot.lane.b32.xlu0 %v876, 20
  %v1620 = vpop.permute.xlu0 %1619
  %1621 = vrot.lane.b32.xlu0 %v877, 20
  %v1622 = vpop.permute.xlu0 %1621
  %1623 = vrot.lane.b32.xlu0 %v878, 20
  %v1624 = vpop.permute.xlu0 %1623
  %1625 = vrot.lane.b32.xlu0 %v879, 20
  %v1626 = vpop.permute.xlu0 %1625
  %1627 = vrot.lane.b32.xlu0 %v880, 20
  %v1628 = vpop.permute.xlu0 %1627
  %1629 = vrot.lane.b32.xlu0 %v881, 20
  %v1630 = vpop.permute.xlu0 %1629
  %1631 = vrot.lane.b32.xlu0 %v882, 20
  %v1632 = vpop.permute.xlu0 %1631
  %1633 = vrot.lane.b32.xlu0 %v883, 20
  %v1634 = vpop.permute.xlu0 %1633
  %1635 = vrot.lane.b32.xlu0 %v884, 20
  %v1636 = vpop.permute.xlu0 %1635
  %1637 = vrot.lane.b32.xlu0 %v885, 20
  %v1638 = vpop.permute.xlu0 %1637
  %1639 = vrot.lane.b32.xlu0 %v886, 20
  %v1640 = vpop.permute.xlu0 %1639
  %1641 = vrot.lane.b32.xlu0 %v887, 20
  %v1642 = vpop.permute.xlu0 %1641
  %1643 = vrot.lane.b32.xlu0 %v888, 20
  %v1644 = vpop.permute.xlu0 %1643
  %1645 = vrot.lane.b32.xlu0 %v889, 20
  %v1646 = vpop.permute.xlu0 %1645
  %1647 = vrot.lane.b32.xlu0 %v890, 20
  %v1648 = vpop.permute.xlu0 %1647
  %1649 = vrot.lane.b32.xlu0 %v891, 20
  %v1650 = vpop.permute.xlu0 %1649
  %1651 = vrot.lane.b32.xlu0 %v892, 20
  %v1652 = vpop.permute.xlu0 %1651
  %1653 = vrot.lane.b32.xlu0 %v893, 20
  %v1654 = vpop.permute.xlu0 %1653
  %1655 = vrot.lane.b32.xlu0 %v894, 20
  %v1656 = vpop.permute.xlu0 %1655
  %1657 = vrot.lane.b32.xlu0 %v895, 20
  %v1658 = vpop.permute.xlu0 %1657
  %1659 = vrot.lane.b32.xlu0 %v896, 20
  %v1660 = vpop.permute.xlu0 %1659
  %1661 = vrot.lane.b32.xlu0 %v897, 20
  %v1662 = vpop.permute.xlu0 %1661
  %1663 = vrot.lane.b32.xlu0 %v898, 20
  %v1664 = vpop.permute.xlu0 %1663
  %1665 = vrot.lane.b32.xlu0 %v899, 20
  %v1666 = vpop.permute.xlu0 %1665
  %1667 = vrot.lane.b32.xlu0 %v900, 20
  %v1668 = vpop.permute.xlu0 %1667
  %1669 = vrot.lane.b32.xlu0 %v901, 20
  %v1670 = vpop.permute.xlu0 %1669
  %1703 = vrot.lane.b32.xlu0 %v967, 24
  %v1704 = vpop.permute.xlu0 %1703
  %1705 = vrot.lane.b32.xlu0 %v968, 24
  %v1706 = vpop.permute.xlu0 %1705
  %1707 = vrot.lane.b32.xlu0 %v969, 24
  %v1708 = vpop.permute.xlu0 %1707
  %1709 = vrot.lane.b32.xlu0 %v970, 24
  %v1710 = vpop.permute.xlu0 %1709
  %1711 = vrot.lane.b32.xlu0 %v971, 24
  %v1712 = vpop.permute.xlu0 %1711
  %1713 = vrot.lane.b32.xlu0 %v972, 24
  %v1714 = vpop.permute.xlu0 %1713
  %1715 = vrot.lane.b32.xlu0 %v973, 24
  %v1716 = vpop.permute.xlu0 %1715
  %1717 = vrot.lane.b32.xlu0 %v974, 24
  %v1718 = vpop.permute.xlu0 %1717
  %1719 = vrot.lane.b32.xlu0 %v975, 24
  %v1720 = vpop.permute.xlu0 %1719
  %1721 = vrot.lane.b32.xlu0 %v976, 24
  %v1722 = vpop.permute.xlu0 %1721
  %1723 = vrot.lane.b32.xlu0 %v977, 24
  %v1724 = vpop.permute.xlu0 %1723
  %1725 = vrot.lane.b32.xlu0 %v978, 24
  %v1726 = vpop.permute.xlu0 %1725
  %1727 = vrot.lane.b32.xlu0 %v979, 24
  %v1728 = vpop.permute.xlu0 %1727
  %1729 = vrot.lane.b32.xlu0 %v980, 24
  %v1730 = vpop.permute.xlu0 %1729
  %1731 = vrot.lane.b32.xlu0 %v981, 24
  %v1732 = vpop.permute.xlu0 %1731
  %1733 = vrot.lane.b32.xlu0 %v982, 24
  %v1734 = vpop.permute.xlu0 %1733
  %1735 = vrot.lane.b32.xlu0 %v983, 24
  %v1736 = vpop.permute.xlu0 %1735
  %1737 = vrot.lane.b32.xlu0 %v984, 24
  %v1738 = vpop.permute.xlu0 %1737
  %1739 = vrot.lane.b32.xlu0 %v985, 24
  %v1740 = vpop.permute.xlu0 %1739
  %1741 = vrot.lane.b32.xlu0 %v986, 24
  %v1742 = vpop.permute.xlu0 %1741
  %1743 = vrot.lane.b32.xlu0 %v987, 24
  %v1744 = vpop.permute.xlu0 %1743
  %1745 = vrot.lane.b32.xlu0 %v988, 24
  %v1746 = vpop.permute.xlu0 %1745
  %1747 = vrot.lane.b32.xlu0 %v989, 24
  %v1748 = vpop.permute.xlu0 %1747
  %1749 = vrot.lane.b32.xlu0 %v990, 24
  %v1750 = vpop.permute.xlu0 %1749
  %1751 = vrot.lane.b32.xlu0 %v991, 24
  %v1752 = vpop.permute.xlu0 %1751
  %1753 = vrot.lane.b32.xlu0 %v992, 24
  %v1754 = vpop.permute.xlu0 %1753
  %1755 = vrot.lane.b32.xlu0 %v993, 24
  %v1756 = vpop.permute.xlu0 %1755
  %1757 = vrot.lane.b32.xlu0 %v994, 24
  %v1758 = vpop.permute.xlu0 %1757
  %1759 = vrot.lane.b32.xlu0 %v995, 24
  %v1760 = vpop.permute.xlu0 %1759
  %1761 = vrot.lane.b32.xlu0 %v996, 24
  %v1762 = vpop.permute.xlu0 %1761
  %1763 = vrot.lane.b32.xlu0 %v997, 24
  %v1764 = vpop.permute.xlu0 %1763
  %1765 = vrot.lane.b32.xlu0 %v998, 24
  %v1766 = vpop.permute.xlu0 %1765
  %1799 = vrot.lane.b32.xlu0 %v1063, 28
  %v1800 = vpop.permute.xlu0 %1799
  %1801 = vrot.lane.b32.xlu0 %v1064, 28
  %v1802 = vpop.permute.xlu0 %1801
  %1803 = vrot.lane.b32.xlu0 %v1065, 28
  %v1804 = vpop.permute.xlu0 %1803
  %1805 = vrot.lane.b32.xlu0 %v1066, 28
  %v1806 = vpop.permute.xlu0 %1805
  %1807 = vrot.lane.b32.xlu0 %v1067, 28
  %v1808 = vpop.permute.xlu0 %1807
  %1809 = vrot.lane.b32.xlu0 %v1068, 28
  %v1810 = vpop.permute.xlu0 %1809
  %1811 = vrot.lane.b32.xlu0 %v1069, 28
  %v1812 = vpop.permute.xlu0 %1811
  %1813 = vrot.lane.b32.xlu0 %v1070, 28
  %v1814 = vpop.permute.xlu0 %1813
  %1815 = vrot.lane.b32.xlu0 %v1071, 28
  %v1816 = vpop.permute.xlu0 %1815
  %1817 = vrot.lane.b32.xlu0 %v1072, 28
  %v1818 = vpop.permute.xlu0 %1817
  %1819 = vrot.lane.b32.xlu0 %v1073, 28
  %v1820 = vpop.permute.xlu0 %1819
  %1821 = vrot.lane.b32.xlu0 %v1074, 28
  %v1822 = vpop.permute.xlu0 %1821
  %1823 = vrot.lane.b32.xlu0 %v1075, 28
  %v1824 = vpop.permute.xlu0 %1823
  %1825 = vrot.lane.b32.xlu0 %v1076, 28
  %v1826 = vpop.permute.xlu0 %1825
  %1827 = vrot.lane.b32.xlu0 %v1077, 28
  %v1828 = vpop.permute.xlu0 %1827
  %1829 = vrot.lane.b32.xlu0 %v1078, 28
  %v1830 = vpop.permute.xlu0 %1829
  %1831 = vrot.lane.b32.xlu0 %v1079, 28
  %v1832 = vpop.permute.xlu0 %1831
  %1833 = vrot.lane.b32.xlu0 %v1080, 28
  %v1834 = vpop.permute.xlu0 %1833
  %1835 = vrot.lane.b32.xlu0 %v1081, 28
  %v1836 = vpop.permute.xlu0 %1835
  %1837 = vrot.lane.b32.xlu0 %v1082, 28
  %v1838 = vpop.permute.xlu0 %1837
  %1839 = vrot.lane.b32.xlu0 %v1083, 28
  %v1840 = vpop.permute.xlu0 %1839
  %1841 = vrot.lane.b32.xlu0 %v1084, 28
  %v1842 = vpop.permute.xlu0 %1841
  %1843 = vrot.lane.b32.xlu0 %v1085, 28
  %v1844 = vpop.permute.xlu0 %1843
  %1845 = vrot.lane.b32.xlu0 %v1086, 28
  %v1846 = vpop.permute.xlu0 %1845
  %1847 = vrot.lane.b32.xlu0 %v1087, 28
  %v1848 = vpop.permute.xlu0 %1847
  %1849 = vrot.lane.b32.xlu0 %v1088, 28
  %v1850 = vpop.permute.xlu0 %1849
  %1851 = vrot.lane.b32.xlu0 %v1089, 28
  %v1852 = vpop.permute.xlu0 %1851
  %1853 = vrot.lane.b32.xlu0 %v1090, 28
  %v1854 = vpop.permute.xlu0 %1853
  %1855 = vrot.lane.b32.xlu0 %v1091, 28
  %v1856 = vpop.permute.xlu0 %1855
  %1857 = vrot.lane.b32.xlu0 %v1092, 28
  %v1858 = vpop.permute.xlu0 %1857
  %1859 = vrot.lane.b32.xlu0 %v1093, 28
  %v1860 = vpop.permute.xlu0 %1859
  %1861 = vrot.lane.b32.xlu0 %v1094, 28
  %v1862 = vpop.permute.xlu0 %1861
  %1895 = vrot.lane.b32.xlu0 %v1159, 32
  %v1896 = vpop.permute.xlu0 %1895
  %1897 = vrot.lane.b32.xlu0 %v1160, 32
  %v1898 = vpop.permute.xlu0 %1897
  %1899 = vrot.lane.b32.xlu0 %v1161, 32
  %v1900 = vpop.permute.xlu0 %1899
  %1901 = vrot.lane.b32.xlu0 %v1162, 32
  %v1902 = vpop.permute.xlu0 %1901
  %1903 = vrot.lane.b32.xlu0 %v1163, 32
  %v1904 = vpop.permute.xlu0 %1903
  %1905 = vrot.lane.b32.xlu0 %v1164, 32
  %v1906 = vpop.permute.xlu0 %1905
  %1907 = vrot.lane.b32.xlu0 %v1165, 32
  %v1908 = vpop.permute.xlu0 %1907
  %1909 = vrot.lane.b32.xlu0 %v1166, 32
  %v1910 = vpop.permute.xlu0 %1909
  %1911 = vrot.lane.b32.xlu0 %v1167, 32
  %v1912 = vpop.permute.xlu0 %1911
  %1913 = vrot.lane.b32.xlu0 %v1168, 32
  %v1914 = vpop.permute.xlu0 %1913
  %1915 = vrot.lane.b32.xlu0 %v1169, 32
  %v1916 = vpop.permute.xlu0 %1915
  %1917 = vrot.lane.b32.xlu0 %v1170, 32
  %v1918 = vpop.permute.xlu0 %1917
  %1919 = vrot.lane.b32.xlu0 %v1171, 32
  %v1920 = vpop.permute.xlu0 %1919
  %1921 = vrot.lane.b32.xlu0 %v1172, 32
  %v1922 = vpop.permute.xlu0 %1921
  %1923 = vrot.lane.b32.xlu0 %v1173, 32
  %v1924 = vpop.permute.xlu0 %1923
  %1925 = vrot.lane.b32.xlu0 %v1174, 32
  %v1926 = vpop.permute.xlu0 %1925
  %1927 = vrot.lane.b32.xlu0 %v1175, 32
  %v1928 = vpop.permute.xlu0 %1927
  %1929 = vrot.lane.b32.xlu0 %v1176, 32
  %v1930 = vpop.permute.xlu0 %1929
  %1931 = vrot.lane.b32.xlu0 %v1177, 32
  %v1932 = vpop.permute.xlu0 %1931
  %1933 = vrot.lane.b32.xlu0 %v1178, 32
  %v1934 = vpop.permute.xlu0 %1933
  %1935 = vrot.lane.b32.xlu0 %v1179, 32
  %v1936 = vpop.permute.xlu0 %1935
  %1937 = vrot.lane.b32.xlu0 %v1180, 32
  %v1938 = vpop.permute.xlu0 %1937
  %1939 = vrot.lane.b32.xlu0 %v1181, 32
  %v1940 = vpop.permute.xlu0 %1939
  %1941 = vrot.lane.b32.xlu0 %v1182, 32
  %v1942 = vpop.permute.xlu0 %1941
  %1943 = vrot.lane.b32.xlu0 %v1183, 32
  %v1944 = vpop.permute.xlu0 %1943
  %1945 = vrot.lane.b32.xlu0 %v1184, 32
  %v1946 = vpop.permute.xlu0 %1945
  %1947 = vrot.lane.b32.xlu0 %v1185, 32
  %v1948 = vpop.permute.xlu0 %1947
  %1949 = vrot.lane.b32.xlu0 %v1186, 32
  %v1950 = vpop.permute.xlu0 %1949
  %1951 = vrot.lane.b32.xlu0 %v1187, 32
  %v1952 = vpop.permute.xlu0 %1951
  %1953 = vrot.lane.b32.xlu0 %v1188, 32
  %v1954 = vpop.permute.xlu0 %1953
  %1955 = vrot.lane.b32.xlu0 %v1189, 32
  %v1956 = vpop.permute.xlu0 %1955
  %1957 = vrot.lane.b32.xlu0 %v1190, 32
  %v1958 = vpop.permute.xlu0 %1957
  %v1961 = vsel %vm21, %v390, %v1224
  %v1964 = vsel %vm21, %v391, %v1226
  %v1967 = vsel %vm21, %v392, %v1228
  %v1970 = vsel %vm21, %v393, %v1230
  %v1973 = vsel %vm21, %v394, %v1232
  %v1976 = vsel %vm21, %v395, %v1234
  %v1979 = vsel %vm21, %v396, %v1236
  %v1982 = vsel %vm21, %v397, %v1238
  %v1985 = vsel %vm21, %v398, %v1240
  %v1988 = vsel %vm21, %v399, %v1242
  %v1991 = vsel %vm21, %v400, %v1244
  %v1994 = vsel %vm21, %v401, %v1246
  %v1997 = vsel %vm21, %v402, %v1248
  %v2000 = vsel %vm21, %v403, %v1250
  %v2003 = vsel %vm21, %v404, %v1252
  %v2006 = vsel %vm21, %v405, %v1254
  %v2009 = vsel %vm21, %v406, %v1256
  %v2012 = vsel %vm21, %v407, %v1258
  %v2015 = vsel %vm21, %v408, %v1260
  %v2018 = vsel %vm21, %v409, %v1262
  %v2021 = vsel %vm21, %v410, %v1264
  %v2024 = vsel %vm21, %v411, %v1266
  %v2027 = vsel %vm21, %v412, %v1268
  %v2030 = vsel %vm21, %v413, %v1270
  %v2033 = vsel %vm21, %v414, %v1272
  %v2036 = vsel %vm21, %v415, %v1274
  %v2039 = vsel %vm21, %v416, %v1276
  %v2042 = vsel %vm21, %v417, %v1278
  %v2045 = vsel %vm21, %v418, %v1280
  %v2048 = vsel %vm21, %v419, %v1282
  %v2051 = vsel %vm21, %v420, %v1284
  %v2054 = vsel %vm21, %v421, %v1286
  %v2056 = vsel %vm109, %v1961, %v1320
  %v2058 = vsel %vm109, %v1964, %v1322
  %v2060 = vsel %vm109, %v1967, %v1324
  %v2062 = vsel %vm109, %v1970, %v1326
  %v2064 = vsel %vm109, %v1973, %v1328
  %v2066 = vsel %vm109, %v1976, %v1330
  %v2068 = vsel %vm109, %v1979, %v1332
  %v2070 = vsel %vm109, %v1982, %v1334
  %v2072 = vsel %vm109, %v1985, %v1336
  %v2074 = vsel %vm109, %v1988, %v1338
  %v2076 = vsel %vm109, %v1991, %v1340
  %v2078 = vsel %vm109, %v1994, %v1342
  %v2080 = vsel %vm109, %v1997, %v1344
  %v2082 = vsel %vm109, %v2000, %v1346
  %v2084 = vsel %vm109, %v2003, %v1348
  %v2086 = vsel %vm109, %v2006, %v1350
  %v2088 = vsel %vm109, %v2009, %v1352
  %v2090 = vsel %vm109, %v2012, %v1354
  %v2092 = vsel %vm109, %v2015, %v1356
  %v2094 = vsel %vm109, %v2018, %v1358
  %v2096 = vsel %vm109, %v2021, %v1360
  %v2098 = vsel %vm109, %v2024, %v1362
  %v2100 = vsel %vm109, %v2027, %v1364
  %v2102 = vsel %vm109, %v2030, %v1366
  %v2104 = vsel %vm109, %v2033, %v1368
  %v2106 = vsel %vm109, %v2036, %v1370
  %v2108 = vsel %vm109, %v2039, %v1372
  %v2110 = vsel %vm109, %v2042, %v1374
  %v2112 = vsel %vm109, %v2045, %v1376
  %v2114 = vsel %vm109, %v2048, %v1378
  %v2116 = vsel %vm109, %v2051, %v1380
  %v2118 = vsel %vm109, %v2054, %v1382
  %vm2119 = vcmask 97280
  %v2121 = vsel %vm2119, %v2056, %v1416
  %v2123 = vsel %vm2119, %v2058, %v1418
  %v2125 = vsel %vm2119, %v2060, %v1420
  %v2127 = vsel %vm2119, %v2062, %v1422
  %v2129 = vsel %vm2119, %v2064, %v1424
  %v2131 = vsel %vm2119, %v2066, %v1426
  %v2133 = vsel %vm2119, %v2068, %v1428
  %v2135 = vsel %vm2119, %v2070, %v1430
  %v2137 = vsel %vm2119, %v2072, %v1432
  %v2139 = vsel %vm2119, %v2074, %v1434
  %v2141 = vsel %vm2119, %v2076, %v1436
  %v2143 = vsel %vm2119, %v2078, %v1438
  %v2145 = vsel %vm2119, %v2080, %v1440
  %v2147 = vsel %vm2119, %v2082, %v1442
  %v2149 = vsel %vm2119, %v2084, %v1444
  %v2151 = vsel %vm2119, %v2086, %v1446
  %v2153 = vsel %vm2119, %v2088, %v1448
  %v2155 = vsel %vm2119, %v2090, %v1450
  %v2157 = vsel %vm2119, %v2092, %v1452
  %v2159 = vsel %vm2119, %v2094, %v1454
  %v2161 = vsel %vm2119, %v2096, %v1456
  %v2163 = vsel %vm2119, %v2098, %v1458
  %v2165 = vsel %vm2119, %v2100, %v1460
  %v2167 = vsel %vm2119, %v2102, %v1462
  %v2169 = vsel %vm2119, %v2104, %v1464
  %v2171 = vsel %vm2119, %v2106, %v1466
  %v2173 = vsel %vm2119, %v2108, %v1468
  %v2175 = vsel %vm2119, %v2110, %v1470
  %v2177 = vsel %vm2119, %v2112, %v1472
  %v2179 = vsel %vm2119, %v2114, %v1474
  %v2181 = vsel %vm2119, %v2116, %v1476
  %v2183 = vsel %vm2119, %v2118, %v1478
  %vm2184 = vcmask 130048
  %v2186 = vsel %vm2184, %v2121, %v1512
  %v2188 = vsel %vm2184, %v2123, %v1514
  %v2190 = vsel %vm2184, %v2125, %v1516
  %v2192 = vsel %vm2184, %v2127, %v1518
  %v2194 = vsel %vm2184, %v2129, %v1520
  %v2196 = vsel %vm2184, %v2131, %v1522
  %v2198 = vsel %vm2184, %v2133, %v1524
  %v2200 = vsel %vm2184, %v2135, %v1526
  %v2202 = vsel %vm2184, %v2137, %v1528
  %v2204 = vsel %vm2184, %v2139, %v1530
  %v2206 = vsel %vm2184, %v2141, %v1532
  %v2208 = vsel %vm2184, %v2143, %v1534
  %v2210 = vsel %vm2184, %v2145, %v1536
  %v2212 = vsel %vm2184, %v2147, %v1538
  %v2214 = vsel %vm2184, %v2149, %v1540
  %v2216 = vsel %vm2184, %v2151, %v1542
  %v2218 = vsel %vm2184, %v2153, %v1544
  %v2220 = vsel %vm2184, %v2155, %v1546
  %v2222 = vsel %vm2184, %v2157, %v1548
  %v2224 = vsel %vm2184, %v2159, %v1550
  %v2226 = vsel %vm2184, %v2161, %v1552
  %v2228 = vsel %vm2184, %v2163, %v1554
  %v2230 = vsel %vm2184, %v2165, %v1556
  %v2232 = vsel %vm2184, %v2167, %v1558
  %v2234 = vsel %vm2184, %v2169, %v1560
  %v2236 = vsel %vm2184, %v2171, %v1562
  %v2238 = vsel %vm2184, %v2173, %v1564
  %v2240 = vsel %vm2184, %v2175, %v1566
  %v2242 = vsel %vm2184, %v2177, %v1568
  %v2244 = vsel %vm2184, %v2179, %v1570
  %v2246 = vsel %vm2184, %v2181, %v1572
  %v2248 = vsel %vm2184, %v2183, %v1574
  %vm2249 = vcmask 162816
  %v2251 = vsel %vm2249, %v2186, %v1608
  %v2253 = vsel %vm2249, %v2188, %v1610
  %v2255 = vsel %vm2249, %v2190, %v1612
  %v2257 = vsel %vm2249, %v2192, %v1614
  %v2259 = vsel %vm2249, %v2194, %v1616
  %v2261 = vsel %vm2249, %v2196, %v1618
  %v2263 = vsel %vm2249, %v2198, %v1620
  %v2265 = vsel %vm2249, %v2200, %v1622
  %v2267 = vsel %vm2249, %v2202, %v1624
  %v2269 = vsel %vm2249, %v2204, %v1626
  %v2271 = vsel %vm2249, %v2206, %v1628
  %v2273 = vsel %vm2249, %v2208, %v1630
  %v2275 = vsel %vm2249, %v2210, %v1632
  %v2277 = vsel %vm2249, %v2212, %v1634
  %v2279 = vsel %vm2249, %v2214, %v1636
  %v2281 = vsel %vm2249, %v2216, %v1638
  %v2283 = vsel %vm2249, %v2218, %v1640
  %v2285 = vsel %vm2249, %v2220, %v1642
  %v2287 = vsel %vm2249, %v2222, %v1644
  %v2289 = vsel %vm2249, %v2224, %v1646
  %v2291 = vsel %vm2249, %v2226, %v1648
  %v2293 = vsel %vm2249, %v2228, %v1650
  %v2295 = vsel %vm2249, %v2230, %v1652
  %v2297 = vsel %vm2249, %v2232, %v1654
  %v2299 = vsel %vm2249, %v2234, %v1656
  %v2301 = vsel %vm2249, %v2236, %v1658
  %v2303 = vsel %vm2249, %v2238, %v1660
  %v2305 = vsel %vm2249, %v2240, %v1662
  %v2307 = vsel %vm2249, %v2242, %v1664
  %v2309 = vsel %vm2249, %v2244, %v1666
  %v2311 = vsel %vm2249, %v2246, %v1668
  %v2313 = vsel %vm2249, %v2248, %v1670
  %vm2314 = vcmask 195584
  %v2316 = vsel %vm2314, %v2251, %v1704
  %v2318 = vsel %vm2314, %v2253, %v1706
  %v2320 = vsel %vm2314, %v2255, %v1708
  %v2322 = vsel %vm2314, %v2257, %v1710
  %v2324 = vsel %vm2314, %v2259, %v1712
  %v2326 = vsel %vm2314, %v2261, %v1714
  %v2328 = vsel %vm2314, %v2263, %v1716
  %v2330 = vsel %vm2314, %v2265, %v1718
  %v2332 = vsel %vm2314, %v2267, %v1720
  %v2334 = vsel %vm2314, %v2269, %v1722
  %v2336 = vsel %vm2314, %v2271, %v1724
  %v2338 = vsel %vm2314, %v2273, %v1726
  %v2340 = vsel %vm2314, %v2275, %v1728
  %v2342 = vsel %vm2314, %v2277, %v1730
  %v2344 = vsel %vm2314, %v2279, %v1732
  %v2346 = vsel %vm2314, %v2281, %v1734
  %v2348 = vsel %vm2314, %v2283, %v1736
  %v2350 = vsel %vm2314, %v2285, %v1738
  %v2352 = vsel %vm2314, %v2287, %v1740
  %v2354 = vsel %vm2314, %v2289, %v1742
  %v2356 = vsel %vm2314, %v2291, %v1744
  %v2358 = vsel %vm2314, %v2293, %v1746
  %v2360 = vsel %vm2314, %v2295, %v1748
  %v2362 = vsel %vm2314, %v2297, %v1750
  %v2364 = vsel %vm2314, %v2299, %v1752
  %v2366 = vsel %vm2314, %v2301, %v1754
  %v2368 = vsel %vm2314, %v2303, %v1756
  %v2370 = vsel %vm2314, %v2305, %v1758
  %v2372 = vsel %vm2314, %v2307, %v1760
  %v2374 = vsel %vm2314, %v2309, %v1762
  %v2376 = vsel %vm2314, %v2311, %v1764
  %v2378 = vsel %vm2314, %v2313, %v1766
  %vm2379 = vcmask 228352
  %v2381 = vsel %vm2379, %v2316, %v1800
  %v2383 = vsel %vm2379, %v2318, %v1802
  %v2385 = vsel %vm2379, %v2320, %v1804
  %v2387 = vsel %vm2379, %v2322, %v1806
  %v2389 = vsel %vm2379, %v2324, %v1808
  %v2391 = vsel %vm2379, %v2326, %v1810
  %v2393 = vsel %vm2379, %v2328, %v1812
  %v2395 = vsel %vm2379, %v2330, %v1814
  %v2397 = vsel %vm2379, %v2332, %v1816
  %v2399 = vsel %vm2379, %v2334, %v1818
  %v2401 = vsel %vm2379, %v2336, %v1820
  %v2403 = vsel %vm2379, %v2338, %v1822
  %v2405 = vsel %vm2379, %v2340, %v1824
  %v2407 = vsel %vm2379, %v2342, %v1826
  %v2409 = vsel %vm2379, %v2344, %v1828
  %v2411 = vsel %vm2379, %v2346, %v1830
  %v2413 = vsel %vm2379, %v2348, %v1832
  %v2415 = vsel %vm2379, %v2350, %v1834
  %v2417 = vsel %vm2379, %v2352, %v1836
  %v2419 = vsel %vm2379, %v2354, %v1838
  %v2421 = vsel %vm2379, %v2356, %v1840
  %v2423 = vsel %vm2379, %v2358, %v1842
  %v2425 = vsel %vm2379, %v2360, %v1844
  %v2427 = vsel %vm2379, %v2362, %v1846
  %v2429 = vsel %vm2379, %v2364, %v1848
  %v2431 = vsel %vm2379, %v2366, %v1850
  %v2433 = vsel %vm2379, %v2368, %v1852
  %v2435 = vsel %vm2379, %v2370, %v1854
  %v2437 = vsel %vm2379, %v2372, %v1856
  %v2439 = vsel %vm2379, %v2374, %v1858
  %v2441 = vsel %vm2379, %v2376, %v1860
  %v2443 = vsel %vm2379, %v2378, %v1862
  %vm2444 = vcmask 261120
  %v2446 = vsel %vm2444, %v2381, %v1896
  %v2449 = vsel %vm2444, %v2383, %v1898
  %v2452 = vsel %vm2444, %v2385, %v1900
  %v2455 = vsel %vm2444, %v2387, %v1902
  %v2458 = vsel %vm2444, %v2389, %v1904
  %v2461 = vsel %vm2444, %v2391, %v1906
  %v2464 = vsel %vm2444, %v2393, %v1908
  %v2467 = vsel %vm2444, %v2395, %v1910
  %v2470 = vsel %vm2444, %v2397, %v1912
  %v2473 = vsel %vm2444, %v2399, %v1914
  %v2476 = vsel %vm2444, %v2401, %v1916
  %v2479 = vsel %vm2444, %v2403, %v1918
  %v2482 = vsel %vm2444, %v2405, %v1920
  %v2485 = vsel %vm2444, %v2407, %v1922
  %v2488 = vsel %vm2444, %v2409, %v1924
  %v2491 = vsel %vm2444, %v2411, %v1926
  %v2494 = vsel %vm2444, %v2413, %v1928
  %v2497 = vsel %vm2444, %v2415, %v1930
  %v2500 = vsel %vm2444, %v2417, %v1932
  %v2503 = vsel %vm2444, %v2419, %v1934
  %v2506 = vsel %vm2444, %v2421, %v1936
  %v2509 = vsel %vm2444, %v2423, %v1938
  %v2512 = vsel %vm2444, %v2425, %v1940
  %v2515 = vsel %vm2444, %v2427, %v1942
  %v2518 = vsel %vm2444, %v2429, %v1944
  %v2521 = vsel %vm2444, %v2431, %v1946
  %v2524 = vsel %vm2444, %v2433, %v1948
  %v2527 = vsel %vm2444, %v2435, %v1950
  %v2530 = vsel %vm2444, %v2437, %v1952
  %v2533 = vsel %vm2444, %v2439, %v1954
  %v2536 = vsel %vm2444, %v2441, %v1956
  %v2539 = vsel %vm2444, %v2443, %v1958
  %vm2541 = vcmask 293888
  %2542 = vst.msk [vmem:[#allocation3] sm:$0xff] %vm2541, %v2446
  %2543 = vst.msk [vmem:[#allocation3 + $0x8] sm:$0xff] %vm2541, %v2449
  %2544 = vst.msk [vmem:[#allocation3 + $0x10] sm:$0xff] %vm2541, %v2452
  %2545 = vst.msk [vmem:[#allocation3 + $0x18] sm:$0xff] %vm2541, %v2455
  %2546 = vst.msk [vmem:[#allocation3 + $0x20] sm:$0xff] %vm2541, %v2458
  %2547 = vst.msk [vmem:[#allocation3 + $0x28] sm:$0xff] %vm2541, %v2461
  %2548 = vst.msk [vmem:[#allocation3 + $0x30] sm:$0xff] %vm2541, %v2464
  %2549 = vst.msk [vmem:[#allocation3 + $0x38] sm:$0xff] %vm2541, %v2467
  %2550 = vst.msk [vmem:[#allocation3 + $0x40] sm:$0xff] %vm2541, %v2470
  %2551 = vst.msk [vmem:[#allocation3 + $0x48] sm:$0xff] %vm2541, %v2473
  %2552 = vst.msk [vmem:[#allocation3 + $0x50] sm:$0xff] %vm2541, %v2476
  %2553 = vst.msk [vmem:[#allocation3 + $0x58] sm:$0xff] %vm2541, %v2479
  %2554 = vst.msk [vmem:[#allocation3 + $0x60] sm:$0xff] %vm2541, %v2482
  %2555 = vst.msk [vmem:[#allocation3 + $0x68] sm:$0xff] %vm2541, %v2485
  %2556 = vst.msk [vmem:[#allocation3 + $0x70] sm:$0xff] %vm2541, %v2488
  %2557 = vst.msk [vmem:[#allocation3 + $0x78] sm:$0xff] %vm2541, %v2491
  %2558 = vst.msk [vmem:[#allocation3 + $0x80] sm:$0xff] %vm2541, %v2494
  %2559 = vst.msk [vmem:[#allocation3 + $0x88] sm:$0xff] %vm2541, %v2497
  %2560 = vst.msk [vmem:[#allocation3 + $0x90] sm:$0xff] %vm2541, %v2500
  %2561 = vst.msk [vmem:[#allocation3 + $0x98] sm:$0xff] %vm2541, %v2503
  %2562 = vst.msk [vmem:[#allocation3 + $0xa0] sm:$0xff] %vm2541, %v2506
  %2563 = vst.msk [vmem:[#allocation3 + $0xa8] sm:$0xff] %vm2541, %v2509
  %2564 = vst.msk [vmem:[#allocation3 + $0xb0] sm:$0xff] %vm2541, %v2512
  %2565 = vst.msk [vmem:[#allocation3 + $0xb8] sm:$0xff] %vm2541, %v2515
  %2566 = vst.msk [vmem:[#allocation3 + $0xc0] sm:$0xff] %vm2541, %v2518
  %2567 = vst.msk [vmem:[#allocation3 + $0xc8] sm:$0xff] %vm2541, %v2521
  %2568 = vst.msk [vmem:[#allocation3 + $0xd0] sm:$0xff] %vm2541, %v2524
  %2569 = vst.msk [vmem:[#allocation3 + $0xd8] sm:$0xff] %vm2541, %v2527
  %2570 = vst.msk [vmem:[#allocation3 + $0xe0] sm:$0xff] %vm2541, %v2530
  %2571 = vst.msk [vmem:[#allocation3 + $0xe8] sm:$0xff] %vm2541, %v2533
  %2572 = vst.msk [vmem:[#allocation3 + $0xf0] sm:$0xff] %vm2541, %v2536
  %2573 = vst.msk [vmem:[#allocation3 + $0xf8] sm:$0xff] %vm2541, %v2539
  %v2574 = vld [vmem:[#allocation3] sm:$0xff]
  %v2575 = vld [vmem:[#allocation3 + $0x8] sm:$0xff]
  %v2576 = vld [vmem:[#allocation3 + $0x10] sm:$0xff]
  %v2577 = vld [vmem:[#allocation3 + $0x18] sm:$0xff]
  %v2578 = vld [vmem:[#allocation3 + $0x20] sm:$0xff]
  %v2579 = vld [vmem:[#allocation3 + $0x28] sm:$0xff]
  %v2580 = vld [vmem:[#allocation3 + $0x30] sm:$0xff]
  %v2581 = vld [vmem:[#allocation3 + $0x38] sm:$0xff]
  %v2582 = vld [vmem:[#allocation3 + $0x40] sm:$0xff]
  %v2583 = vld [vmem:[#allocation3 + $0x48] sm:$0xff]
  %v2584 = vld [vmem:[#allocation3 + $0x50] sm:$0xff]
  %v2585 = vld [vmem:[#allocation3 + $0x58] sm:$0xff]
  %v2586 = vld [vmem:[#allocation3 + $0x60] sm:$0xff]
  %v2587 = vld [vmem:[#allocation3 + $0x68] sm:$0xff]
  %v2588 = vld [vmem:[#allocation3 + $0x70] sm:$0xff]
  %v2589 = vld [vmem:[#allocation3 + $0x78] sm:$0xff]
  %v2590 = vld [vmem:[#allocation3 + $0x80] sm:$0xff]
  %v2591 = vld [vmem:[#allocation3 + $0x88] sm:$0xff]
  %v2592 = vld [vmem:[#allocation3 + $0x90] sm:$0xff]
  %v2593 = vld [vmem:[#allocation3 + $0x98] sm:$0xff]
  %v2594 = vld [vmem:[#allocation3 + $0xa0] sm:$0xff]
  %v2595 = vld [vmem:[#allocation3 + $0xa8] sm:$0xff]
  %v2596 = vld [vmem:[#allocation3 + $0xb0] sm:$0xff]
  %v2597 = vld [vmem:[#allocation3 + $0xb8] sm:$0xff]
  %v2598 = vld [vmem:[#allocation3 + $0xc0] sm:$0xff]
  %v2599 = vld [vmem:[#allocation3 + $0xc8] sm:$0xff]
  %v2600 = vld [vmem:[#allocation3 + $0xd0] sm:$0xff]
  %v2601 = vld [vmem:[#allocation3 + $0xd8] sm:$0xff]
  %v2602 = vld [vmem:[#allocation3 + $0xe0] sm:$0xff]
  %v2603 = vld [vmem:[#allocation3 + $0xe8] sm:$0xff]
  %v2604 = vld [vmem:[#allocation3 + $0xf0] sm:$0xff]
  %v2605 = vld [vmem:[#allocation3 + $0xf8] sm:$0xff]
  %v2606 = vld [vmem:[%s1] sm:$0xf]
  %v2607 = vld [vmem:[%s1 + $0x4] sm:$0xf]
  %v2608 = vld [vmem:[%s1 + $0x8] sm:$0xf]
  %v2609 = vld [vmem:[%s1 + $0xc] sm:$0xf]
  %v2610 = vld [vmem:[%s1 + $0x10] sm:$0x3]
  %v2611 = vld [vmem:[%s2] sm:$0x1]
  %v2613 = vlaneseq
  %v2614 = vshrl.u32 %v2613, 7
  %v2615 = vsub.s32 0, %v2614
  %v2616 = vrot.slane %v2611, %v2615
  %v2623 = vunpack.c.l.b16 %v2606
  %v2624 = vunpack.c.l.b16 %v2607
  %v2625 = vunpack.c.l.b16 %v2608
  %v2626 = vunpack.c.l.b16 %v2609
  %v2627 = vunpack.c.l.b16 %v2610
  %v2628 = vpack.c.b16 %v2624, %v2623
  %v2629 = vpack.c.b16 %v2626, %v2625
  %v2630 = vpack.c.b16 %v2627, %v2627
  %v2634 = vsel %vm2541, %v2574, 0
  %v2637 = vsel %vm2541, %v2575, 0
  %v2640 = vsel %vm2541, %v2576, 0
  %v2643 = vsel %vm2541, %v2577, 0
  %v2646 = vsel %vm2541, %v2578, 0
  %v2649 = vsel %vm2541, %v2579, 0
  %v2652 = vsel %vm2541, %v2580, 0
  %v2655 = vsel %vm2541, %v2581, 0
  %v2658 = vsel %vm2541, %v2582, 0
  %v2661 = vsel %vm2541, %v2583, 0
  %v2664 = vsel %vm2541, %v2584, 0
  %v2667 = vsel %vm2541, %v2585, 0
  %v2670 = vsel %vm2541, %v2586, 0
  %v2673 = vsel %vm2541, %v2587, 0
  %v2676 = vsel %vm2541, %v2588, 0
  %v2679 = vsel %vm2541, %v2589, 0
  %v2682 = vsel %vm2541, %v2590, 0
  %v2685 = vsel %vm2541, %v2591, 0
  %v2688 = vsel %vm2541, %v2592, 0
  %v2691 = vsel %vm2541, %v2593, 0
  %v2694 = vsel %vm2541, %v2594, 0
  %v2697 = vsel %vm2541, %v2595, 0
  %v2700 = vsel %vm2541, %v2596, 0
  %v2703 = vsel %vm2541, %v2597, 0
  %v2706 = vsel %vm2541, %v2598, 0
  %v2709 = vsel %vm2541, %v2599, 0
  %v2712 = vsel %vm2541, %v2600, 0
  %v2715 = vsel %vm2541, %v2601, 0
  %v2718 = vsel %vm2541, %v2602, 0
  %v2721 = vsel %vm2541, %v2603, 0
  %v2724 = vsel %vm2541, %v2604, 0
  %v2727 = vsel %vm2541, %v2605, 0
  %vm2729 = vcmask 1041408
  %v2731 = vsel %vm2729, %v2630, 0
  %2733 = vmatprep.subr.bf16.mxu0 0
  %2734 = vmatpush1.bf16.msra.mxu0 %v2628
  %2735 = vmatprep.subr.bf16.mxu0 0
  %2736 = vmatpush1.bf16.msra.mxu0 %v2629
  %2737 = vmatprep.subr.bf16.mxu0 0
  %2738 = vmatpush1.bf16.msra.mxu0 %v2731
  %2739 = vmatprep.subr.bf16.mxu0 0
  %2740 = vmatpush1.bf16.msra.mxu0 0
  %2741 = vmatprep.subr.bf16.mxu0 0
  %2742 = vmatpush1.bf16.msra.mxu0 0
  %2743 = vmatprep.subr.bf16.mxu0 0
  %2744 = vmatpush1.bf16.msra.mxu0 0
  %2745 = vmatprep.subr.bf16.mxu0 0
  %2746 = vmatpush1.bf16.msra.mxu0 0
  %2747 = vmatprep.subr.bf16.mxu0 0
  %2748 = vmatpush1.bf16.msra.mxu0 0
  %2749 = vmatprep.subr.bf16.mxu0 0
  %2750 = vmatpush1.bf16.msra.mxu0 0
  %2751 = vmatprep.subr.bf16.mxu0 0
  %2752 = vmatpush1.bf16.msra.mxu0 0
  %2753 = vmatprep.subr.bf16.mxu0 0
  %2754 = vmatpush1.bf16.msra.mxu0 0
  %2755 = vmatprep.subr.bf16.mxu0 0
  %2756 = vmatpush1.bf16.msra.mxu0 0
  %2757 = vmatprep.subr.bf16.mxu0 0
  %2758 = vmatpush1.bf16.msra.mxu0 0
  %2759 = vmatprep.subr.bf16.mxu0 0
  %2760 = vmatpush1.bf16.msra.mxu0 0
  %2761 = vmatprep.subr.bf16.mxu0 0
  %2762 = vmatpush1.bf16.msra.mxu0 0
  %2763 = vmatprep.subr.bf16.mxu0 0
  %2764 = vmatpush1.bf16.msra.mxu0 0
  %2765 = vmatprep.mubr.bf16.mxu0 0
  %2766 = vmatmul.mubr.bf16.gmra.mrb[0].mxu0 %v2634
  %v2767 = vpop.f32.mrb[0].mxu0
  %v2768 = vadd.f32 %v2616, %v2767
  %v2769 = vpop.f32.mrb[0].mxu0
  %v2770 = vpop.f32.mrb[0].mxu0
  %v2771 = vadd.f32 %v2616, %v2770
  %v2772 = vpop.f32.mrb[0].mxu0
  %2773 = vmatprep.mubr.bf16.mxu0 0
  %2774 = vmatmul.mubr.bf16.gmra.mrb[0].mxu0 %v2637
  %v2775 = vpop.f32.mrb[0].mxu0
  %v2776 = vadd.f32 %v2616, %v2775
  %v2777 = vpop.f32.mrb[0].mxu0
  %v2778 = vpop.f32.mrb[0].mxu0
  %v2779 = vadd.f32 %v2616, %v2778
  %v2780 = vpop.f32.mrb[0].mxu0
  %2781 = vmatprep.mubr.bf16.mxu0 0
  %2782 = vmatmul.mubr.bf16.gmra.mrb[0].mxu0 %v2640
  %v2783 = vpop.f32.mrb[0].mxu0
  %v2784 = vadd.f32 %v2616, %v2783
  %v2785 = vpop.f32.mrb[0].mxu0
  %v2786 = vpop.f32.mrb[0].mxu0
  %v2787 = vadd.f32 %v2616, %v2786
  %v2788 = vpop.f32.mrb[0].mxu0
  %2789 = vmatprep.mubr.bf16.mxu0 0
  %2790 = vmatmul.mubr.bf16.gmra.mrb[0].mxu0 %v2643
  %v2791 = vpop.f32.mrb[0].mxu0
  %v2792 = vadd.f32 %v2616, %v2791
  %v2793 = vpop.f32.mrb[0].mxu0
  %v2794 = vpop.f32.mrb[0].mxu0
  %v2795 = vadd.f32 %v2616, %v2794
  %v2796 = vpop.f32.mrb[0].mxu0
  %2797 = vmatprep.mubr.bf16.mxu0 0
  %2798 = vmatmul.mubr.bf16.gmra.mrb[0].mxu0 %v2646
  %v2799 = vpop.f32.mrb[0].mxu0
  %v2800 = vadd.f32 %v2616, %v2799
  %v2801 = vpop.f32.mrb[0].mxu0
  %v2802 = vpop.f32.mrb[0].mxu0
  %v2803 = vadd.f32 %v2616, %v2802
  %v2804 = vpop.f32.mrb[0].mxu0
  %2805 = vmatprep.mubr.bf16.mxu0 0
  %2806 = vmatmul.mubr.bf16.gmra.mrb[0].mxu0 %v2649
  %v2807 = vpop.f32.mrb[0].mxu0
  %v2808 = vadd.f32 %v2616, %v2807
  %v2809 = vpop.f32.mrb[0].mxu0
  %v2810 = vpop.f32.mrb[0].mxu0
  %v2811 = vadd.f32 %v2616, %v2810
  %v2812 = vpop.f32.mrb[0].mxu0
  %2813 = vmatprep.mubr.bf16.mxu0 0
  %2814 = vmatmul.mubr.bf16.gmra.mrb[0].mxu0 %v2652
  %v2815 = vpop.f32.mrb[0].mxu0
  %v2816 = vadd.f32 %v2616, %v2815
  %v2817 = vpop.f32.mrb[0].mxu0
  %v2818 = vpop.f32.mrb[0].mxu0
  %v2819 = vadd.f32 %v2616, %v2818
  %v2820 = vpop.f32.mrb[0].mxu0
  %2821 = vmatprep.mubr.bf16.mxu0 0
  %2822 = vmatmul.mubr.bf16.gmra.mrb[0].mxu0 %v2655
  %v2823 = vpop.f32.mrb[0].mxu0
  %v2824 = vadd.f32 %v2616, %v2823
  %v2825 = vpop.f32.mrb[0].mxu0
  %v2826 = vpop.f32.mrb[0].mxu0
  %v2827 = vadd.f32 %v2616, %v2826
  %v2828 = vpop.f32.mrb[0].mxu0
  %2829 = vmatprep.mubr.bf16.mxu0 0
  %2830 = vmatmul.mubr.bf16.gmra.mrb[0].mxu0 %v2658
  %v2831 = vpop.f32.mrb[0].mxu0
  %v2832 = vadd.f32 %v2616, %v2831
  %v2833 = vpop.f32.mrb[0].mxu0
  %v2834 = vpop.f32.mrb[0].mxu0
  %v2835 = vadd.f32 %v2616, %v2834
  %v2836 = vpop.f32.mrb[0].mxu0
  %2837 = vmatprep.mubr.bf16.mxu0 0
  %2838 = vmatmul.mubr.bf16.gmra.mrb[0].mxu0 %v2661
  %v2839 = vpop.f32.mrb[0].mxu0
  %v2840 = vadd.f32 %v2616, %v2839
  %v2841 = vpop.f32.mrb[0].mxu0
  %v2842 = vpop.f32.mrb[0].mxu0
  %v2843 = vadd.f32 %v2616, %v2842
  %v2844 = vpop.f32.mrb[0].mxu0
  %2845 = vmatprep.mubr.bf16.mxu0 0
  %2846 = vmatmul.mubr.bf16.gmra.mrb[0].mxu0 %v2664
  %v2847 = vpop.f32.mrb[0].mxu0
  %v2848 = vadd.f32 %v2616, %v2847
  %v2849 = vpop.f32.mrb[0].mxu0
  %v2850 = vpop.f32.mrb[0].mxu0
  %v2851 = vadd.f32 %v2616, %v2850
  %v2852 = vpop.f32.mrb[0].mxu0
  %2853 = vmatprep.mubr.bf16.mxu0 0
  %2854 = vmatmul.mubr.bf16.gmra.mrb[0].mxu0 %v2667
  %v2855 = vpop.f32.mrb[0].mxu0
  %v2856 = vadd.f32 %v2616, %v2855
  %v2857 = vpop.f32.mrb[0].mxu0
  %v2858 = vpop.f32.mrb[0].mxu0
  %v2859 = vadd.f32 %v2616, %v2858
  %v2860 = vpop.f32.mrb[0].mxu0
  %2861 = vmatprep.mubr.bf16.mxu0 0
  %2862 = vmatmul.mubr.bf16.gmra.mrb[0].mxu0 %v2670
  %v2863 = vpop.f32.mrb[0].mxu0
  %v2864 = vadd.f32 %v2616, %v2863
  %v2865 = vpop.f32.mrb[0].mxu0
  %v2866 = vpop.f32.mrb[0].mxu0
  %v2867 = vadd.f32 %v2616, %v2866
  %v2868 = vpop.f32.mrb[0].mxu0
  %2869 = vmatprep.mubr.bf16.mxu0 0
  %2870 = vmatmul.mubr.bf16.gmra.mrb[0].mxu0 %v2673
  %v2871 = vpop.f32.mrb[0].mxu0
  %v2872 = vadd.f32 %v2616, %v2871
  %v2873 = vpop.f32.mrb[0].mxu0
  %v2874 = vpop.f32.mrb[0].mxu0
  %v2875 = vadd.f32 %v2616, %v2874
  %v2876 = vpop.f32.mrb[0].mxu0
  %2877 = vmatprep.mubr.bf16.mxu0 0
  %2878 = vmatmul.mubr.bf16.gmra.mrb[0].mxu0 %v2676
  %v2879 = vpop.f32.mrb[0].mxu0
  %v2880 = vadd.f32 %v2616, %v2879
  %v2881 = vpop.f32.mrb[0].mxu0
  %v2882 = vpop.f32.mrb[0].mxu0
  %v2883 = vadd.f32 %v2616, %v2882
  %v2884 = vpop.f32.mrb[0].mxu0
  %2885 = vmatprep.mubr.bf16.mxu0 0
  %2886 = vmatmul.mubr.bf16.gmra.mrb[0].mxu0 %v2679
  %v2887 = vpop.f32.mrb[0].mxu0
  %v2888 = vadd.f32 %v2616, %v2887
  %v2889 = vpop.f32.mrb[0].mxu0
  %v2890 = vpop.f32.mrb[0].mxu0
  %v2891 = vadd.f32 %v2616, %v2890
  %v2892 = vpop.f32.mrb[0].mxu0
  %2893 = vmatprep.mubr.bf16.mxu0 0
  %2894 = vmatmul.mubr.bf16.gmra.mrb[0].mxu0 %v2682
  %v2895 = vpop.f32.mrb[0].mxu0
  %v2896 = vadd.f32 %v2616, %v2895
  %v2897 = vpop.f32.mrb[0].mxu0
  %v2898 = vpop.f32.mrb[0].mxu0
  %v2899 = vadd.f32 %v2616, %v2898
  %v2900 = vpop.f32.mrb[0].mxu0
  %2901 = vmatprep.mubr.bf16.mxu0 0
  %2902 = vmatmul.mubr.bf16.gmra.mrb[0].mxu0 %v2685
  %v2903 = vpop.f32.mrb[0].mxu0
  %v2904 = vadd.f32 %v2616, %v2903
  %v2905 = vpop.f32.mrb[0].mxu0
  %v2906 = vpop.f32.mrb[0].mxu0
  %v2907 = vadd.f32 %v2616, %v2906
  %v2908 = vpop.f32.mrb[0].mxu0
  %2909 = vmatprep.mubr.bf16.mxu0 0
  %2910 = vmatmul.mubr.bf16.gmra.mrb[0].mxu0 %v2688
  %v2911 = vpop.f32.mrb[0].mxu0
  %v2912 = vadd.f32 %v2616, %v2911
  %v2913 = vpop.f32.mrb[0].mxu0
  %v2914 = vpop.f32.mrb[0].mxu0
  %v2915 = vadd.f32 %v2616, %v2914
  %v2916 = vpop.f32.mrb[0].mxu0
  %2917 = vmatprep.mubr.bf16.mxu0 0
  %2918 = vmatmul.mubr.bf16.gmra.mrb[0].mxu0 %v2691
  %v2919 = vpop.f32.mrb[0].mxu0
  %v2920 = vadd.f32 %v2616, %v2919
  %v2921 = vpop.f32.mrb[0].mxu0
  %v2922 = vpop.f32.mrb[0].mxu0
  %v2923 = vadd.f32 %v2616, %v2922
  %v2924 = vpop.f32.mrb[0].mxu0
  %2925 = vmatprep.mubr.bf16.mxu0 0
  %2926 = vmatmul.mubr.bf16.gmra.mrb[0].mxu0 %v2694
  %v2927 = vpop.f32.mrb[0].mxu0
  %v2928 = vadd.f32 %v2616, %v2927
  %v2929 = vpop.f32.mrb[0].mxu0
  %v2930 = vpop.f32.mrb[0].mxu0
  %v2931 = vadd.f32 %v2616, %v2930
  %v2932 = vpop.f32.mrb[0].mxu0
  %2933 = vmatprep.mubr.bf16.mxu0 0
  %2934 = vmatmul.mubr.bf16.gmra.mrb[0].mxu0 %v2697
  %v2935 = vpop.f32.mrb[0].mxu0
  %v2936 = vadd.f32 %v2616, %v2935
  %v2937 = vpop.f32.mrb[0].mxu0
  %v2938 = vpop.f32.mrb[0].mxu0
  %v2939 = vadd.f32 %v2616, %v2938
  %v2940 = vpop.f32.mrb[0].mxu0
  %2941 = vmatprep.mubr.bf16.mxu0 0
  %2942 = vmatmul.mubr.bf16.gmra.mrb[0].mxu0 %v2700
  %v2943 = vpop.f32.mrb[0].mxu0
  %v2944 = vadd.f32 %v2616, %v2943
  %v2945 = vpop.f32.mrb[0].mxu0
  %v2946 = vpop.f32.mrb[0].mxu0
  %v2947 = vadd.f32 %v2616, %v2946
  %v2948 = vpop.f32.mrb[0].mxu0
  %2949 = vmatprep.mubr.bf16.mxu0 0
  %2950 = vmatmul.mubr.bf16.gmra.mrb[0].mxu0 %v2703
  %v2951 = vpop.f32.mrb[0].mxu0
  %v2952 = vadd.f32 %v2616, %v2951
  %v2953 = vpop.f32.mrb[0].mxu0
  %v2954 = vpop.f32.mrb[0].mxu0
  %v2955 = vadd.f32 %v2616, %v2954
  %v2956 = vpop.f32.mrb[0].mxu0
  %2957 = vmatprep.mubr.bf16.mxu0 0
  %2958 = vmatmul.mubr.bf16.gmra.mrb[0].mxu0 %v2706
  %v2959 = vpop.f32.mrb[0].mxu0
  %v2960 = vadd.f32 %v2616, %v2959
  %v2961 = vpop.f32.mrb[0].mxu0
  %v2962 = vpop.f32.mrb[0].mxu0
  %v2963 = vadd.f32 %v2616, %v2962
  %v2964 = vpop.f32.mrb[0].mxu0
  %2965 = vmatprep.mubr.bf16.mxu0 0
  %2966 = vmatmul.mubr.bf16.gmra.mrb[0].mxu0 %v2709
  %v2967 = vpop.f32.mrb[0].mxu0
  %v2968 = vadd.f32 %v2616, %v2967
  %v2969 = vpop.f32.mrb[0].mxu0
  %v2970 = vpop.f32.mrb[0].mxu0
  %v2971 = vadd.f32 %v2616, %v2970
  %v2972 = vpop.f32.mrb[0].mxu0
  %2973 = vmatprep.mubr.bf16.mxu0 0
  %2974 = vmatmul.mubr.bf16.gmra.mrb[0].mxu0 %v2712
  %v2975 = vpop.f32.mrb[0].mxu0
  %v2976 = vadd.f32 %v2616, %v2975
  %v2977 = vpop.f32.mrb[0].mxu0
  %v2978 = vpop.f32.mrb[0].mxu0
  %v2979 = vadd.f32 %v2616, %v2978
  %v2980 = vpop.f32.mrb[0].mxu0
  %2981 = vmatprep.mubr.bf16.mxu0 0
  %2982 = vmatmul.mubr.bf16.gmra.mrb[0].mxu0 %v2715
  %v2983 = vpop.f32.mrb[0].mxu0
  %v2984 = vadd.f32 %v2616, %v2983
  %v2985 = vpop.f32.mrb[0].mxu0
  %v2986 = vpop.f32.mrb[0].mxu0
  %v2987 = vadd.f32 %v2616, %v2986
  %v2988 = vpop.f32.mrb[0].mxu0
  %2989 = vmatprep.mubr.bf16.mxu0 0
  %2990 = vmatmul.mubr.bf16.gmra.mrb[0].mxu0 %v2718
  %v2991 = vpop.f32.mrb[0].mxu0
  %v2992 = vadd.f32 %v2616, %v2991
  %v2993 = vpop.f32.mrb[0].mxu0
  %v2994 = vpop.f32.mrb[0].mxu0
  %v2995 = vadd.f32 %v2616, %v2994
  %v2996 = vpop.f32.mrb[0].mxu0
  %2997 = vmatprep.mubr.bf16.mxu0 0
  %2998 = vmatmul.mubr.bf16.gmra.mrb[0].mxu0 %v2721
  %v2999 = vpop.f32.mrb[0].mxu0
  %v3000 = vadd.f32 %v2616, %v2999
  %v3001 = vpop.f32.mrb[0].mxu0
  %v3002 = vpop.f32.mrb[0].mxu0
  %v3003 = vadd.f32 %v2616, %v3002
  %v3004 = vpop.f32.mrb[0].mxu0
  %3005 = vmatprep.mubr.bf16.mxu0 0
  %3006 = vmatmul.mubr.bf16.gmra.mrb[0].mxu0 %v2724
  %v3007 = vpop.f32.mrb[0].mxu0
  %v3008 = vadd.f32 %v2616, %v3007
  %v3009 = vpop.f32.mrb[0].mxu0
  %v3010 = vpop.f32.mrb[0].mxu0
  %v3011 = vadd.f32 %v2616, %v3010
  %v3012 = vpop.f32.mrb[0].mxu0
  %3013 = vmatprep.mubr.bf16.mxu0 0
  %3014 = vmatmul.mubr.bf16.gmra.mrb[0].mxu0 %v2727
  %v3015 = vpop.f32.mrb[0].mxu0
  %v3016 = vadd.f32 %v2616, %v3015
  %v3017 = vpop.f32.mrb[0].mxu0
  %v3018 = vpop.f32.mrb[0].mxu0
  %v3019 = vadd.f32 %v2616, %v3018
  %v3020 = vpop.f32.mrb[0].mxu0
  %3021 = vdwg.mxu0
  %v3022 = vmax.f32 %v2768, 0.0
  %v3023 = vmax.f32 %v2771, 0.0
  %v3024 = vmax.f32 %v2776, 0.0
  %v3025 = vmax.f32 %v2779, 0.0
  %v3026 = vmax.f32 %v2784, 0.0
  %v3027 = vmax.f32 %v2787, 0.0
  %v3028 = vmax.f32 %v2792, 0.0
  %v3029 = vmax.f32 %v2795, 0.0
  %v3030 = vmax.f32 %v2800, 0.0
  %v3031 = vmax.f32 %v2803, 0.0
  %v3032 = vmax.f32 %v2808, 0.0
  %v3033 = vmax.f32 %v2811, 0.0
  %v3034 = vmax.f32 %v2816, 0.0
  %v3035 = vmax.f32 %v2819, 0.0
  %v3036 = vmax.f32 %v2824, 0.0
  %v3037 = vmax.f32 %v2827, 0.0
  %v3038 = vmax.f32 %v2832, 0.0
  %v3039 = vmax.f32 %v2835, 0.0
  %v3040 = vmax.f32 %v2840, 0.0
  %v3041 = vmax.f32 %v2843, 0.0
  %v3042 = vmax.f32 %v2848, 0.0
  %v3043 = vmax.f32 %v2851, 0.0
  %v3044 = vmax.f32 %v2856, 0.0
  %v3045 = vmax.f32 %v2859, 0.0
  %v3046 = vmax.f32 %v2864, 0.0
  %v3047 = vmax.f32 %v2867, 0.0
  %v3048 = vmax.f32 %v2872, 0.0
  %v3049 = vmax.f32 %v2875, 0.0
  %v3050 = vmax.f32 %v2880, 0.0
  %v3051 = vmax.f32 %v2883, 0.0
  %v3052 = vmax.f32 %v2888, 0.0
  %v3053 = vmax.f32 %v2891, 0.0
  %v3054 = vmax.f32 %v2896, 0.0
  %v3055 = vmax.f32 %v2899, 0.0
  %v3056 = vmax.f32 %v2904, 0.0
  %v3057 = vmax.f32 %v2907, 0.0
  %v3058 = vmax.f32 %v2912, 0.0
  %v3059 = vmax.f32 %v2915, 0.0
  %v3060 = vmax.f32 %v2920, 0.0
  %v3061 = vmax.f32 %v2923, 0.0
  %v3062 = vmax.f32 %v2928, 0.0
  %v3063 = vmax.f32 %v2931, 0.0
  %v3064 = vmax.f32 %v2936, 0.0
  %v3065 = vmax.f32 %v2939, 0.0
  %v3066 = vmax.f32 %v2944, 0.0
  %v3067 = vmax.f32 %v2947, 0.0
  %v3068 = vmax.f32 %v2952, 0.0
  %v3069 = vmax.f32 %v2955, 0.0
  %v3070 = vmax.f32 %v2960, 0.0
  %v3071 = vmax.f32 %v2963, 0.0
  %v3072 = vmax.f32 %v2968, 0.0
  %v3073 = vmax.f32 %v2971, 0.0
  %v3074 = vmax.f32 %v2976, 0.0
  %v3075 = vmax.f32 %v2979, 0.0
  %v3076 = vmax.f32 %v2984, 0.0
  %v3077 = vmax.f32 %v2987, 0.0
  %v3078 = vmax.f32 %v2992, 0.0
  %v3079 = vmax.f32 %v2995, 0.0
  %v3080 = vmax.f32 %v3000, 0.0
  %v3081 = vmax.f32 %v3003, 0.0
  %v3082 = vmax.f32 %v3008, 0.0
  %v3083 = vmax.f32 %v3011, 0.0
  %v3084 = vmax.f32 %v3016, 0.0
  %v3085 = vmax.f32 %v3019, 0.0
  %s3086 = scalar_lea.vmem [#allocation4], 24
  %3087 = vst.msk [vmem:[%s3086 + $0x1] sm:$0xff] %vm109, %v3022
  %3088 = vst.msk [vmem:[%s3086 + $0x9] sm:$0xff] %vm109, %v3023
  %3089 = vst.msk [vmem:[%s3086 + $0x19] sm:$0xff] %vm109, %v3024
  %3090 = vst.msk [vmem:[%s3086 + $0x21] sm:$0xff] %vm109, %v3025
  %3091 = vst.msk [vmem:[%s3086 + $0x31] sm:$0xff] %vm109, %v3026
  %3092 = vst.msk [vmem:[%s3086 + $0x39] sm:$0xff] %vm109, %v3027
  %3093 = vst.msk [vmem:[%s3086 + $0x49] sm:$0xff] %vm109, %v3028
  %3094 = vst.msk [vmem:[%s3086 + $0x51] sm:$0xff] %vm109, %v3029
  %3095 = vst.msk [vmem:[%s3086 + $0x61] sm:$0xff] %vm109, %v3030
  %3096 = vst.msk [vmem:[%s3086 + $0x69] sm:$0xff] %vm109, %v3031
  %3097 = vst.msk [vmem:[%s3086 + $0x79] sm:$0xff] %vm109, %v3032
  %3098 = vst.msk [vmem:[%s3086 + $0x81] sm:$0xff] %vm109, %v3033
  %3099 = vst.msk [vmem:[%s3086 + $0x91] sm:$0xff] %vm109, %v3034
  %3100 = vst.msk [vmem:[%s3086 + $0x99] sm:$0xff] %vm109, %v3035
  %3101 = vst.msk [vmem:[%s3086 + $0xa9] sm:$0xff] %vm109, %v3036
  %3102 = vst.msk [vmem:[%s3086 + $0xb1] sm:$0xff] %vm109, %v3037
  %3103 = vst.msk [vmem:[%s3086 + $0xc1] sm:$0xff] %vm109, %v3038
  %3104 = vst.msk [vmem:[%s3086 + $0xc9] sm:$0xff] %vm109, %v3039
  %3105 = vst.msk [vmem:[%s3086 + $0xd9] sm:$0xff] %vm109, %v3040
  %3106 = vst.msk [vmem:[%s3086 + $0xe1] sm:$0xff] %vm109, %v3041
  %3107 = vst.msk [vmem:[%s3086 + $0xf1] sm:$0xff] %vm109, %v3042
  %3108 = vst.msk [vmem:[%s3086 + $0xf9] sm:$0xff] %vm109, %v3043
  %3109 = vst.msk [vmem:[%s3086 + $0x109] sm:$0xff] %vm109, %v3044
  %3110 = vst.msk [vmem:[%s3086 + $0x111] sm:$0xff] %vm109, %v3045
  %3111 = vst.msk [vmem:[%s3086 + $0x121] sm:$0xff] %vm109, %v3046
  %3112 = vst.msk [vmem:[%s3086 + $0x129] sm:$0xff] %vm109, %v3047
  %3113 = vst.msk [vmem:[%s3086 + $0x139] sm:$0xff] %vm109, %v3048
  %3114 = vst.msk [vmem:[%s3086 + $0x141] sm:$0xff] %vm109, %v3049
  %3115 = vst.msk [vmem:[%s3086 + $0x151] sm:$0xff] %vm109, %v3050
  %3116 = vst.msk [vmem:[%s3086 + $0x159] sm:$0xff] %vm109, %v3051
  %3117 = vst.msk [vmem:[%s3086 + $0x169] sm:$0xff] %vm109, %v3052
  %3118 = vst.msk [vmem:[%s3086 + $0x171] sm:$0xff] %vm109, %v3053
  %3119 = vst.msk [vmem:[%s3086 + $0x1b1] sm:$0xff] %vm109, %v3054
  %3120 = vst.msk [vmem:[%s3086 + $0x1b9] sm:$0xff] %vm109, %v3055
  %3121 = vst.msk [vmem:[%s3086 + $0x1c9] sm:$0xff] %vm109, %v3056
  %3122 = vst.msk [vmem:[%s3086 + $0x1d1] sm:$0xff] %vm109, %v3057
  %3123 = vst.msk [vmem:[%s3086 + $0x1e1] sm:$0xff] %vm109, %v3058
  %3124 = vst.msk [vmem:[%s3086 + $0x1e9] sm:$0xff] %vm109, %v3059
  %3125 = vst.msk [vmem:[%s3086 + $0x1f9] sm:$0xff] %vm109, %v3060
  %3126 = vst.msk [vmem:[%s3086 + $0x201] sm:$0xff] %vm109, %v3061
  %3127 = vst.msk [vmem:[%s3086 + $0x211] sm:$0xff] %vm109, %v3062
  %3128 = vst.msk [vmem:[%s3086 + $0x219] sm:$0xff] %vm109, %v3063
  %3129 = vst.msk [vmem:[%s3086 + $0x229] sm:$0xff] %vm109, %v3064
  %3130 = vst.msk [vmem:[%s3086 + $0x231] sm:$0xff] %vm109, %v3065
  %3131 = vst.msk [vmem:[%s3086 + $0x241] sm:$0xff] %vm109, %v3066
  %3132 = vst.msk [vmem:[%s3086 + $0x249] sm:$0xff] %vm109, %v3067
  %3133 = vst.msk [vmem:[%s3086 + $0x259] sm:$0xff] %vm109, %v3068
  %3134 = vst.msk [vmem:[%s3086 + $0x261] sm:$0xff] %vm109, %v3069
  %3135 = vst.msk [vmem:[%s3086 + $0x271] sm:$0xff] %vm109, %v3070
  %3136 = vst.msk [vmem:[%s3086 + $0x279] sm:$0xff] %vm109, %v3071
  %3137 = vst.msk [vmem:[%s3086 + $0x289] sm:$0xff] %vm109, %v3072
  %3138 = vst.msk [vmem:[%s3086 + $0x291] sm:$0xff] %vm109, %v3073
  %3139 = vst.msk [vmem:[%s3086 + $0x2a1] sm:$0xff] %vm109, %v3074
  %3140 = vst.msk [vmem:[%s3086 + $0x2a9] sm:$0xff] %vm109, %v3075
  %3141 = vst.msk [vmem:[%s3086 + $0x2b9] sm:$0xff] %vm109, %v3076
  %3142 = vst.msk [vmem:[%s3086 + $0x2c1] sm:$0xff] %vm109, %v3077
  %3143 = vst.msk [vmem:[%s3086 + $0x2d1] sm:$0xff] %vm109, %v3078
  %3144 = vst.msk [vmem:[%s3086 + $0x2d9] sm:$0xff] %vm109, %v3079
  %3145 = vst.msk [vmem:[%s3086 + $0x2e9] sm:$0xff] %vm109, %v3080
  %3146 = vst.msk [vmem:[%s3086 + $0x2f1] sm:$0xff] %vm109, %v3081
  %3147 = vst.msk [vmem:[%s3086 + $0x301] sm:$0xff] %vm109, %v3082
  %3148 = vst.msk [vmem:[%s3086 + $0x309] sm:$0xff] %vm109, %v3083
  %3149 = vst.msk [vmem:[%s3086 + $0x319] sm:$0xff] %vm109, %v3084
  %3150 = vst.msk [vmem:[%s3086 + $0x321] sm:$0xff] %vm109, %v3085
  %v3151 = vld [vmem:[#allocation4] sm:$0xff]
  %v3152 = vld [vmem:[#allocation4 + $0x8] sm:$0xff]
  %v3153 = vld [vmem:[#allocation4 + $0x18] sm:$0xff]
  %v3154 = vld [vmem:[#allocation4 + $0x20] sm:$0xff]
  %v3155 = vld [vmem:[#allocation4 + $0x30] sm:$0xff]
  %v3156 = vld [vmem:[#allocation4 + $0x38] sm:$0xff]
  %v3157 = vld [vmem:[#allocation4 + $0x48] sm:$0xff]
  %v3158 = vld [vmem:[#allocation4 + $0x50] sm:$0xff]
  %v3159 = vld [vmem:[#allocation4 + $0x60] sm:$0xff]
  %v3160 = vld [vmem:[#allocation4 + $0x68] sm:$0xff]
  %v3161 = vld [vmem:[#allocation4 + $0x78] sm:$0xff]
  %v3162 = vld [vmem:[#allocation4 + $0x80] sm:$0xff]
  %v3163 = vld [vmem:[#allocation4 + $0x90] sm:$0xff]
  %v3164 = vld [vmem:[#allocation4 + $0x98] sm:$0xff]
  %v3165 = vld [vmem:[#allocation4 + $0xa8] sm:$0xff]
  %v3166 = vld [vmem:[#allocation4 + $0xb0] sm:$0xff]
  %v3167 = vld [vmem:[#allocation4 + $0xc0] sm:$0xff]
  %v3168 = vld [vmem:[#allocation4 + $0xc8] sm:$0xff]
  %v3169 = vld [vmem:[#allocation4 + $0xd8] sm:$0xff]
  %v3170 = vld [vmem:[#allocation4 + $0xe0] sm:$0xff]
  %v3171 = vld [vmem:[#allocation4 + $0xf0] sm:$0xff]
  %v3172 = vld [vmem:[#allocation4 + $0xf8] sm:$0xff]
  %v3173 = vld [vmem:[#allocation4 + $0x108] sm:$0xff]
  %v3174 = vld [vmem:[#allocation4 + $0x110] sm:$0xff]
  %v3175 = vld [vmem:[#allocation4 + $0x120] sm:$0xff]
  %v3176 = vld [vmem:[#allocation4 + $0x128] sm:$0xff]
  %v3177 = vld [vmem:[#allocation4 + $0x138] sm:$0xff]
  %v3178 = vld [vmem:[#allocation4 + $0x140] sm:$0xff]
  %v3179 = vld [vmem:[#allocation4 + $0x150] sm:$0xff]
  %v3180 = vld [vmem:[#allocation4 + $0x158] sm:$0xff]
  %v3181 = vld [vmem:[#allocation4 + $0x168] sm:$0xff]
  %v3182 = vld [vmem:[#allocation4 + $0x170] sm:$0xff]
  %v3183 = vld [vmem:[#allocation4 + $0x1b0] sm:$0xff]
  %v3184 = vld [vmem:[#allocation4 + $0x1b8] sm:$0xff]
  %v3185 = vld [vmem:[#allocation4 + $0x1c8] sm:$0xff]
  %v3186 = vld [vmem:[#allocation4 + $0x1d0] sm:$0xff]
  %v3187 = vld [vmem:[#allocation4 + $0x1e0] sm:$0xff]
  %v3188 = vld [vmem:[#allocation4 + $0x1e8] sm:$0xff]
  %v3189 = vld [vmem:[#allocation4 + $0x1f8] sm:$0xff]
  %v3190 = vld [vmem:[#allocation4 + $0x200] sm:$0xff]
  %v3191 = vld [vmem:[#allocation4 + $0x210] sm:$0xff]
  %v3192 = vld [vmem:[#allocation4 + $0x218] sm:$0xff]
  %v3193 = vld [vmem:[#allocation4 + $0x228] sm:$0xff]
  %v3194 = vld [vmem:[#allocation4 + $0x230] sm:$0xff]
  %v3195 = vld [vmem:[#allocation4 + $0x240] sm:$0xff]
  %v3196 = vld [vmem:[#allocation4 + $0x248] sm:$0xff]
  %v3197 = vld [vmem:[#allocation4 + $0x258] sm:$0xff]
  %v3198 = vld [vmem:[#allocation4 + $0x260] sm:$0xff]
  %v3199 = vld [vmem:[#allocation4 + $0x270] sm:$0xff]
  %v3200 = vld [vmem:[#allocation4 + $0x278] sm:$0xff]
  %v3201 = vld [vmem:[#allocation4 + $0x288] sm:$0xff]
  %v3202 = vld [vmem:[#allocation4 + $0x290] sm:$0xff]
  %v3203 = vld [vmem:[#allocation4 + $0x2a0] sm:$0xff]
  %v3204 = vld [vmem:[#allocation4 + $0x2a8] sm:$0xff]
  %v3205 = vld [vmem:[#allocation4 + $0x2b8] sm:$0xff]
  %v3206 = vld [vmem:[#allocation4 + $0x2c0] sm:$0xff]
  %v3207 = vld [vmem:[#allocation4 + $0x2d0] sm:$0xff]
  %v3208 = vld [vmem:[#allocation4 + $0x2d8] sm:$0xff]
  %v3209 = vld [vmem:[#allocation4 + $0x2e8] sm:$0xff]
  %v3210 = vld [vmem:[#allocation4 + $0x2f0] sm:$0xff]
  %v3211 = vld [vmem:[#allocation4 + $0x300] sm:$0xff]
  %v3212 = vld [vmem:[#allocation4 + $0x308] sm:$0xff]
  %v3213 = vld [vmem:[#allocation4 + $0x318] sm:$0xff]
  %v3214 = vld [vmem:[#allocation4 + $0x320] sm:$0xff]
  %v3215 = vpack.c.bf16 %v3152, %v3151
  %v3216 = vpack.c.bf16 %v3154, %v3153
  %v3217 = vpack.c.bf16 %v3156, %v3155
  %v3218 = vpack.c.bf16 %v3158, %v3157
  %v3219 = vpack.c.bf16 %v3160, %v3159
  %v3220 = vpack.c.bf16 %v3162, %v3161
  %v3221 = vpack.c.bf16 %v3164, %v3163
  %v3222 = vpack.c.bf16 %v3166, %v3165
  %v3223 = vpack.c.bf16 %v3168, %v3167
  %v3224 = vpack.c.bf16 %v3170, %v3169
  %v3225 = vpack.c.bf16 %v3172, %v3171
  %v3226 = vpack.c.bf16 %v3174, %v3173
  %v3227 = vpack.c.bf16 %v3176, %v3175
  %v3228 = vpack.c.bf16 %v3178, %v3177
  %v3229 = vpack.c.bf16 %v3180, %v3179
  %v3230 = vpack.c.bf16 %v3182, %v3181
  %v3231 = vpack.c.bf16 %v3184, %v3183
  %v3232 = vpack.c.bf16 %v3186, %v3185
  %v3233 = vpack.c.bf16 %v3188, %v3187
  %v3234 = vpack.c.bf16 %v3190, %v3189
  %v3235 = vpack.c.bf16 %v3192, %v3191
  %v3236 = vpack.c.bf16 %v3194, %v3193
  %v3237 = vpack.c.bf16 %v3196, %v3195
  %v3238 = vpack.c.bf16 %v3198, %v3197
  %v3239 = vpack.c.bf16 %v3200, %v3199
  %v3240 = vpack.c.bf16 %v3202, %v3201
  %v3241 = vpack.c.bf16 %v3204, %v3203
  %v3242 = vpack.c.bf16 %v3206, %v3205
  %v3243 = vpack.c.bf16 %v3208, %v3207
  %v3244 = vpack.c.bf16 %v3210, %v3209
  %v3245 = vpack.c.bf16 %v3212, %v3211
  %v3246 = vpack.c.bf16 %v3214, %v3213
  %v3247 = vld [vmem:[#allocation4 + $0x1] sm:$0xff]
  %v3248 = vld [vmem:[#allocation4 + $0x9] sm:$0xff]
  %v3249 = vld [vmem:[#allocation4 + $0x19] sm:$0xff]
  %v3250 = vld [vmem:[#allocation4 + $0x21] sm:$0xff]
  %v3251 = vld [vmem:[#allocation4 + $0x31] sm:$0xff]
  %v3252 = vld [vmem:[#allocation4 + $0x39] sm:$0xff]
  %v3253 = vld [vmem:[#allocation4 + $0x49] sm:$0xff]
  %v3254 = vld [vmem:[#allocation4 + $0x51] sm:$0xff]
  %v3255 = vld [vmem:[#allocation4 + $0x61] sm:$0xff]
  %v3256 = vld [vmem:[#allocation4 + $0x69] sm:$0xff]
  %v3257 = vld [vmem:[#allocation4 + $0x79] sm:$0xff]
  %v3258 = vld [vmem:[#allocation4 + $0x81] sm:$0xff]
  %v3259 = vld [vmem:[#allocation4 + $0x91] sm:$0xff]
  %v3260 = vld [vmem:[#allocation4 + $0x99] sm:$0xff]
  %v3261 = vld [vmem:[#allocation4 + $0xa9] sm:$0xff]
  %v3262 = vld [vmem:[#allocation4 + $0xb1] sm:$0xff]
  %v3263 = vld [vmem:[#allocation4 + $0xc1] sm:$0xff]
  %v3264 = vld [vmem:[#allocation4 + $0xc9] sm:$0xff]
  %v3265 = vld [vmem:[#allocation4 + $0xd9] sm:$0xff]
  %v3266 = vld [vmem:[#allocation4 + $0xe1] sm:$0xff]
  %v3267 = vld [vmem:[#allocation4 + $0xf1] sm:$0xff]
  %v3268 = vld [vmem:[#allocation4 + $0xf9] sm:$0xff]
  %v3269 = vld [vmem:[#allocation4 + $0x109] sm:$0xff]
  %v3270 = vld [vmem:[#allocation4 + $0x111] sm:$0xff]
  %v3271 = vld [vmem:[#allocation4 + $0x121] sm:$0xff]
  %v3272 = vld [vmem:[#allocation4 + $0x129] sm:$0xff]
  %v3273 = vld [vmem:[#allocation4 + $0x139] sm:$0xff]
  %v3274 = vld [vmem:[#allocation4 + $0x141] sm:$0xff]
  %v3275 = vld [vmem:[#allocation4 + $0x151] sm:$0xff]
  %v3276 = vld [vmem:[#allocation4 + $0x159] sm:$0xff]
  %v3277 = vld [vmem:[#allocation4 + $0x169] sm:$0xff]
  %v3278 = vld [vmem:[#allocation4 + $0x171] sm:$0xff]
  %v3279 = vld [vmem:[#allocation4 + $0x1b1] sm:$0xff]
  %v3280 = vld [vmem:[#allocation4 + $0x1b9] sm:$0xff]
  %v3281 = vld [vmem:[#allocation4 + $0x1c9] sm:$0xff]
  %v3282 = vld [vmem:[#allocation4 + $0x1d1] sm:$0xff]
  %v3283 = vld [vmem:[#allocation4 + $0x1e1] sm:$0xff]
  %v3284 = vld [vmem:[#allocation4 + $0x1e9] sm:$0xff]
  %v3285 = vld [vmem:[#allocation4 + $0x1f9] sm:$0xff]
  %v3286 = vld [vmem:[#allocation4 + $0x201] sm:$0xff]
  %v3287 = vld [vmem:[#allocation4 + $0x211] sm:$0xff]
  %v3288 = vld [vmem:[#allocation4 + $0x219] sm:$0xff]
  %v3289 = vld [vmem:[#allocation4 + $0x229] sm:$0xff]
  %v3290 = vld [vmem:[#allocation4 + $0x231] sm:$0xff]
  %v3291 = vld [vmem:[#allocation4 + $0x241] sm:$0xff]
  %v3292 = vld [vmem:[#allocation4 + $0x249] sm:$0xff]
  %v3293 = vld [vmem:[#allocation4 + $0x259] sm:$0xff]
  %v3294 = vld [vmem:[#allocation4 + $0x261] sm:$0xff]
  %v3295 = vld [vmem:[#allocation4 + $0x271] sm:$0xff]
  %v3296 = vld [vmem:[#allocation4 + $0x279] sm:$0xff]
  %v3297 = vld [vmem:[#allocation4 + $0x289] sm:$0xff]
  %v3298 = vld [vmem:[#allocation4 + $0x291] sm:$0xff]
  %v3299 = vld [vmem:[#allocation4 + $0x2a1] sm:$0xff]
  %v3300 = vld [vmem:[#allocation4 + $0x2a9] sm:$0xff]
  %v3301 = vld [vmem:[#allocation4 + $0x2b9] sm:$0xff]
  %v3302 = vld [vmem:[#allocation4 + $0x2c1] sm:$0xff]
  %v3303 = vld [vmem:[#allocation4 + $0x2d1] sm:$0xff]
  %v3304 = vld [vmem:[#allocation4 + $0x2d9] sm:$0xff]
  %v3305 = vld [vmem:[#allocation4 + $0x2e9] sm:$0xff]
  %v3306 = vld [vmem:[#allocation4 + $0x2f1] sm:$0xff]
  %v3307 = vld [vmem:[#allocation4 + $0x301] sm:$0xff]
  %v3308 = vld [vmem:[#allocation4 + $0x309] sm:$0xff]
  %v3309 = vld [vmem:[#allocation4 + $0x319] sm:$0xff]
  %v3310 = vld [vmem:[#allocation4 + $0x321] sm:$0xff]
  %v3311 = vpack.c.bf16 %v3248, %v3247
  %v3312 = vpack.c.bf16 %v3250, %v3249
  %v3313 = vpack.c.bf16 %v3252, %v3251
  %v3314 = vpack.c.bf16 %v3254, %v3253
  %v3315 = vpack.c.bf16 %v3256, %v3255
  %v3316 = vpack.c.bf16 %v3258, %v3257
  %v3317 = vpack.c.bf16 %v3260, %v3259
  %v3318 = vpack.c.bf16 %v3262, %v3261
  %v3319 = vpack.c.bf16 %v3264, %v3263
  %v3320 = vpack.c.bf16 %v3266, %v3265
  %v3321 = vpack.c.bf16 %v3268, %v3267
  %v3322 = vpack.c.bf16 %v3270, %v3269
  %v3323 = vpack.c.bf16 %v3272, %v3271
  %v3324 = vpack.c.bf16 %v3274, %v3273
  %v3325 = vpack.c.bf16 %v3276, %v3275
  %v3326 = vpack.c.bf16 %v3278, %v3277
  %v3327 = vpack.c.bf16 %v3280, %v3279
  %v3328 = vpack.c.bf16 %v3282, %v3281
  %v3329 = vpack.c.bf16 %v3284, %v3283
  %v3330 = vpack.c.bf16 %v3286, %v3285
  %v3331 = vpack.c.bf16 %v3288, %v3287
  %v3332 = vpack.c.bf16 %v3290, %v3289
  %v3333 = vpack.c.bf16 %v3292, %v3291
  %v3334 = vpack.c.bf16 %v3294, %v3293
  %v3335 = vpack.c.bf16 %v3296, %v3295
  %v3336 = vpack.c.bf16 %v3298, %v3297
  %v3337 = vpack.c.bf16 %v3300, %v3299
  %v3338 = vpack.c.bf16 %v3302, %v3301
  %v3339 = vpack.c.bf16 %v3304, %v3303
  %v3340 = vpack.c.bf16 %v3306, %v3305
  %v3341 = vpack.c.bf16 %v3308, %v3307
  %v3342 = vpack.c.bf16 %v3310, %v3309
  %v3343 = vld [vmem:[#allocation4 + $0x2] sm:$0xff]
  %v3344 = vld [vmem:[#allocation4 + $0xa] sm:$0xff]
  %v3345 = vld [vmem:[#allocation4 + $0x1a] sm:$0xff]
  %v3346 = vld [vmem:[#allocation4 + $0x22] sm:$0xff]
  %v3347 = vld [vmem:[#allocation4 + $0x32] sm:$0xff]
  %v3348 = vld [vmem:[#allocation4 + $0x3a] sm:$0xff]
  %v3349 = vld [vmem:[#allocation4 + $0x4a] sm:$0xff]
  %v3350 = vld [vmem:[#allocation4 + $0x52] sm:$0xff]
  %v3351 = vld [vmem:[#allocation4 + $0x62] sm:$0xff]
  %v3352 = vld [vmem:[#allocation4 + $0x6a] sm:$0xff]
  %v3353 = vld [vmem:[#allocation4 + $0x7a] sm:$0xff]
  %v3354 = vld [vmem:[#allocation4 + $0x82] sm:$0xff]
  %v3355 = vld [vmem:[#allocation4 + $0x92] sm:$0xff]
  %v3356 = vld [vmem:[#allocation4 + $0x9a] sm:$0xff]
  %v3357 = vld [vmem:[#allocation4 + $0xaa] sm:$0xff]
  %v3358 = vld [vmem:[#allocation4 + $0xb2] sm:$0xff]
  %v3359 = vld [vmem:[#allocation4 + $0xc2] sm:$0xff]
  %v3360 = vld [vmem:[#allocation4 + $0xca] sm:$0xff]
  %v3361 = vld [vmem:[#allocation4 + $0xda] sm:$0xff]
  %v3362 = vld [vmem:[#allocation4 + $0xe2] sm:$0xff]
  %v3363 = vld [vmem:[#allocation4 + $0xf2] sm:$0xff]
  %v3364 = vld [vmem:[#allocation4 + $0xfa] sm:$0xff]
  %v3365 = vld [vmem:[#allocation4 + $0x10a] sm:$0xff]
  %v3366 = vld [vmem:[#allocation4 + $0x112] sm:$0xff]
  %v3367 = vld [vmem:[#allocation4 + $0x122] sm:$0xff]
  %v3368 = vld [vmem:[#allocation4 + $0x12a] sm:$0xff]
  %v3369 = vld [vmem:[#allocation4 + $0x13a] sm:$0xff]
  %v3370 = vld [vmem:[#allocation4 + $0x142] sm:$0xff]
  %v3371 = vld [vmem:[#allocation4 + $0x152] sm:$0xff]
  %v3372 = vld [vmem:[#allocation4 + $0x15a] sm:$0xff]
  %v3373 = vld [vmem:[#allocation4 + $0x16a] sm:$0xff]
  %v3374 = vld [vmem:[#allocation4 + $0x172] sm:$0xff]
  %v3375 = vld [vmem:[#allocation4 + $0x1b2] sm:$0xff]
  %v3376 = vld [vmem:[#allocation4 + $0x1ba] sm:$0xff]
  %v3377 = vld [vmem:[#allocation4 + $0x1ca] sm:$0xff]
  %v3378 = vld [vmem:[#allocation4 + $0x1d2] sm:$0xff]
  %v3379 = vld [vmem:[#allocation4 + $0x1e2] sm:$0xff]
  %v3380 = vld [vmem:[#allocation4 + $0x1ea] sm:$0xff]
  %v3381 = vld [vmem:[#allocation4 + $0x1fa] sm:$0xff]
  %v3382 = vld [vmem:[#allocation4 + $0x202] sm:$0xff]
  %v3383 = vld [vmem:[#allocation4 + $0x212] sm:$0xff]
  %v3384 = vld [vmem:[#allocation4 + $0x21a] sm:$0xff]
  %v3385 = vld [vmem:[#allocation4 + $0x22a] sm:$0xff]
  %v3386 = vld [vmem:[#allocation4 + $0x232] sm:$0xff]
  %v3387 = vld [vmem:[#allocation4 + $0x242] sm:$0xff]
  %v3388 = vld [vmem:[#allocation4 + $0x24a] sm:$0xff]
  %v3389 = vld [vmem:[#allocation4 + $0x25a] sm:$0xff]
  %v3390 = vld [vmem:[#allocation4 + $0x262] sm:$0xff]
  %v3391 = vld [vmem:[#allocation4 + $0x272] sm:$0xff]
  %v3392 = vld [vmem:[#allocation4 + $0x27a] sm:$0xff]
  %v3393 = vld [vmem:[#allocation4 + $0x28a] sm:$0xff]
  %v3394 = vld [vmem:[#allocation4 + $0x292] sm:$0xff]
  %v3395 = vld [vmem:[#allocation4 + $0x2a2] sm:$0xff]
  %v3396 = vld [vmem:[#allocation4 + $0x2aa] sm:$0xff]
  %v3397 = vld [vmem:[#allocation4 + $0x2ba] sm:$0xff]
  %v3398 = vld [vmem:[#allocation4 + $0x2c2] sm:$0xff]
  %v3399 = vld [vmem:[#allocation4 + $0x2d2] sm:$0xff]
  %v3400 = vld [vmem:[#allocation4 + $0x2da] sm:$0xff]
  %v3401 = vld [vmem:[#allocation4 + $0x2ea] sm:$0xff]
  %v3402 = vld [vmem:[#allocation4 + $0x2f2] sm:$0xff]
  %v3403 = vld [vmem:[#allocation4 + $0x302] sm:$0xff]
  %v3404 = vld [vmem:[#allocation4 + $0x30a] sm:$0xff]
  %v3405 = vld [vmem:[#allocation4 + $0x31a] sm:$0xff]
  %v3406 = vld [vmem:[#allocation4 + $0x322] sm:$0xff]
  %v3407 = vpack.c.bf16 %v3344, %v3343
  %v3408 = vpack.c.bf16 %v3346, %v3345
  %v3409 = vpack.c.bf16 %v3348, %v3347
  %v3410 = vpack.c.bf16 %v3350, %v3349
  %v3411 = vpack.c.bf16 %v3352, %v3351
  %v3412 = vpack.c.bf16 %v3354, %v3353
  %v3413 = vpack.c.bf16 %v3356, %v3355
  %v3414 = vpack.c.bf16 %v3358, %v3357
  %v3415 = vpack.c.bf16 %v3360, %v3359
  %v3416 = vpack.c.bf16 %v3362, %v3361
  %v3417 = vpack.c.bf16 %v3364, %v3363
  %v3418 = vpack.c.bf16 %v3366, %v3365
  %v3419 = vpack.c.bf16 %v3368, %v3367
  %v3420 = vpack.c.bf16 %v3370, %v3369
  %v3421 = vpack.c.bf16 %v3372, %v3371
  %v3422 = vpack.c.bf16 %v3374, %v3373
  %v3423 = vpack.c.bf16 %v3376, %v3375
  %v3424 = vpack.c.bf16 %v3378, %v3377
  %v3425 = vpack.c.bf16 %v3380, %v3379
  %v3426 = vpack.c.bf16 %v3382, %v3381
  %v3427 = vpack.c.bf16 %v3384, %v3383
  %v3428 = vpack.c.bf16 %v3386, %v3385
  %v3429 = vpack.c.bf16 %v3388, %v3387
  %v3430 = vpack.c.bf16 %v3390, %v3389
  %v3431 = vpack.c.bf16 %v3392, %v3391
  %v3432 = vpack.c.bf16 %v3394, %v3393
  %v3433 = vpack.c.bf16 %v3396, %v3395
  %v3434 = vpack.c.bf16 %v3398, %v3397
  %v3435 = vpack.c.bf16 %v3400, %v3399
  %v3436 = vpack.c.bf16 %v3402, %v3401
  %v3437 = vpack.c.bf16 %v3404, %v3403
  %v3438 = vpack.c.bf16 %v3406, %v3405
  %v3439 = vld [vmem:[%s3086] sm:$0xff]
  %v3440 = vld [vmem:[%s3086 + $0x8] sm:$0xff]
  %v3441 = vld [vmem:[%s3086 + $0x18] sm:$0xff]
  %v3442 = vld [vmem:[%s3086 + $0x20] sm:$0xff]
  %v3443 = vld [vmem:[%s3086 + $0x30] sm:$0xff]
  %v3444 = vld [vmem:[%s3086 + $0x38] sm:$0xff]
  %v3445 = vld [vmem:[%s3086 + $0x48] sm:$0xff]
  %v3446 = vld [vmem:[%s3086 + $0x50] sm:$0xff]
  %v3447 = vld [vmem:[%s3086 + $0x60] sm:$0xff]
  %v3448 = vld [vmem:[%s3086 + $0x68] sm:$0xff]
  %v3449 = vld [vmem:[%s3086 + $0x78] sm:$0xff]
  %v3450 = vld [vmem:[%s3086 + $0x80] sm:$0xff]
  %v3451 = vld [vmem:[%s3086 + $0x90] sm:$0xff]
  %v3452 = vld [vmem:[%s3086 + $0x98] sm:$0xff]
  %v3453 = vld [vmem:[%s3086 + $0xa8] sm:$0xff]
  %v3454 = vld [vmem:[%s3086 + $0xb0] sm:$0xff]
  %v3455 = vld [vmem:[%s3086 + $0xc0] sm:$0xff]
  %v3456 = vld [vmem:[%s3086 + $0xc8] sm:$0xff]
  %v3457 = vld [vmem:[%s3086 + $0xd8] sm:$0xff]
  %v3458 = vld [vmem:[%s3086 + $0xe0] sm:$0xff]
  %v3459 = vld [vmem:[%s3086 + $0xf0] sm:$0xff]
  %v3460 = vld [vmem:[%s3086 + $0xf8] sm:$0xff]
  %v3461 = vld [vmem:[%s3086 + $0x108] sm:$0xff]
  %v3462 = vld [vmem:[%s3086 + $0x110] sm:$0xff]
  %v3463 = vld [vmem:[%s3086 + $0x120] sm:$0xff]
  %v3464 = vld [vmem:[%s3086 + $0x128] sm:$0xff]
  %v3465 = vld [vmem:[%s3086 + $0x138] sm:$0xff]
  %v3466 = vld [vmem:[%s3086 + $0x140] sm:$0xff]
  %v3467 = vld [vmem:[%s3086 + $0x150] sm:$0xff]
  %v3468 = vld [vmem:[%s3086 + $0x158] sm:$0xff]
  %v3469 = vld [vmem:[%s3086 + $0x168] sm:$0xff]
  %v3470 = vld [vmem:[%s3086 + $0x170] sm:$0xff]
  %v3471 = vld [vmem:[%s3086 + $0x1b0] sm:$0xff]
  %v3472 = vld [vmem:[%s3086 + $0x1b8] sm:$0xff]
  %v3473 = vld [vmem:[%s3086 + $0x1c8] sm:$0xff]
  %v3474 = vld [vmem:[%s3086 + $0x1d0] sm:$0xff]
  %v3475 = vld [vmem:[%s3086 + $0x1e0] sm:$0xff]
  %v3476 = vld [vmem:[%s3086 + $0x1e8] sm:$0xff]
  %v3477 = vld [vmem:[%s3086 + $0x1f8] sm:$0xff]
  %v3478 = vld [vmem:[%s3086 + $0x200] sm:$0xff]
  %v3479 = vld [vmem:[%s3086 + $0x210] sm:$0xff]
  %v3480 = vld [vmem:[%s3086 + $0x218] sm:$0xff]
  %v3481 = vld [vmem:[%s3086 + $0x228] sm:$0xff]
  %v3482 = vld [vmem:[%s3086 + $0x230] sm:$0xff]
  %v3483 = vld [vmem:[%s3086 + $0x240] sm:$0xff]
  %v3484 = vld [vmem:[%s3086 + $0x248] sm:$0xff]
  %v3485 = vld [vmem:[%s3086 + $0x258] sm:$0xff]
  %v3486 = vld [vmem:[%s3086 + $0x260] sm:$0xff]
  %v3487 = vld [vmem:[%s3086 + $0x270] sm:$0xff]
  %v3488 = vld [vmem:[%s3086 + $0x278] sm:$0xff]
  %v3489 = vld [vmem:[%s3086 + $0x288] sm:$0xff]
  %v3490 = vld [vmem:[%s3086 + $0x290] sm:$0xff]
  %v3491 = vld [vmem:[%s3086 + $0x2a0] sm:$0xff]
  %v3492 = vld [vmem:[%s3086 + $0x2a8] sm:$0xff]
  %v3493 = vld [vmem:[%s3086 + $0x2b8] sm:$0xff]
  %v3494 = vld [vmem:[%s3086 + $0x2c0] sm:$0xff]
  %v3495 = vld [vmem:[%s3086 + $0x2d0] sm:$0xff]
  %v3496 = vld [vmem:[%s3086 + $0x2d8] sm:$0xff]
  %v3497 = vld [vmem:[%s3086 + $0x2e8] sm:$0xff]
  %v3498 = vld [vmem:[%s3086 + $0x2f0] sm:$0xff]
  %v3499 = vld [vmem:[%s3086 + $0x300] sm:$0xff]
  %v3500 = vld [vmem:[%s3086 + $0x308] sm:$0xff]
  %v3501 = vld [vmem:[%s3086 + $0x318] sm:$0xff]
  %v3502 = vld [vmem:[%s3086 + $0x320] sm:$0xff]
  %v3503 = vpack.c.bf16 %v3440, %v3439
  %v3504 = vpack.c.bf16 %v3442, %v3441
  %v3505 = vpack.c.bf16 %v3444, %v3443
  %v3506 = vpack.c.bf16 %v3446, %v3445
  %v3507 = vpack.c.bf16 %v3448, %v3447
  %v3508 = vpack.c.bf16 %v3450, %v3449
  %v3509 = vpack.c.bf16 %v3452, %v3451
  %v3510 = vpack.c.bf16 %v3454, %v3453
  %v3511 = vpack.c.bf16 %v3456, %v3455
  %v3512 = vpack.c.bf16 %v3458, %v3457
  %v3513 = vpack.c.bf16 %v3460, %v3459
  %v3514 = vpack.c.bf16 %v3462, %v3461
  %v3515 = vpack.c.bf16 %v3464, %v3463
  %v3516 = vpack.c.bf16 %v3466, %v3465
  %v3517 = vpack.c.bf16 %v3468, %v3467
  %v3518 = vpack.c.bf16 %v3470, %v3469
  %v3519 = vpack.c.bf16 %v3472, %v3471
  %v3520 = vpack.c.bf16 %v3474, %v3473
  %v3521 = vpack.c.bf16 %v3476, %v3475
  %v3522 = vpack.c.bf16 %v3478, %v3477
  %v3523 = vpack.c.bf16 %v3480, %v3479
  %v3524 = vpack.c.bf16 %v3482, %v3481
  %v3525 = vpack.c.bf16 %v3484, %v3483
  %v3526 = vpack.c.bf16 %v3486, %v3485
  %v3527 = vpack.c.bf16 %v3488, %v3487
  %v3528 = vpack.c.bf16 %v3490, %v3489
  %v3529 = vpack.c.bf16 %v3492, %v3491
  %v3530 = vpack.c.bf16 %v3494, %v3493
  %v3531 = vpack.c.bf16 %v3496, %v3495
  %v3532 = vpack.c.bf16 %v3498, %v3497
  %v3533 = vpack.c.bf16 %v3500, %v3499
  %v3534 = vpack.c.bf16 %v3502, %v3501
  %v3535 = vld [vmem:[%s3086 + $0x1] sm:$0xff]
  %v3536 = vld [vmem:[%s3086 + $0x9] sm:$0xff]
  %v3537 = vld [vmem:[%s3086 + $0x19] sm:$0xff]
  %v3538 = vld [vmem:[%s3086 + $0x21] sm:$0xff]
  %v3539 = vld [vmem:[%s3086 + $0x31] sm:$0xff]
  %v3540 = vld [vmem:[%s3086 + $0x39] sm:$0xff]
  %v3541 = vld [vmem:[%s3086 + $0x49] sm:$0xff]
  %v3542 = vld [vmem:[%s3086 + $0x51] sm:$0xff]
  %v3543 = vld [vmem:[%s3086 + $0x61] sm:$0xff]
  %v3544 = vld [vmem:[%s3086 + $0x69] sm:$0xff]
  %v3545 = vld [vmem:[%s3086 + $0x79] sm:$0xff]
  %v3546 = vld [vmem:[%s3086 + $0x81] sm:$0xff]
  %v3547 = vld [vmem:[%s3086 + $0x91] sm:$0xff]
  %v3548 = vld [vmem:[%s3086 + $0x99] sm:$0xff]
  %v3549 = vld [vmem:[%s3086 + $0xa9] sm:$0xff]
  %v3550 = vld [vmem:[%s3086 + $0xb1] sm:$0xff]
  %v3551 = vld [vmem:[%s3086 + $0xc1] sm:$0xff]
  %v3552 = vld [vmem:[%s3086 + $0xc9] sm:$0xff]
  %v3553 = vld [vmem:[%s3086 + $0xd9] sm:$0xff]
  %v3554 = vld [vmem:[%s3086 + $0xe1] sm:$0xff]
  %v3555 = vld [vmem:[%s3086 + $0xf1] sm:$0xff]
  %v3556 = vld [vmem:[%s3086 + $0xf9] sm:$0xff]
  %v3557 = vld [vmem:[%s3086 + $0x109] sm:$0xff]
  %v3558 = vld [vmem:[%s3086 + $0x111] sm:$0xff]
  %v3559 = vld [vmem:[%s3086 + $0x121] sm:$0xff]
  %v3560 = vld [vmem:[%s3086 + $0x129] sm:$0xff]
  %v3561 = vld [vmem:[%s3086 + $0x139] sm:$0xff]
  %v3562 = vld [vmem:[%s3086 + $0x141] sm:$0xff]
  %v3563 = vld [vmem:[%s3086 + $0x151] sm:$0xff]
  %v3564 = vld [vmem:[%s3086 + $0x159] sm:$0xff]
  %v3565 = vld [vmem:[%s3086 + $0x169] sm:$0xff]
  %v3566 = vld [vmem:[%s3086 + $0x171] sm:$0xff]
  %v3567 = vld [vmem:[%s3086 + $0x1b1] sm:$0xff]
  %v3568 = vld [vmem:[%s3086 + $0x1b9] sm:$0xff]
  %v3569 = vld [vmem:[%s3086 + $0x1c9] sm:$0xff]
  %v3570 = vld [vmem:[%s3086 + $0x1d1] sm:$0xff]
  %v3571 = vld [vmem:[%s3086 + $0x1e1] sm:$0xff]
  %v3572 = vld [vmem:[%s3086 + $0x1e9] sm:$0xff]
  %v3573 = vld [vmem:[%s3086 + $0x1f9] sm:$0xff]
  %v3574 = vld [vmem:[%s3086 + $0x201] sm:$0xff]
  %v3575 = vld [vmem:[%s3086 + $0x211] sm:$0xff]
  %v3576 = vld [vmem:[%s3086 + $0x219] sm:$0xff]
  %v3577 = vld [vmem:[%s3086 + $0x229] sm:$0xff]
  %v3578 = vld [vmem:[%s3086 + $0x231] sm:$0xff]
  %v3579 = vld [vmem:[%s3086 + $0x241] sm:$0xff]
  %v3580 = vld [vmem:[%s3086 + $0x249] sm:$0xff]
  %v3581 = vld [vmem:[%s3086 + $0x259] sm:$0xff]
  %v3582 = vld [vmem:[%s3086 + $0x261] sm:$0xff]
  %v3583 = vld [vmem:[%s3086 + $0x271] sm:$0xff]
  %v3584 = vld [vmem:[%s3086 + $0x279] sm:$0xff]
  %v3585 = vld [vmem:[%s3086 + $0x289] sm:$0xff]
  %v3586 = vld [vmem:[%s3086 + $0x291] sm:$0xff]
  %v3587 = vld [vmem:[%s3086 + $0x2a1] sm:$0xff]
  %v3588 = vld [vmem:[%s3086 + $0x2a9] sm:$0xff]
  %v3589 = vld [vmem:[%s3086 + $0x2b9] sm:$0xff]
  %v3590 = vld [vmem:[%s3086 + $0x2c1] sm:$0xff]
  %v3591 = vld [vmem:[%s3086 + $0x2d1] sm:$0xff]
  %v3592 = vld [vmem:[%s3086 + $0x2d9] sm:$0xff]
  %v3593 = vld [vmem:[%s3086 + $0x2e9] sm:$0xff]
  %v3594 = vld [vmem:[%s3086 + $0x2f1] sm:$0xff]
  %v3595 = vld [vmem:[%s3086 + $0x301] sm:$0xff]
  %v3596 = vld [vmem:[%s3086 + $0x309] sm:$0xff]
  %v3597 = vld [vmem:[%s3086 + $0x319] sm:$0xff]
  %v3598 = vld [vmem:[%s3086 + $0x321] sm:$0xff]
  %v3599 = vpack.c.bf16 %v3536, %v3535
  %v3600 = vpack.c.bf16 %v3538, %v3537
  %v3601 = vpack.c.bf16 %v3540, %v3539
  %v3602 = vpack.c.bf16 %v3542, %v3541
  %v3603 = vpack.c.bf16 %v3544, %v3543
  %v3604 = vpack.c.bf16 %v3546, %v3545
  %v3605 = vpack.c.bf16 %v3548, %v3547
  %v3606 = vpack.c.bf16 %v3550, %v3549
  %v3607 = vpack.c.bf16 %v3552, %v3551
  %v3608 = vpack.c.bf16 %v3554, %v3553
  %v3609 = vpack.c.bf16 %v3556, %v3555
  %v3610 = vpack.c.bf16 %v3558, %v3557
  %v3611 = vpack.c.bf16 %v3560, %v3559
  %v3612 = vpack.c.bf16 %v3562, %v3561
  %v3613 = vpack.c.bf16 %v3564, %v3563
  %v3614 = vpack.c.bf16 %v3566, %v3565
  %v3615 = vpack.c.bf16 %v3568, %v3567
  %v3616 = vpack.c.bf16 %v3570, %v3569
  %v3617 = vpack.c.bf16 %v3572, %v3571
  %v3618 = vpack.c.bf16 %v3574, %v3573
  %v3619 = vpack.c.bf16 %v3576, %v3575
  %v3620 = vpack.c.bf16 %v3578, %v3577
  %v3621 = vpack.c.bf16 %v3580, %v3579
  %v3622 = vpack.c.bf16 %v3582, %v3581
  %v3623 = vpack.c.bf16 %v3584, %v3583
  %v3624 = vpack.c.bf16 %v3586, %v3585
  %v3625 = vpack.c.bf16 %v3588, %v3587
  %v3626 = vpack.c.bf16 %v3590, %v3589
  %v3627 = vpack.c.bf16 %v3592, %v3591
  %v3628 = vpack.c.bf16 %v3594, %v3593
  %v3629 = vpack.c.bf16 %v3596, %v3595
  %v3630 = vpack.c.bf16 %v3598, %v3597
  %v3631 = vld [vmem:[%s3086 + $0x2] sm:$0xff]
  %v3632 = vld [vmem:[%s3086 + $0xa] sm:$0xff]
  %v3633 = vld [vmem:[%s3086 + $0x1a] sm:$0xff]
  %v3634 = vld [vmem:[%s3086 + $0x22] sm:$0xff]
  %v3635 = vld [vmem:[%s3086 + $0x32] sm:$0xff]
  %v3636 = vld [vmem:[%s3086 + $0x3a] sm:$0xff]
  %v3637 = vld [vmem:[%s3086 + $0x4a] sm:$0xff]
  %v3638 = vld [vmem:[%s3086 + $0x52] sm:$0xff]
  %v3639 = vld [vmem:[%s3086 + $0x62] sm:$0xff]
  %v3640 = vld [vmem:[%s3086 + $0x6a] sm:$0xff]
  %v3641 = vld [vmem:[%s3086 + $0x7a] sm:$0xff]
  %v3642 = vld [vmem:[%s3086 + $0x82] sm:$0xff]
  %v3643 = vld [vmem:[%s3086 + $0x92] sm:$0xff]
  %v3644 = vld [vmem:[%s3086 + $0x9a] sm:$0xff]
  %v3645 = vld [vmem:[%s3086 + $0xaa] sm:$0xff]
  %v3646 = vld [vmem:[%s3086 + $0xb2] sm:$0xff]
  %v3647 = vld [vmem:[%s3086 + $0xc2] sm:$0xff]
  %v3648 = vld [vmem:[%s3086 + $0xca] sm:$0xff]
  %v3649 = vld [vmem:[%s3086 + $0xda] sm:$0xff]
  %v3650 = vld [vmem:[%s3086 + $0xe2] sm:$0xff]
  %v3651 = vld [vmem:[%s3086 + $0xf2] sm:$0xff]
  %v3652 = vld [vmem:[%s3086 + $0xfa] sm:$0xff]
  %v3653 = vld [vmem:[%s3086 + $0x10a] sm:$0xff]
  %v3654 = vld [vmem:[%s3086 + $0x112] sm:$0xff]
  %v3655 = vld [vmem:[%s3086 + $0x122] sm:$0xff]
  %v3656 = vld [vmem:[%s3086 + $0x12a] sm:$0xff]
  %v3657 = vld [vmem:[%s3086 + $0x13a] sm:$0xff]
  %v3658 = vld [vmem:[%s3086 + $0x142] sm:$0xff]
  %v3659 = vld [vmem:[%s3086 + $0x152] sm:$0xff]
  %v3660 = vld [vmem:[%s3086 + $0x15a] sm:$0xff]
  %v3661 = vld [vmem:[%s3086 + $0x16a] sm:$0xff]
  %v3662 = vld [vmem:[%s3086 + $0x172] sm:$0xff]
  %v3663 = vld [vmem:[%s3086 + $0x1b2] sm:$0xff]
  %v3664 = vld [vmem:[%s3086 + $0x1ba] sm:$0xff]
  %v3665 = vld [vmem:[%s3086 + $0x1ca] sm:$0xff]
  %v3666 = vld [vmem:[%s3086 + $0x1d2] sm:$0xff]
  %v3667 = vld [vmem:[%s3086 + $0x1e2] sm:$0xff]
  %v3668 = vld [vmem:[%s3086 + $0x1ea] sm:$0xff]
  %v3669 = vld [vmem:[%s3086 + $0x1fa] sm:$0xff]
  %v3670 = vld [vmem:[%s3086 + $0x202] sm:$0xff]
  %v3671 = vld [vmem:[%s3086 + $0x212] sm:$0xff]
  %v3672 = vld [vmem:[%s3086 + $0x21a] sm:$0xff]
  %v3673 = vld [vmem:[%s3086 + $0x22a] sm:$0xff]
  %v3674 = vld [vmem:[%s3086 + $0x232] sm:$0xff]
  %v3675 = vld [vmem:[%s3086 + $0x242] sm:$0xff]
  %v3676 = vld [vmem:[%s3086 + $0x24a] sm:$0xff]
  %v3677 = vld [vmem:[%s3086 + $0x25a] sm:$0xff]
  %v3678 = vld [vmem:[%s3086 + $0x262] sm:$0xff]
  %v3679 = vld [vmem:[%s3086 + $0x272] sm:$0xff]
  %v3680 = vld [vmem:[%s3086 + $0x27a] sm:$0xff]
  %v3681 = vld [vmem:[%s3086 + $0x28a] sm:$0xff]
  %v3682 = vld [vmem:[%s3086 + $0x292] sm:$0xff]
  %v3683 = vld [vmem:[%s3086 + $0x2a2] sm:$0xff]
  %v3684 = vld [vmem:[%s3086 + $0x2aa] sm:$0xff]
  %v3685 = vld [vmem:[%s3086 + $0x2ba] sm:$0xff]
  %v3686 = vld [vmem:[%s3086 + $0x2c2] sm:$0xff]
  %v3687 = vld [vmem:[%s3086 + $0x2d2] sm:$0xff]
  %v3688 = vld [vmem:[%s3086 + $0x2da] sm:$0xff]
  %v3689 = vld [vmem:[%s3086 + $0x2ea] sm:$0xff]
  %v3690 = vld [vmem:[%s3086 + $0x2f2] sm:$0xff]
  %v3691 = vld [vmem:[%s3086 + $0x302] sm:$0xff]
  %v3692 = vld [vmem:[%s3086 + $0x30a] sm:$0xff]
  %v3693 = vld [vmem:[%s3086 + $0x31a] sm:$0xff]
  %v3694 = vld [vmem:[%s3086 + $0x322] sm:$0xff]
  %v3695 = vpack.c.bf16 %v3632, %v3631
  %v3696 = vpack.c.bf16 %v3634, %v3633
  %v3697 = vpack.c.bf16 %v3636, %v3635
  %v3698 = vpack.c.bf16 %v3638, %v3637
  %v3699 = vpack.c.bf16 %v3640, %v3639
  %v3700 = vpack.c.bf16 %v3642, %v3641
  %v3701 = vpack.c.bf16 %v3644, %v3643
  %v3702 = vpack.c.bf16 %v3646, %v3645
  %v3703 = vpack.c.bf16 %v3648, %v3647
  %v3704 = vpack.c.bf16 %v3650, %v3649
  %v3705 = vpack.c.bf16 %v3652, %v3651
  %v3706 = vpack.c.bf16 %v3654, %v3653
  %v3707 = vpack.c.bf16 %v3656, %v3655
  %v3708 = vpack.c.bf16 %v3658, %v3657
  %v3709 = vpack.c.bf16 %v3660, %v3659
  %v3710 = vpack.c.bf16 %v3662, %v3661
  %v3711 = vpack.c.bf16 %v3664, %v3663
  %v3712 = vpack.c.bf16 %v3666, %v3665
  %v3713 = vpack.c.bf16 %v3668, %v3667
  %v3714 = vpack.c.bf16 %v3670, %v3669
  %v3715 = vpack.c.bf16 %v3672, %v3671
  %v3716 = vpack.c.bf16 %v3674, %v3673
  %v3717 = vpack.c.bf16 %v3676, %v3675
  %v3718 = vpack.c.bf16 %v3678, %v3677
  %v3719 = vpack.c.bf16 %v3680, %v3679
  %v3720 = vpack.c.bf16 %v3682, %v3681
  %v3721 = vpack.c.bf16 %v3684, %v3683
  %v3722 = vpack.c.bf16 %v3686, %v3685
  %v3723 = vpack.c.bf16 %v3688, %v3687
  %v3724 = vpack.c.bf16 %v3690, %v3689
  %v3725 = vpack.c.bf16 %v3692, %v3691
  %v3726 = vpack.c.bf16 %v3694, %v3693
  %s3727 = scalar_lea.vmem [#allocation4], 48
  %v3728 = vld [vmem:[%s3727] sm:$0xff]
  %v3729 = vld [vmem:[%s3727 + $0x8] sm:$0xff]
  %v3730 = vld [vmem:[%s3727 + $0x18] sm:$0xff]
  %v3731 = vld [vmem:[%s3727 + $0x20] sm:$0xff]
  %v3732 = vld [vmem:[%s3727 + $0x30] sm:$0xff]
  %v3733 = vld [vmem:[%s3727 + $0x38] sm:$0xff]
  %v3734 = vld [vmem:[%s3727 + $0x48] sm:$0xff]
  %v3735 = vld [vmem:[%s3727 + $0x50] sm:$0xff]
  %v3736 = vld [vmem:[%s3727 + $0x60] sm:$0xff]
  %v3737 = vld [vmem:[%s3727 + $0x68] sm:$0xff]
  %v3738 = vld [vmem:[%s3727 + $0x78] sm:$0xff]
  %v3739 = vld [vmem:[%s3727 + $0x80] sm:$0xff]
  %v3740 = vld [vmem:[%s3727 + $0x90] sm:$0xff]
  %v3741 = vld [vmem:[%s3727 + $0x98] sm:$0xff]
  %v3742 = vld [vmem:[%s3727 + $0xa8] sm:$0xff]
  %v3743 = vld [vmem:[%s3727 + $0xb0] sm:$0xff]
  %v3744 = vld [vmem:[%s3727 + $0xc0] sm:$0xff]
  %v3745 = vld [vmem:[%s3727 + $0xc8] sm:$0xff]
  %v3746 = vld [vmem:[%s3727 + $0xd8] sm:$0xff]
  %v3747 = vld [vmem:[%s3727 + $0xe0] sm:$0xff]
  %v3748 = vld [vmem:[%s3727 + $0xf0] sm:$0xff]
  %v3749 = vld [vmem:[%s3727 + $0xf8] sm:$0xff]
  %v3750 = vld [vmem:[%s3727 + $0x108] sm:$0xff]
  %v3751 = vld [vmem:[%s3727 + $0x110] sm:$0xff]
  %v3752 = vld [vmem:[%s3727 + $0x120] sm:$0xff]
  %v3753 = vld [vmem:[%s3727 + $0x128] sm:$0xff]
  %v3754 = vld [vmem:[%s3727 + $0x138] sm:$0xff]
  %v3755 = vld [vmem:[%s3727 + $0x140] sm:$0xff]
  %v3756 = vld [vmem:[%s3727 + $0x150] sm:$0xff]
  %v3757 = vld [vmem:[%s3727 + $0x158] sm:$0xff]
  %v3758 = vld [vmem:[%s3727 + $0x168] sm:$0xff]
  %v3759 = vld [vmem:[%s3727 + $0x170] sm:$0xff]
  %v3760 = vld [vmem:[%s3727 + $0x1b0] sm:$0xff]
  %v3761 = vld [vmem:[%s3727 + $0x1b8] sm:$0xff]
  %v3762 = vld [vmem:[%s3727 + $0x1c8] sm:$0xff]
  %v3763 = vld [vmem:[%s3727 + $0x1d0] sm:$0xff]
  %v3764 = vld [vmem:[%s3727 + $0x1e0] sm:$0xff]
  %v3765 = vld [vmem:[%s3727 + $0x1e8] sm:$0xff]
  %v3766 = vld [vmem:[%s3727 + $0x1f8] sm:$0xff]
  %v3767 = vld [vmem:[%s3727 + $0x200] sm:$0xff]
  %v3768 = vld [vmem:[%s3727 + $0x210] sm:$0xff]
  %v3769 = vld [vmem:[%s3727 + $0x218] sm:$0xff]
  %v3770 = vld [vmem:[%s3727 + $0x228] sm:$0xff]
  %v3771 = vld [vmem:[%s3727 + $0x230] sm:$0xff]
  %v3772 = vld [vmem:[%s3727 + $0x240] sm:$0xff]
  %v3773 = vld [vmem:[%s3727 + $0x248] sm:$0xff]
  %v3774 = vld [vmem:[%s3727 + $0x258] sm:$0xff]
  %v3775 = vld [vmem:[%s3727 + $0x260] sm:$0xff]
  %v3776 = vld [vmem:[%s3727 + $0x270] sm:$0xff]
  %v3777 = vld [vmem:[%s3727 + $0x278] sm:$0xff]
  %v3778 = vld [vmem:[%s3727 + $0x288] sm:$0xff]
  %v3779 = vld [vmem:[%s3727 + $0x290] sm:$0xff]
  %v3780 = vld [vmem:[%s3727 + $0x2a0] sm:$0xff]
  %v3781 = vld [vmem:[%s3727 + $0x2a8] sm:$0xff]
  %v3782 = vld [vmem:[%s3727 + $0x2b8] sm:$0xff]
  %v3783 = vld [vmem:[%s3727 + $0x2c0] sm:$0xff]
  %v3784 = vld [vmem:[%s3727 + $0x2d0] sm:$0xff]
  %v3785 = vld [vmem:[%s3727 + $0x2d8] sm:$0xff]
  %v3786 = vld [vmem:[%s3727 + $0x2e8] sm:$0xff]
  %v3787 = vld [vmem:[%s3727 + $0x2f0] sm:$0xff]
  %v3788 = vld [vmem:[%s3727 + $0x300] sm:$0xff]
  %v3789 = vld [vmem:[%s3727 + $0x308] sm:$0xff]
  %v3790 = vld [vmem:[%s3727 + $0x318] sm:$0xff]
  %v3791 = vld [vmem:[%s3727 + $0x320] sm:$0xff]
  %v3792 = vpack.c.bf16 %v3729, %v3728
  %v3793 = vpack.c.bf16 %v3731, %v3730
  %v3794 = vpack.c.bf16 %v3733, %v3732
  %v3795 = vpack.c.bf16 %v3735, %v3734
  %v3796 = vpack.c.bf16 %v3737, %v3736
  %v3797 = vpack.c.bf16 %v3739, %v3738
  %v3798 = vpack.c.bf16 %v3741, %v3740
  %v3799 = vpack.c.bf16 %v3743, %v3742
  %v3800 = vpack.c.bf16 %v3745, %v3744
  %v3801 = vpack.c.bf16 %v3747, %v3746
  %v3802 = vpack.c.bf16 %v3749, %v3748
  %v3803 = vpack.c.bf16 %v3751, %v3750
  %v3804 = vpack.c.bf16 %v3753, %v3752
  %v3805 = vpack.c.bf16 %v3755, %v3754
  %v3806 = vpack.c.bf16 %v3757, %v3756
  %v3807 = vpack.c.bf16 %v3759, %v3758
  %v3808 = vpack.c.bf16 %v3761, %v3760
  %v3809 = vpack.c.bf16 %v3763, %v3762
  %v3810 = vpack.c.bf16 %v3765, %v3764
  %v3811 = vpack.c.bf16 %v3767, %v3766
  %v3812 = vpack.c.bf16 %v3769, %v3768
  %v3813 = vpack.c.bf16 %v3771, %v3770
  %v3814 = vpack.c.bf16 %v3773, %v3772
  %v3815 = vpack.c.bf16 %v3775, %v3774
  %v3816 = vpack.c.bf16 %v3777, %v3776
  %v3817 = vpack.c.bf16 %v3779, %v3778
  %v3818 = vpack.c.bf16 %v3781, %v3780
  %v3819 = vpack.c.bf16 %v3783, %v3782
  %v3820 = vpack.c.bf16 %v3785, %v3784
  %v3821 = vpack.c.bf16 %v3787, %v3786
  %v3822 = vpack.c.bf16 %v3789, %v3788
  %v3823 = vpack.c.bf16 %v3791, %v3790
  %v3824 = vld [vmem:[%s3727 + $0x1] sm:$0xff]
  %v3825 = vld [vmem:[%s3727 + $0x9] sm:$0xff]
  %v3826 = vld [vmem:[%s3727 + $0x19] sm:$0xff]
  %v3827 = vld [vmem:[%s3727 + $0x21] sm:$0xff]
  %v3828 = vld [vmem:[%s3727 + $0x31] sm:$0xff]
  %v3829 = vld [vmem:[%s3727 + $0x39] sm:$0xff]
  %v3830 = vld [vmem:[%s3727 + $0x49] sm:$0xff]
  %v3831 = vld [vmem:[%s3727 + $0x51] sm:$0xff]
  %v3832 = vld [vmem:[%s3727 + $0x61] sm:$0xff]
  %v3833 = vld [vmem:[%s3727 + $0x69] sm:$0xff]
  %v3834 = vld [vmem:[%s3727 + $0x79] sm:$0xff]
  %v3835 = vld [vmem:[%s3727 + $0x81] sm:$0xff]
  %v3836 = vld [vmem:[%s3727 + $0x91] sm:$0xff]
  %v3837 = vld [vmem:[%s3727 + $0x99] sm:$0xff]
  %v3838 = vld [vmem:[%s3727 + $0xa9] sm:$0xff]
  %v3839 = vld [vmem:[%s3727 + $0xb1] sm:$0xff]
  %v3840 = vld [vmem:[%s3727 + $0xc1] sm:$0xff]
  %v3841 = vld [vmem:[%s3727 + $0xc9] sm:$0xff]
  %v3842 = vld [vmem:[%s3727 + $0xd9] sm:$0xff]
  %v3843 = vld [vmem:[%s3727 + $0xe1] sm:$0xff]
  %v3844 = vld [vmem:[%s3727 + $0xf1] sm:$0xff]
  %v3845 = vld [vmem:[%s3727 + $0xf9] sm:$0xff]
  %v3846 = vld [vmem:[%s3727 + $0x109] sm:$0xff]
  %v3847 = vld [vmem:[%s3727 + $0x111] sm:$0xff]
  %v3848 = vld [vmem:[%s3727 + $0x121] sm:$0xff]
  %v3849 = vld [vmem:[%s3727 + $0x129] sm:$0xff]
  %v3850 = vld [vmem:[%s3727 + $0x139] sm:$0xff]
  %v3851 = vld [vmem:[%s3727 + $0x141] sm:$0xff]
  %v3852 = vld [vmem:[%s3727 + $0x151] sm:$0xff]
  %v3853 = vld [vmem:[%s3727 + $0x159] sm:$0xff]
  %v3854 = vld [vmem:[%s3727 + $0x169] sm:$0xff]
  %v3855 = vld [vmem:[%s3727 + $0x171] sm:$0xff]
  %v3856 = vld [vmem:[%s3727 + $0x1b1] sm:$0xff]
  %v3857 = vld [vmem:[%s3727 + $0x1b9] sm:$0xff]
  %v3858 = vld [vmem:[%s3727 + $0x1c9] sm:$0xff]
  %v3859 = vld [vmem:[%s3727 + $0x1d1] sm:$0xff]
  %v3860 = vld [vmem:[%s3727 + $0x1e1] sm:$0xff]
  %v3861 = vld [vmem:[%s3727 + $0x1e9] sm:$0xff]
  %v3862 = vld [vmem:[%s3727 + $0x1f9] sm:$0xff]
  %v3863 = vld [vmem:[%s3727 + $0x201] sm:$0xff]
  %v3864 = vld [vmem:[%s3727 + $0x211] sm:$0xff]
  %v3865 = vld [vmem:[%s3727 + $0x219] sm:$0xff]
  %v3866 = vld [vmem:[%s3727 + $0x229] sm:$0xff]
  %v3867 = vld [vmem:[%s3727 + $0x231] sm:$0xff]
  %v3868 = vld [vmem:[%s3727 + $0x241] sm:$0xff]
  %v3869 = vld [vmem:[%s3727 + $0x249] sm:$0xff]
  %v3870 = vld [vmem:[%s3727 + $0x259] sm:$0xff]
  %v3871 = vld [vmem:[%s3727 + $0x261] sm:$0xff]
  %v3872 = vld [vmem:[%s3727 + $0x271] sm:$0xff]
  %v3873 = vld [vmem:[%s3727 + $0x279] sm:$0xff]
  %v3874 = vld [vmem:[%s3727 + $0x289] sm:$0xff]
  %v3875 = vld [vmem:[%s3727 + $0x291] sm:$0xff]
  %v3876 = vld [vmem:[%s3727 + $0x2a1] sm:$0xff]
  %v3877 = vld [vmem:[%s3727 + $0x2a9] sm:$0xff]
  %v3878 = vld [vmem:[%s3727 + $0x2b9] sm:$0xff]
  %v3879 = vld [vmem:[%s3727 + $0x2c1] sm:$0xff]
  %v3880 = vld [vmem:[%s3727 + $0x2d1] sm:$0xff]
  %v3881 = vld [vmem:[%s3727 + $0x2d9] sm:$0xff]
  %v3882 = vld [vmem:[%s3727 + $0x2e9] sm:$0xff]
  %v3883 = vld [vmem:[%s3727 + $0x2f1] sm:$0xff]
  %v3884 = vld [vmem:[%s3727 + $0x301] sm:$0xff]
  %v3885 = vld [vmem:[%s3727 + $0x309] sm:$0xff]
  %v3886 = vld [vmem:[%s3727 + $0x319] sm:$0xff]
  %v3887 = vld [vmem:[%s3727 + $0x321] sm:$0xff]
  %v3888 = vpack.c.bf16 %v3825, %v3824
  %v3889 = vpack.c.bf16 %v3827, %v3826
  %v3890 = vpack.c.bf16 %v3829, %v3828
  %v3891 = vpack.c.bf16 %v3831, %v3830
  %v3892 = vpack.c.bf16 %v3833, %v3832
  %v3893 = vpack.c.bf16 %v3835, %v3834
  %v3894 = vpack.c.bf16 %v3837, %v3836
  %v3895 = vpack.c.bf16 %v3839, %v3838
  %v3896 = vpack.c.bf16 %v3841, %v3840
  %v3897 = vpack.c.bf16 %v3843, %v3842
  %v3898 = vpack.c.bf16 %v3845, %v3844
  %v3899 = vpack.c.bf16 %v3847, %v3846
  %v3900 = vpack.c.bf16 %v3849, %v3848
  %v3901 = vpack.c.bf16 %v3851, %v3850
  %v3902 = vpack.c.bf16 %v3853, %v3852
  %v3903 = vpack.c.bf16 %v3855, %v3854
  %v3904 = vpack.c.bf16 %v3857, %v3856
  %v3905 = vpack.c.bf16 %v3859, %v3858
  %v3906 = vpack.c.bf16 %v3861, %v3860
  %v3907 = vpack.c.bf16 %v3863, %v3862
  %v3908 = vpack.c.bf16 %v3865, %v3864
  %v3909 = vpack.c.bf16 %v3867, %v3866
  %v3910 = vpack.c.bf16 %v3869, %v3868
  %v3911 = vpack.c.bf16 %v3871, %v3870
  %v3912 = vpack.c.bf16 %v3873, %v3872
  %v3913 = vpack.c.bf16 %v3875, %v3874
  %v3914 = vpack.c.bf16 %v3877, %v3876
  %v3915 = vpack.c.bf16 %v3879, %v3878
  %v3916 = vpack.c.bf16 %v3881, %v3880
  %v3917 = vpack.c.bf16 %v3883, %v3882
  %v3918 = vpack.c.bf16 %v3885, %v3884
  %v3919 = vpack.c.bf16 %v3887, %v3886
  %v3920 = vld [vmem:[%s3727 + $0x2] sm:$0xff]
  %v3921 = vld [vmem:[%s3727 + $0xa] sm:$0xff]
  %v3922 = vld [vmem:[%s3727 + $0x1a] sm:$0xff]
  %v3923 = vld [vmem:[%s3727 + $0x22] sm:$0xff]
  %v3924 = vld [vmem:[%s3727 + $0x32] sm:$0xff]
  %v3925 = vld [vmem:[%s3727 + $0x3a] sm:$0xff]
  %v3926 = vld [vmem:[%s3727 + $0x4a] sm:$0xff]
  %v3927 = vld [vmem:[%s3727 + $0x52] sm:$0xff]
  %v3928 = vld [vmem:[%s3727 + $0x62] sm:$0xff]
  %v3929 = vld [vmem:[%s3727 + $0x6a] sm:$0xff]
  %v3930 = vld [vmem:[%s3727 + $0x7a] sm:$0xff]
  %v3931 = vld [vmem:[%s3727 + $0x82] sm:$0xff]
  %v3932 = vld [vmem:[%s3727 + $0x92] sm:$0xff]
  %v3933 = vld [vmem:[%s3727 + $0x9a] sm:$0xff]
  %v3934 = vld [vmem:[%s3727 + $0xaa] sm:$0xff]
  %v3935 = vld [vmem:[%s3727 + $0xb2] sm:$0xff]
  %v3936 = vld [vmem:[%s3727 + $0xc2] sm:$0xff]
  %v3937 = vld [vmem:[%s3727 + $0xca] sm:$0xff]
  %v3938 = vld [vmem:[%s3727 + $0xda] sm:$0xff]
  %v3939 = vld [vmem:[%s3727 + $0xe2] sm:$0xff]
  %v3940 = vld [vmem:[%s3727 + $0xf2] sm:$0xff]
  %v3941 = vld [vmem:[%s3727 + $0xfa] sm:$0xff]
  %v3942 = vld [vmem:[%s3727 + $0x10a] sm:$0xff]
  %v3943 = vld [vmem:[%s3727 + $0x112] sm:$0xff]
  %v3944 = vld [vmem:[%s3727 + $0x122] sm:$0xff]
  %v3945 = vld [vmem:[%s3727 + $0x12a] sm:$0xff]
  %v3946 = vld [vmem:[%s3727 + $0x13a] sm:$0xff]
  %v3947 = vld [vmem:[%s3727 + $0x142] sm:$0xff]
  %v3948 = vld [vmem:[%s3727 + $0x152] sm:$0xff]
  %v3949 = vld [vmem:[%s3727 + $0x15a] sm:$0xff]
  %v3950 = vld [vmem:[%s3727 + $0x16a] sm:$0xff]
  %v3951 = vld [vmem:[%s3727 + $0x172] sm:$0xff]
  %v3952 = vld [vmem:[%s3727 + $0x1b2] sm:$0xff]
  %v3953 = vld [vmem:[%s3727 + $0x1ba] sm:$0xff]
  %v3954 = vld [vmem:[%s3727 + $0x1ca] sm:$0xff]
  %v3955 = vld [vmem:[%s3727 + $0x1d2] sm:$0xff]
  %v3956 = vld [vmem:[%s3727 + $0x1e2] sm:$0xff]
  %v3957 = vld [vmem:[%s3727 + $0x1ea] sm:$0xff]
  %v3958 = vld [vmem:[%s3727 + $0x1fa] sm:$0xff]
  %v3959 = vld [vmem:[%s3727 + $0x202] sm:$0xff]
  %v3960 = vld [vmem:[%s3727 + $0x212] sm:$0xff]
  %v3961 = vld [vmem:[%s3727 + $0x21a] sm:$0xff]
  %v3962 = vld [vmem:[%s3727 + $0x22a] sm:$0xff]
  %v3963 = vld [vmem:[%s3727 + $0x232] sm:$0xff]
  %v3964 = vld [vmem:[%s3727 + $0x242] sm:$0xff]
  %v3965 = vld [vmem:[%s3727 + $0x24a] sm:$0xff]
  %v3966 = vld [vmem:[%s3727 + $0x25a] sm:$0xff]
  %v3967 = vld [vmem:[%s3727 + $0x262] sm:$0xff]
  %v3968 = vld [vmem:[%s3727 + $0x272] sm:$0xff]
  %v3969 = vld [vmem:[%s3727 + $0x27a] sm:$0xff]
  %v3970 = vld [vmem:[%s3727 + $0x28a] sm:$0xff]
  %v3971 = vld [vmem:[%s3727 + $0x292] sm:$0xff]
  %v3972 = vld [vmem:[%s3727 + $0x2a2] sm:$0xff]
  %v3973 = vld [vmem:[%s3727 + $0x2aa] sm:$0xff]
  %v3974 = vld [vmem:[%s3727 + $0x2ba] sm:$0xff]
  %v3975 = vld [vmem:[%s3727 + $0x2c2] sm:$0xff]
  %v3976 = vld [vmem:[%s3727 + $0x2d2] sm:$0xff]
  %v3977 = vld [vmem:[%s3727 + $0x2da] sm:$0xff]
  %v3978 = vld [vmem:[%s3727 + $0x2ea] sm:$0xff]
  %v3979 = vld [vmem:[%s3727 + $0x2f2] sm:$0xff]
  %v3980 = vld [vmem:[%s3727 + $0x302] sm:$0xff]
  %v3981 = vld [vmem:[%s3727 + $0x30a] sm:$0xff]
  %v3982 = vld [vmem:[%s3727 + $0x31a] sm:$0xff]
  %v3983 = vld [vmem:[%s3727 + $0x322] sm:$0xff]
  %v3984 = vpack.c.bf16 %v3921, %v3920
  %v3985 = vpack.c.bf16 %v3923, %v3922
  %v3986 = vpack.c.bf16 %v3925, %v3924
  %v3987 = vpack.c.bf16 %v3927, %v3926
  %v3988 = vpack.c.bf16 %v3929, %v3928
  %v3989 = vpack.c.bf16 %v3931, %v3930
  %v3990 = vpack.c.bf16 %v3933, %v3932
  %v3991 = vpack.c.bf16 %v3935, %v3934
  %v3992 = vpack.c.bf16 %v3937, %v3936
  %v3993 = vpack.c.bf16 %v3939, %v3938
  %v3994 = vpack.c.bf16 %v3941, %v3940
  %v3995 = vpack.c.bf16 %v3943, %v3942
  %v3996 = vpack.c.bf16 %v3945, %v3944
  %v3997 = vpack.c.bf16 %v3947, %v3946
  %v3998 = vpack.c.bf16 %v3949, %v3948
  %v3999 = vpack.c.bf16 %v3951, %v3950
  %v4000 = vpack.c.bf16 %v3953, %v3952
  %v4001 = vpack.c.bf16 %v3955, %v3954
  %v4002 = vpack.c.bf16 %v3957, %v3956
  %v4003 = vpack.c.bf16 %v3959, %v3958
  %v4004 = vpack.c.bf16 %v3961, %v3960
  %v4005 = vpack.c.bf16 %v3963, %v3962
  %v4006 = vpack.c.bf16 %v3965, %v3964
  %v4007 = vpack.c.bf16 %v3967, %v3966
  %v4008 = vpack.c.bf16 %v3969, %v3968
  %v4009 = vpack.c.bf16 %v3971, %v3970
  %v4010 = vpack.c.bf16 %v3973, %v3972
  %v4011 = vpack.c.bf16 %v3975, %v3974
  %v4012 = vpack.c.bf16 %v3977, %v3976
  %v4013 = vpack.c.bf16 %v3979, %v3978
  %v4014 = vpack.c.bf16 %v3981, %v3980
  %v4015 = vpack.c.bf16 %v3983, %v3982
  %4048 = vrot.lane.b32.xlu0 %v3311, 8
  %v4049 = vpop.permute.xlu0 %4048
  %4050 = vrot.lane.b32.xlu0 %v3312, 8
  %v4051 = vpop.permute.xlu0 %4050
  %4052 = vrot.lane.b32.xlu0 %v3313, 8
  %v4053 = vpop.permute.xlu0 %4052
  %4054 = vrot.lane.b32.xlu0 %v3314, 8
  %v4055 = vpop.permute.xlu0 %4054
  %4056 = vrot.lane.b32.xlu0 %v3315, 8
  %v4057 = vpop.permute.xlu0 %4056
  %4058 = vrot.lane.b32.xlu0 %v3316, 8
  %v4059 = vpop.permute.xlu0 %4058
  %4060 = vrot.lane.b32.xlu0 %v3317, 8
  %v4061 = vpop.permute.xlu0 %4060
  %4062 = vrot.lane.b32.xlu0 %v3318, 8
  %v4063 = vpop.permute.xlu0 %4062
  %4064 = vrot.lane.b32.xlu0 %v3319, 8
  %v4065 = vpop.permute.xlu0 %4064
  %4066 = vrot.lane.b32.xlu0 %v3320, 8
  %v4067 = vpop.permute.xlu0 %4066
  %4068 = vrot.lane.b32.xlu0 %v3321, 8
  %v4069 = vpop.permute.xlu0 %4068
  %4070 = vrot.lane.b32.xlu0 %v3322, 8
  %v4071 = vpop.permute.xlu0 %4070
  %4072 = vrot.lane.b32.xlu0 %v3323, 8
  %v4073 = vpop.permute.xlu0 %4072
  %4074 = vrot.lane.b32.xlu0 %v3324, 8
  %v4075 = vpop.permute.xlu0 %4074
  %4076 = vrot.lane.b32.xlu0 %v3325, 8
  %v4077 = vpop.permute.xlu0 %4076
  %4078 = vrot.lane.b32.xlu0 %v3326, 8
  %v4079 = vpop.permute.xlu0 %4078
  %4080 = vrot.lane.b32.xlu0 %v3327, 8
  %v4081 = vpop.permute.xlu0 %4080
  %4082 = vrot.lane.b32.xlu0 %v3328, 8
  %v4083 = vpop.permute.xlu0 %4082
  %4084 = vrot.lane.b32.xlu0 %v3329, 8
  %v4085 = vpop.permute.xlu0 %4084
  %4086 = vrot.lane.b32.xlu0 %v3330, 8
  %v4087 = vpop.permute.xlu0 %4086
  %4088 = vrot.lane.b32.xlu0 %v3331, 8
  %v4089 = vpop.permute.xlu0 %4088
  %4090 = vrot.lane.b32.xlu0 %v3332, 8
  %v4091 = vpop.permute.xlu0 %4090
  %4092 = vrot.lane.b32.xlu0 %v3333, 8
  %v4093 = vpop.permute.xlu0 %4092
  %4094 = vrot.lane.b32.xlu0 %v3334, 8
  %v4095 = vpop.permute.xlu0 %4094
  %4096 = vrot.lane.b32.xlu0 %v3335, 8
  %v4097 = vpop.permute.xlu0 %4096
  %4098 = vrot.lane.b32.xlu0 %v3336, 8
  %v4099 = vpop.permute.xlu0 %4098
  %4100 = vrot.lane.b32.xlu0 %v3337, 8
  %v4101 = vpop.permute.xlu0 %4100
  %4102 = vrot.lane.b32.xlu0 %v3338, 8
  %v4103 = vpop.permute.xlu0 %4102
  %4104 = vrot.lane.b32.xlu0 %v3339, 8
  %v4105 = vpop.permute.xlu0 %4104
  %4106 = vrot.lane.b32.xlu0 %v3340, 8
  %v4107 = vpop.permute.xlu0 %4106
  %4108 = vrot.lane.b32.xlu0 %v3341, 8
  %v4109 = vpop.permute.xlu0 %4108
  %4110 = vrot.lane.b32.xlu0 %v3342, 8
  %v4111 = vpop.permute.xlu0 %4110
  %4144 = vrot.lane.b32.xlu0 %v3407, 16
  %v4145 = vpop.permute.xlu0 %4144
  %4146 = vrot.lane.b32.xlu0 %v3408, 16
  %v4147 = vpop.permute.xlu0 %4146
  %4148 = vrot.lane.b32.xlu0 %v3409, 16
  %v4149 = vpop.permute.xlu0 %4148
  %4150 = vrot.lane.b32.xlu0 %v3410, 16
  %v4151 = vpop.permute.xlu0 %4150
  %4152 = vrot.lane.b32.xlu0 %v3411, 16
  %v4153 = vpop.permute.xlu0 %4152
  %4154 = vrot.lane.b32.xlu0 %v3412, 16
  %v4155 = vpop.permute.xlu0 %4154
  %4156 = vrot.lane.b32.xlu0 %v3413, 16
  %v4157 = vpop.permute.xlu0 %4156
  %4158 = vrot.lane.b32.xlu0 %v3414, 16
  %v4159 = vpop.permute.xlu0 %4158
  %4160 = vrot.lane.b32.xlu0 %v3415, 16
  %v4161 = vpop.permute.xlu0 %4160
  %4162 = vrot.lane.b32.xlu0 %v3416, 16
  %v4163 = vpop.permute.xlu0 %4162
  %4164 = vrot.lane.b32.xlu0 %v3417, 16
  %v4165 = vpop.permute.xlu0 %4164
  %4166 = vrot.lane.b32.xlu0 %v3418, 16
  %v4167 = vpop.permute.xlu0 %4166
  %4168 = vrot.lane.b32.xlu0 %v3419, 16
  %v4169 = vpop.permute.xlu0 %4168
  %4170 = vrot.lane.b32.xlu0 %v3420, 16
  %v4171 = vpop.permute.xlu0 %4170
  %4172 = vrot.lane.b32.xlu0 %v3421, 16
  %v4173 = vpop.permute.xlu0 %4172
  %4174 = vrot.lane.b32.xlu0 %v3422, 16
  %v4175 = vpop.permute.xlu0 %4174
  %4176 = vrot.lane.b32.xlu0 %v3423, 16
  %v4177 = vpop.permute.xlu0 %4176
  %4178 = vrot.lane.b32.xlu0 %v3424, 16
  %v4179 = vpop.permute.xlu0 %4178
  %4180 = vrot.lane.b32.xlu0 %v3425, 16
  %v4181 = vpop.permute.xlu0 %4180
  %4182 = vrot.lane.b32.xlu0 %v3426, 16
  %v4183 = vpop.permute.xlu0 %4182
  %4184 = vrot.lane.b32.xlu0 %v3427, 16
  %v4185 = vpop.permute.xlu0 %4184
  %4186 = vrot.lane.b32.xlu0 %v3428, 16
  %v4187 = vpop.permute.xlu0 %4186
  %4188 = vrot.lane.b32.xlu0 %v3429, 16
  %v4189 = vpop.permute.xlu0 %4188
  %4190 = vrot.lane.b32.xlu0 %v3430, 16
  %v4191 = vpop.permute.xlu0 %4190
  %4192 = vrot.lane.b32.xlu0 %v3431, 16
  %v4193 = vpop.permute.xlu0 %4192
  %4194 = vrot.lane.b32.xlu0 %v3432, 16
  %v4195 = vpop.permute.xlu0 %4194
  %4196 = vrot.lane.b32.xlu0 %v3433, 16
  %v4197 = vpop.permute.xlu0 %4196
  %4198 = vrot.lane.b32.xlu0 %v3434, 16
  %v4199 = vpop.permute.xlu0 %4198
  %4200 = vrot.lane.b32.xlu0 %v3435, 16
  %v4201 = vpop.permute.xlu0 %4200
  %4202 = vrot.lane.b32.xlu0 %v3436, 16
  %v4203 = vpop.permute.xlu0 %4202
  %4204 = vrot.lane.b32.xlu0 %v3437, 16
  %v4205 = vpop.permute.xlu0 %4204
  %4206 = vrot.lane.b32.xlu0 %v3438, 16
  %v4207 = vpop.permute.xlu0 %4206
  %4240 = vrot.lane.b32.xlu0 %v3503, 24
  %v4241 = vpop.permute.xlu0 %4240
  %4242 = vrot.lane.b32.xlu0 %v3504, 24
  %v4243 = vpop.permute.xlu0 %4242
  %4244 = vrot.lane.b32.xlu0 %v3505, 24
  %v4245 = vpop.permute.xlu0 %4244
  %4246 = vrot.lane.b32.xlu0 %v3506, 24
  %v4247 = vpop.permute.xlu0 %4246
  %4248 = vrot.lane.b32.xlu0 %v3507, 24
  %v4249 = vpop.permute.xlu0 %4248
  %4250 = vrot.lane.b32.xlu0 %v3508, 24
  %v4251 = vpop.permute.xlu0 %4250
  %4252 = vrot.lane.b32.xlu0 %v3509, 24
  %v4253 = vpop.permute.xlu0 %4252
  %4254 = vrot.lane.b32.xlu0 %v3510, 24
  %v4255 = vpop.permute.xlu0 %4254
  %4256 = vrot.lane.b32.xlu0 %v3511, 24
  %v4257 = vpop.permute.xlu0 %4256
  %4258 = vrot.lane.b32.xlu0 %v3512, 24
  %v4259 = vpop.permute.xlu0 %4258
  %4260 = vrot.lane.b32.xlu0 %v3513, 24
  %v4261 = vpop.permute.xlu0 %4260
  %4262 = vrot.lane.b32.xlu0 %v3514, 24
  %v4263 = vpop.permute.xlu0 %4262
  %4264 = vrot.lane.b32.xlu0 %v3515, 24
  %v4265 = vpop.permute.xlu0 %4264
  %4266 = vrot.lane.b32.xlu0 %v3516, 24
  %v4267 = vpop.permute.xlu0 %4266
  %4268 = vrot.lane.b32.xlu0 %v3517, 24
  %v4269 = vpop.permute.xlu0 %4268
  %4270 = vrot.lane.b32.xlu0 %v3518, 24
  %v4271 = vpop.permute.xlu0 %4270
  %4272 = vrot.lane.b32.xlu0 %v3519, 24
  %v4273 = vpop.permute.xlu0 %4272
  %4274 = vrot.lane.b32.xlu0 %v3520, 24
  %v4275 = vpop.permute.xlu0 %4274
  %4276 = vrot.lane.b32.xlu0 %v3521, 24
  %v4277 = vpop.permute.xlu0 %4276
  %4278 = vrot.lane.b32.xlu0 %v3522, 24
  %v4279 = vpop.permute.xlu0 %4278
  %4280 = vrot.lane.b32.xlu0 %v3523, 24
  %v4281 = vpop.permute.xlu0 %4280
  %4282 = vrot.lane.b32.xlu0 %v3524, 24
  %v4283 = vpop.permute.xlu0 %4282
  %4284 = vrot.lane.b32.xlu0 %v3525, 24
  %v4285 = vpop.permute.xlu0 %4284
  %4286 = vrot.lane.b32.xlu0 %v3526, 24
  %v4287 = vpop.permute.xlu0 %4286
  %4288 = vrot.lane.b32.xlu0 %v3527, 24
  %v4289 = vpop.permute.xlu0 %4288
  %4290 = vrot.lane.b32.xlu0 %v3528, 24
  %v4291 = vpop.permute.xlu0 %4290
  %4292 = vrot.lane.b32.xlu0 %v3529, 24
  %v4293 = vpop.permute.xlu0 %4292
  %4294 = vrot.lane.b32.xlu0 %v3530, 24
  %v4295 = vpop.permute.xlu0 %4294
  %4296 = vrot.lane.b32.xlu0 %v3531, 24
  %v4297 = vpop.permute.xlu0 %4296
  %4298 = vrot.lane.b32.xlu0 %v3532, 24
  %v4299 = vpop.permute.xlu0 %4298
  %4300 = vrot.lane.b32.xlu0 %v3533, 24
  %v4301 = vpop.permute.xlu0 %4300
  %4302 = vrot.lane.b32.xlu0 %v3534, 24
  %v4303 = vpop.permute.xlu0 %4302
  %4336 = vrot.lane.b32.xlu0 %v3599, 32
  %v4337 = vpop.permute.xlu0 %4336
  %4338 = vrot.lane.b32.xlu0 %v3600, 32
  %v4339 = vpop.permute.xlu0 %4338
  %4340 = vrot.lane.b32.xlu0 %v3601, 32
  %v4341 = vpop.permute.xlu0 %4340
  %4342 = vrot.lane.b32.xlu0 %v3602, 32
  %v4343 = vpop.permute.xlu0 %4342
  %4344 = vrot.lane.b32.xlu0 %v3603, 32
  %v4345 = vpop.permute.xlu0 %4344
  %4346 = vrot.lane.b32.xlu0 %v3604, 32
  %v4347 = vpop.permute.xlu0 %4346
  %4348 = vrot.lane.b32.xlu0 %v3605, 32
  %v4349 = vpop.permute.xlu0 %4348
  %4350 = vrot.lane.b32.xlu0 %v3606, 32
  %v4351 = vpop.permute.xlu0 %4350
  %4352 = vrot.lane.b32.xlu0 %v3607, 32
  %v4353 = vpop.permute.xlu0 %4352
  %4354 = vrot.lane.b32.xlu0 %v3608, 32
  %v4355 = vpop.permute.xlu0 %4354
  %4356 = vrot.lane.b32.xlu0 %v3609, 32
  %v4357 = vpop.permute.xlu0 %4356
  %4358 = vrot.lane.b32.xlu0 %v3610, 32
  %v4359 = vpop.permute.xlu0 %4358
  %4360 = vrot.lane.b32.xlu0 %v3611, 32
  %v4361 = vpop.permute.xlu0 %4360
  %4362 = vrot.lane.b32.xlu0 %v3612, 32
  %v4363 = vpop.permute.xlu0 %4362
  %4364 = vrot.lane.b32.xlu0 %v3613, 32
  %v4365 = vpop.permute.xlu0 %4364
  %4366 = vrot.lane.b32.xlu0 %v3614, 32
  %v4367 = vpop.permute.xlu0 %4366
  %4368 = vrot.lane.b32.xlu0 %v3615, 32
  %v4369 = vpop.permute.xlu0 %4368
  %4370 = vrot.lane.b32.xlu0 %v3616, 32
  %v4371 = vpop.permute.xlu0 %4370
  %4372 = vrot.lane.b32.xlu0 %v3617, 32
  %v4373 = vpop.permute.xlu0 %4372
  %4374 = vrot.lane.b32.xlu0 %v3618, 32
  %v4375 = vpop.permute.xlu0 %4374
  %4376 = vrot.lane.b32.xlu0 %v3619, 32
  %v4377 = vpop.permute.xlu0 %4376
  %4378 = vrot.lane.b32.xlu0 %v3620, 32
  %v4379 = vpop.permute.xlu0 %4378
  %4380 = vrot.lane.b32.xlu0 %v3621, 32
  %v4381 = vpop.permute.xlu0 %4380
  %4382 = vrot.lane.b32.xlu0 %v3622, 32
  %v4383 = vpop.permute.xlu0 %4382
  %4384 = vrot.lane.b32.xlu0 %v3623, 32
  %v4385 = vpop.permute.xlu0 %4384
  %4386 = vrot.lane.b32.xlu0 %v3624, 32
  %v4387 = vpop.permute.xlu0 %4386
  %4388 = vrot.lane.b32.xlu0 %v3625, 32
  %v4389 = vpop.permute.xlu0 %4388
  %4390 = vrot.lane.b32.xlu0 %v3626, 32
  %v4391 = vpop.permute.xlu0 %4390
  %4392 = vrot.lane.b32.xlu0 %v3627, 32
  %v4393 = vpop.permute.xlu0 %4392
  %4394 = vrot.lane.b32.xlu0 %v3628, 32
  %v4395 = vpop.permute.xlu0 %4394
  %4396 = vrot.lane.b32.xlu0 %v3629, 32
  %v4397 = vpop.permute.xlu0 %4396
  %4398 = vrot.lane.b32.xlu0 %v3630, 32
  %v4399 = vpop.permute.xlu0 %4398
  %4432 = vrot.lane.b32.xlu0 %v3695, 40
  %v4433 = vpop.permute.xlu0 %4432
  %4434 = vrot.lane.b32.xlu0 %v3696, 40
  %v4435 = vpop.permute.xlu0 %4434
  %4436 = vrot.lane.b32.xlu0 %v3697, 40
  %v4437 = vpop.permute.xlu0 %4436
  %4438 = vrot.lane.b32.xlu0 %v3698, 40
  %v4439 = vpop.permute.xlu0 %4438
  %4440 = vrot.lane.b32.xlu0 %v3699, 40
  %v4441 = vpop.permute.xlu0 %4440
  %4442 = vrot.lane.b32.xlu0 %v3700, 40
  %v4443 = vpop.permute.xlu0 %4442
  %4444 = vrot.lane.b32.xlu0 %v3701, 40
  %v4445 = vpop.permute.xlu0 %4444
  %4446 = vrot.lane.b32.xlu0 %v3702, 40
  %v4447 = vpop.permute.xlu0 %4446
  %4448 = vrot.lane.b32.xlu0 %v3703, 40
  %v4449 = vpop.permute.xlu0 %4448
  %4450 = vrot.lane.b32.xlu0 %v3704, 40
  %v4451 = vpop.permute.xlu0 %4450
  %4452 = vrot.lane.b32.xlu0 %v3705, 40
  %v4453 = vpop.permute.xlu0 %4452
  %4454 = vrot.lane.b32.xlu0 %v3706, 40
  %v4455 = vpop.permute.xlu0 %4454
  %4456 = vrot.lane.b32.xlu0 %v3707, 40
  %v4457 = vpop.permute.xlu0 %4456
  %4458 = vrot.lane.b32.xlu0 %v3708, 40
  %v4459 = vpop.permute.xlu0 %4458
  %4460 = vrot.lane.b32.xlu0 %v3709, 40
  %v4461 = vpop.permute.xlu0 %4460
  %4462 = vrot.lane.b32.xlu0 %v3710, 40
  %v4463 = vpop.permute.xlu0 %4462
  %4464 = vrot.lane.b32.xlu0 %v3711, 40
  %v4465 = vpop.permute.xlu0 %4464
  %4466 = vrot.lane.b32.xlu0 %v3712, 40
  %v4467 = vpop.permute.xlu0 %4466
  %4468 = vrot.lane.b32.xlu0 %v3713, 40
  %v4469 = vpop.permute.xlu0 %4468
  %4470 = vrot.lane.b32.xlu0 %v3714, 40
  %v4471 = vpop.permute.xlu0 %4470
  %4472 = vrot.lane.b32.xlu0 %v3715, 40
  %v4473 = vpop.permute.xlu0 %4472
  %4474 = vrot.lane.b32.xlu0 %v3716, 40
  %v4475 = vpop.permute.xlu0 %4474
  %4476 = vrot.lane.b32.xlu0 %v3717, 40
  %v4477 = vpop.permute.xlu0 %4476
  %4478 = vrot.lane.b32.xlu0 %v3718, 40
  %v4479 = vpop.permute.xlu0 %4478
  %4480 = vrot.lane.b32.xlu0 %v3719, 40
  %v4481 = vpop.permute.xlu0 %4480
  %4482 = vrot.lane.b32.xlu0 %v3720, 40
  %v4483 = vpop.permute.xlu0 %4482
  %4484 = vrot.lane.b32.xlu0 %v3721, 40
  %v4485 = vpop.permute.xlu0 %4484
  %4486 = vrot.lane.b32.xlu0 %v3722, 40
  %v4487 = vpop.permute.xlu0 %4486
  %4488 = vrot.lane.b32.xlu0 %v3723, 40
  %v4489 = vpop.permute.xlu0 %4488
  %4490 = vrot.lane.b32.xlu0 %v3724, 40
  %v4491 = vpop.permute.xlu0 %4490
  %4492 = vrot.lane.b32.xlu0 %v3725, 40
  %v4493 = vpop.permute.xlu0 %4492
  %4494 = vrot.lane.b32.xlu0 %v3726, 40
  %v4495 = vpop.permute.xlu0 %4494
  %4528 = vrot.lane.b32.xlu0 %v3792, 48
  %v4529 = vpop.permute.xlu0 %4528
  %4530 = vrot.lane.b32.xlu0 %v3793, 48
  %v4531 = vpop.permute.xlu0 %4530
  %4532 = vrot.lane.b32.xlu0 %v3794, 48
  %v4533 = vpop.permute.xlu0 %4532
  %4534 = vrot.lane.b32.xlu0 %v3795, 48
  %v4535 = vpop.permute.xlu0 %4534
  %4536 = vrot.lane.b32.xlu0 %v3796, 48
  %v4537 = vpop.permute.xlu0 %4536
  %4538 = vrot.lane.b32.xlu0 %v3797, 48
  %v4539 = vpop.permute.xlu0 %4538
  %4540 = vrot.lane.b32.xlu0 %v3798, 48
  %v4541 = vpop.permute.xlu0 %4540
  %4542 = vrot.lane.b32.xlu0 %v3799, 48
  %v4543 = vpop.permute.xlu0 %4542
  %4544 = vrot.lane.b32.xlu0 %v3800, 48
  %v4545 = vpop.permute.xlu0 %4544
  %4546 = vrot.lane.b32.xlu0 %v3801, 48
  %v4547 = vpop.permute.xlu0 %4546
  %4548 = vrot.lane.b32.xlu0 %v3802, 48
  %v4549 = vpop.permute.xlu0 %4548
  %4550 = vrot.lane.b32.xlu0 %v3803, 48
  %v4551 = vpop.permute.xlu0 %4550
  %4552 = vrot.lane.b32.xlu0 %v3804, 48
  %v4553 = vpop.permute.xlu0 %4552
  %4554 = vrot.lane.b32.xlu0 %v3805, 48
  %v4555 = vpop.permute.xlu0 %4554
  %4556 = vrot.lane.b32.xlu0 %v3806, 48
  %v4557 = vpop.permute.xlu0 %4556
  %4558 = vrot.lane.b32.xlu0 %v3807, 48
  %v4559 = vpop.permute.xlu0 %4558
  %4560 = vrot.lane.b32.xlu0 %v3808, 48
  %v4561 = vpop.permute.xlu0 %4560
  %4562 = vrot.lane.b32.xlu0 %v3809, 48
  %v4563 = vpop.permute.xlu0 %4562
  %4564 = vrot.lane.b32.xlu0 %v3810, 48
  %v4565 = vpop.permute.xlu0 %4564
  %4566 = vrot.lane.b32.xlu0 %v3811, 48
  %v4567 = vpop.permute.xlu0 %4566
  %4568 = vrot.lane.b32.xlu0 %v3812, 48
  %v4569 = vpop.permute.xlu0 %4568
  %4570 = vrot.lane.b32.xlu0 %v3813, 48
  %v4571 = vpop.permute.xlu0 %4570
  %4572 = vrot.lane.b32.xlu0 %v3814, 48
  %v4573 = vpop.permute.xlu0 %4572
  %4574 = vrot.lane.b32.xlu0 %v3815, 48
  %v4575 = vpop.permute.xlu0 %4574
  %4576 = vrot.lane.b32.xlu0 %v3816, 48
  %v4577 = vpop.permute.xlu0 %4576
  %4578 = vrot.lane.b32.xlu0 %v3817, 48
  %v4579 = vpop.permute.xlu0 %4578
  %4580 = vrot.lane.b32.xlu0 %v3818, 48
  %v4581 = vpop.permute.xlu0 %4580
  %4582 = vrot.lane.b32.xlu0 %v3819, 48
  %v4583 = vpop.permute.xlu0 %4582
  %4584 = vrot.lane.b32.xlu0 %v3820, 48
  %v4585 = vpop.permute.xlu0 %4584
  %4586 = vrot.lane.b32.xlu0 %v3821, 48
  %v4587 = vpop.permute.xlu0 %4586
  %4588 = vrot.lane.b32.xlu0 %v3822, 48
  %v4589 = vpop.permute.xlu0 %4588
  %4590 = vrot.lane.b32.xlu0 %v3823, 48
  %v4591 = vpop.permute.xlu0 %4590
  %4624 = vrot.lane.b32.xlu0 %v3888, 56
  %v4625 = vpop.permute.xlu0 %4624
  %4626 = vrot.lane.b32.xlu0 %v3889, 56
  %v4627 = vpop.permute.xlu0 %4626
  %4628 = vrot.lane.b32.xlu0 %v3890, 56
  %v4629 = vpop.permute.xlu0 %4628
  %4630 = vrot.lane.b32.xlu0 %v3891, 56
  %v4631 = vpop.permute.xlu0 %4630
  %4632 = vrot.lane.b32.xlu0 %v3892, 56
  %v4633 = vpop.permute.xlu0 %4632
  %4634 = vrot.lane.b32.xlu0 %v3893, 56
  %v4635 = vpop.permute.xlu0 %4634
  %4636 = vrot.lane.b32.xlu0 %v3894, 56
  %v4637 = vpop.permute.xlu0 %4636
  %4638 = vrot.lane.b32.xlu0 %v3895, 56
  %v4639 = vpop.permute.xlu0 %4638
  %4640 = vrot.lane.b32.xlu0 %v3896, 56
  %v4641 = vpop.permute.xlu0 %4640
  %4642 = vrot.lane.b32.xlu0 %v3897, 56
  %v4643 = vpop.permute.xlu0 %4642
  %4644 = vrot.lane.b32.xlu0 %v3898, 56
  %v4645 = vpop.permute.xlu0 %4644
  %4646 = vrot.lane.b32.xlu0 %v3899, 56
  %v4647 = vpop.permute.xlu0 %4646
  %4648 = vrot.lane.b32.xlu0 %v3900, 56
  %v4649 = vpop.permute.xlu0 %4648
  %4650 = vrot.lane.b32.xlu0 %v3901, 56
  %v4651 = vpop.permute.xlu0 %4650
  %4652 = vrot.lane.b32.xlu0 %v3902, 56
  %v4653 = vpop.permute.xlu0 %4652
  %4654 = vrot.lane.b32.xlu0 %v3903, 56
  %v4655 = vpop.permute.xlu0 %4654
  %4656 = vrot.lane.b32.xlu0 %v3904, 56
  %v4657 = vpop.permute.xlu0 %4656
  %4658 = vrot.lane.b32.xlu0 %v3905, 56
  %v4659 = vpop.permute.xlu0 %4658
  %4660 = vrot.lane.b32.xlu0 %v3906, 56
  %v4661 = vpop.permute.xlu0 %4660
  %4662 = vrot.lane.b32.xlu0 %v3907, 56
  %v4663 = vpop.permute.xlu0 %4662
  %4664 = vrot.lane.b32.xlu0 %v3908, 56
  %v4665 = vpop.permute.xlu0 %4664
  %4666 = vrot.lane.b32.xlu0 %v3909, 56
  %v4667 = vpop.permute.xlu0 %4666
  %4668 = vrot.lane.b32.xlu0 %v3910, 56
  %v4669 = vpop.permute.xlu0 %4668
  %4670 = vrot.lane.b32.xlu0 %v3911, 56
  %v4671 = vpop.permute.xlu0 %4670
  %4672 = vrot.lane.b32.xlu0 %v3912, 56
  %v4673 = vpop.permute.xlu0 %4672
  %4674 = vrot.lane.b32.xlu0 %v3913, 56
  %v4675 = vpop.permute.xlu0 %4674
  %4676 = vrot.lane.b32.xlu0 %v3914, 56
  %v4677 = vpop.permute.xlu0 %4676
  %4678 = vrot.lane.b32.xlu0 %v3915, 56
  %v4679 = vpop.permute.xlu0 %4678
  %4680 = vrot.lane.b32.xlu0 %v3916, 56
  %v4681 = vpop.permute.xlu0 %4680
  %4682 = vrot.lane.b32.xlu0 %v3917, 56
  %v4683 = vpop.permute.xlu0 %4682
  %4684 = vrot.lane.b32.xlu0 %v3918, 56
  %v4685 = vpop.permute.xlu0 %4684
  %4686 = vrot.lane.b32.xlu0 %v3919, 56
  %v4687 = vpop.permute.xlu0 %4686
  %4720 = vrot.lane.b32.xlu0 %v3984, 64
  %v4721 = vpop.permute.xlu0 %4720
  %4722 = vrot.lane.b32.xlu0 %v3985, 64
  %v4723 = vpop.permute.xlu0 %4722
  %4724 = vrot.lane.b32.xlu0 %v3986, 64
  %v4725 = vpop.permute.xlu0 %4724
  %4726 = vrot.lane.b32.xlu0 %v3987, 64
  %v4727 = vpop.permute.xlu0 %4726
  %4728 = vrot.lane.b32.xlu0 %v3988, 64
  %v4729 = vpop.permute.xlu0 %4728
  %4730 = vrot.lane.b32.xlu0 %v3989, 64
  %v4731 = vpop.permute.xlu0 %4730
  %4732 = vrot.lane.b32.xlu0 %v3990, 64
  %v4733 = vpop.permute.xlu0 %4732
  %4734 = vrot.lane.b32.xlu0 %v3991, 64
  %v4735 = vpop.permute.xlu0 %4734
  %4736 = vrot.lane.b32.xlu0 %v3992, 64
  %v4737 = vpop.permute.xlu0 %4736
  %4738 = vrot.lane.b32.xlu0 %v3993, 64
  %v4739 = vpop.permute.xlu0 %4738
  %4740 = vrot.lane.b32.xlu0 %v3994, 64
  %v4741 = vpop.permute.xlu0 %4740
  %4742 = vrot.lane.b32.xlu0 %v3995, 64
  %v4743 = vpop.permute.xlu0 %4742
  %4744 = vrot.lane.b32.xlu0 %v3996, 64
  %v4745 = vpop.permute.xlu0 %4744
  %4746 = vrot.lane.b32.xlu0 %v3997, 64
  %v4747 = vpop.permute.xlu0 %4746
  %4748 = vrot.lane.b32.xlu0 %v3998, 64
  %v4749 = vpop.permute.xlu0 %4748
  %4750 = vrot.lane.b32.xlu0 %v3999, 64
  %v4751 = vpop.permute.xlu0 %4750
  %4752 = vrot.lane.b32.xlu0 %v4000, 64
  %v4753 = vpop.permute.xlu0 %4752
  %4754 = vrot.lane.b32.xlu0 %v4001, 64
  %v4755 = vpop.permute.xlu0 %4754
  %4756 = vrot.lane.b32.xlu0 %v4002, 64
  %v4757 = vpop.permute.xlu0 %4756
  %4758 = vrot.lane.b32.xlu0 %v4003, 64
  %v4759 = vpop.permute.xlu0 %4758
  %4760 = vrot.lane.b32.xlu0 %v4004, 64
  %v4761 = vpop.permute.xlu0 %4760
  %4762 = vrot.lane.b32.xlu0 %v4005, 64
  %v4763 = vpop.permute.xlu0 %4762
  %4764 = vrot.lane.b32.xlu0 %v4006, 64
  %v4765 = vpop.permute.xlu0 %4764
  %4766 = vrot.lane.b32.xlu0 %v4007, 64
  %v4767 = vpop.permute.xlu0 %4766
  %4768 = vrot.lane.b32.xlu0 %v4008, 64
  %v4769 = vpop.permute.xlu0 %4768
  %4770 = vrot.lane.b32.xlu0 %v4009, 64
  %v4771 = vpop.permute.xlu0 %4770
  %4772 = vrot.lane.b32.xlu0 %v4010, 64
  %v4773 = vpop.permute.xlu0 %4772
  %4774 = vrot.lane.b32.xlu0 %v4011, 64
  %v4775 = vpop.permute.xlu0 %4774
  %4776 = vrot.lane.b32.xlu0 %v4012, 64
  %v4777 = vpop.permute.xlu0 %4776
  %4778 = vrot.lane.b32.xlu0 %v4013, 64
  %v4779 = vpop.permute.xlu0 %4778
  %4780 = vrot.lane.b32.xlu0 %v4014, 64
  %v4781 = vpop.permute.xlu0 %4780
  %4782 = vrot.lane.b32.xlu0 %v4015, 64
  %v4783 = vpop.permute.xlu0 %4782
  %v4786 = vsel %vm109, %v3215, %v4049
  %v4789 = vsel %vm109, %v3216, %v4051
  %v4792 = vsel %vm109, %v3217, %v4053
  %v4795 = vsel %vm109, %v3218, %v4055
  %v4798 = vsel %vm109, %v3219, %v4057
  %v4801 = vsel %vm109, %v3220, %v4059
  %v4804 = vsel %vm109, %v3221, %v4061
  %v4807 = vsel %vm109, %v3222, %v4063
  %v4810 = vsel %vm109, %v3223, %v4065
  %v4813 = vsel %vm109, %v3224, %v4067
  %v4816 = vsel %vm109, %v3225, %v4069
  %v4819 = vsel %vm109, %v3226, %v4071
  %v4822 = vsel %vm109, %v3227, %v4073
  %v4825 = vsel %vm109, %v3228, %v4075
  %v4828 = vsel %vm109, %v3229, %v4077
  %v4831 = vsel %vm109, %v3230, %v4079
  %v4834 = vsel %vm109, %v3231, %v4081
  %v4837 = vsel %vm109, %v3232, %v4083
  %v4840 = vsel %vm109, %v3233, %v4085
  %v4843 = vsel %vm109, %v3234, %v4087
  %v4846 = vsel %vm109, %v3235, %v4089
  %v4849 = vsel %vm109, %v3236, %v4091
  %v4852 = vsel %vm109, %v3237, %v4093
  %v4855 = vsel %vm109, %v3238, %v4095
  %v4858 = vsel %vm109, %v3239, %v4097
  %v4861 = vsel %vm109, %v3240, %v4099
  %v4864 = vsel %vm109, %v3241, %v4101
  %v4867 = vsel %vm109, %v3242, %v4103
  %v4870 = vsel %vm109, %v3243, %v4105
  %v4873 = vsel %vm109, %v3244, %v4107
  %v4876 = vsel %vm109, %v3245, %v4109
  %v4879 = vsel %vm109, %v3246, %v4111
  %v4881 = vsel %vm2184, %v4786, %v4145
  %v4883 = vsel %vm2184, %v4789, %v4147
  %v4885 = vsel %vm2184, %v4792, %v4149
  %v4887 = vsel %vm2184, %v4795, %v4151
  %v4889 = vsel %vm2184, %v4798, %v4153
  %v4891 = vsel %vm2184, %v4801, %v4155
  %v4893 = vsel %vm2184, %v4804, %v4157
  %v4895 = vsel %vm2184, %v4807, %v4159
  %v4897 = vsel %vm2184, %v4810, %v4161
  %v4899 = vsel %vm2184, %v4813, %v4163
  %v4901 = vsel %vm2184, %v4816, %v4165
  %v4903 = vsel %vm2184, %v4819, %v4167
  %v4905 = vsel %vm2184, %v4822, %v4169
  %v4907 = vsel %vm2184, %v4825, %v4171
  %v4909 = vsel %vm2184, %v4828, %v4173
  %v4911 = vsel %vm2184, %v4831, %v4175
  %v4913 = vsel %vm2184, %v4834, %v4177
  %v4915 = vsel %vm2184, %v4837, %v4179
  %v4917 = vsel %vm2184, %v4840, %v4181
  %v4919 = vsel %vm2184, %v4843, %v4183
  %v4921 = vsel %vm2184, %v4846, %v4185
  %v4923 = vsel %vm2184, %v4849, %v4187
  %v4925 = vsel %vm2184, %v4852, %v4189
  %v4927 = vsel %vm2184, %v4855, %v4191
  %v4929 = vsel %vm2184, %v4858, %v4193
  %v4931 = vsel %vm2184, %v4861, %v4195
  %v4933 = vsel %vm2184, %v4864, %v4197
  %v4935 = vsel %vm2184, %v4867, %v4199
  %v4937 = vsel %vm2184, %v4870, %v4201
  %v4939 = vsel %vm2184, %v4873, %v4203
  %v4941 = vsel %vm2184, %v4876, %v4205
  %v4943 = vsel %vm2184, %v4879, %v4207
  %v4945 = vsel %vm2314, %v4881, %v4241
  %v4947 = vsel %vm2314, %v4883, %v4243
  %v4949 = vsel %vm2314, %v4885, %v4245
  %v4951 = vsel %vm2314, %v4887, %v4247
  %v4953 = vsel %vm2314, %v4889, %v4249
  %v4955 = vsel %vm2314, %v4891, %v4251
  %v4957 = vsel %vm2314, %v4893, %v4253
  %v4959 = vsel %vm2314, %v4895, %v4255
  %v4961 = vsel %vm2314, %v4897, %v4257
  %v4963 = vsel %vm2314, %v4899, %v4259
  %v4965 = vsel %vm2314, %v4901, %v4261
  %v4967 = vsel %vm2314, %v4903, %v4263
  %v4969 = vsel %vm2314, %v4905, %v4265
  %v4971 = vsel %vm2314, %v4907, %v4267
  %v4973 = vsel %vm2314, %v4909, %v4269
  %v4975 = vsel %vm2314, %v4911, %v4271
  %v4977 = vsel %vm2314, %v4913, %v4273
  %v4979 = vsel %vm2314, %v4915, %v4275
  %v4981 = vsel %vm2314, %v4917, %v4277
  %v4983 = vsel %vm2314, %v4919, %v4279
  %v4985 = vsel %vm2314, %v4921, %v4281
  %v4987 = vsel %vm2314, %v4923, %v4283
  %v4989 = vsel %vm2314, %v4925, %v4285
  %v4991 = vsel %vm2314, %v4927, %v4287
  %v4993 = vsel %vm2314, %v4929, %v4289
  %v4995 = vsel %vm2314, %v4931, %v4291
  %v4997 = vsel %vm2314, %v4933, %v4293
  %v4999 = vsel %vm2314, %v4935, %v4295
  %v5001 = vsel %vm2314, %v4937, %v4297
  %v5003 = vsel %vm2314, %v4939, %v4299
  %v5005 = vsel %vm2314, %v4941, %v4301
  %v5007 = vsel %vm2314, %v4943, %v4303
  %v5009 = vsel %vm2444, %v4945, %v4337
  %v5011 = vsel %vm2444, %v4947, %v4339
  %v5013 = vsel %vm2444, %v4949, %v4341
  %v5015 = vsel %vm2444, %v4951, %v4343
  %v5017 = vsel %vm2444, %v4953, %v4345
  %v5019 = vsel %vm2444, %v4955, %v4347
  %v5021 = vsel %vm2444, %v4957, %v4349
  %v5023 = vsel %vm2444, %v4959, %v4351
  %v5025 = vsel %vm2444, %v4961, %v4353
  %v5027 = vsel %vm2444, %v4963, %v4355
  %v5029 = vsel %vm2444, %v4965, %v4357
  %v5031 = vsel %vm2444, %v4967, %v4359
  %v5033 = vsel %vm2444, %v4969, %v4361
  %v5035 = vsel %vm2444, %v4971, %v4363
  %v5037 = vsel %vm2444, %v4973, %v4365
  %v5039 = vsel %vm2444, %v4975, %v4367
  %v5041 = vsel %vm2444, %v4977, %v4369
  %v5043 = vsel %vm2444, %v4979, %v4371
  %v5045 = vsel %vm2444, %v4981, %v4373
  %v5047 = vsel %vm2444, %v4983, %v4375
  %v5049 = vsel %vm2444, %v4985, %v4377
  %v5051 = vsel %vm2444, %v4987, %v4379
  %v5053 = vsel %vm2444, %v4989, %v4381
  %v5055 = vsel %vm2444, %v4991, %v4383
  %v5057 = vsel %vm2444, %v4993, %v4385
  %v5059 = vsel %vm2444, %v4995, %v4387
  %v5061 = vsel %vm2444, %v4997, %v4389
  %v5063 = vsel %vm2444, %v4999, %v4391
  %v5065 = vsel %vm2444, %v5001, %v4393
  %v5067 = vsel %vm2444, %v5003, %v4395
  %v5069 = vsel %vm2444, %v5005, %v4397
  %v5071 = vsel %vm2444, %v5007, %v4399
  %vm5072 = vcmask 326656
  %v5074 = vsel %vm5072, %v5009, %v4433
  %v5076 = vsel %vm5072, %v5011, %v4435
  %v5078 = vsel %vm5072, %v5013, %v4437
  %v5080 = vsel %vm5072, %v5015, %v4439
  %v5082 = vsel %vm5072, %v5017, %v4441
  %v5084 = vsel %vm5072, %v5019, %v4443
  %v5086 = vsel %vm5072, %v5021, %v4445
  %v5088 = vsel %vm5072, %v5023, %v4447
  %v5090 = vsel %vm5072, %v5025, %v4449
  %v5092 = vsel %vm5072, %v5027, %v4451
  %v5094 = vsel %vm5072, %v5029, %v4453
  %v5096 = vsel %vm5072, %v5031, %v4455
  %v5098 = vsel %vm5072, %v5033, %v4457
  %v5100 = vsel %vm5072, %v5035, %v4459
  %v5102 = vsel %vm5072, %v5037, %v4461
  %v5104 = vsel %vm5072, %v5039, %v4463
  %v5106 = vsel %vm5072, %v5041, %v4465
  %v5108 = vsel %vm5072, %v5043, %v4467
  %v5110 = vsel %vm5072, %v5045, %v4469
  %v5112 = vsel %vm5072, %v5047, %v4471
  %v5114 = vsel %vm5072, %v5049, %v4473
  %v5116 = vsel %vm5072, %v5051, %v4475
  %v5118 = vsel %vm5072, %v5053, %v4477
  %v5120 = vsel %vm5072, %v5055, %v4479
  %v5122 = vsel %vm5072, %v5057, %v4481
  %v5124 = vsel %vm5072, %v5059, %v4483
  %v5126 = vsel %vm5072, %v5061, %v4485
  %v5128 = vsel %vm5072, %v5063, %v4487
  %v5130 = vsel %vm5072, %v5065, %v4489
  %v5132 = vsel %vm5072, %v5067, %v4491
  %v5134 = vsel %vm5072, %v5069, %v4493
  %v5136 = vsel %vm5072, %v5071, %v4495
  %vm5137 = vcmask 392192
  %v5139 = vsel %vm5137, %v5074, %v4529
  %v5141 = vsel %vm5137, %v5076, %v4531
  %v5143 = vsel %vm5137, %v5078, %v4533
  %v5145 = vsel %vm5137, %v5080, %v4535
  %v5147 = vsel %vm5137, %v5082, %v4537
  %v5149 = vsel %vm5137, %v5084, %v4539
  %v5151 = vsel %vm5137, %v5086, %v4541
  %v5153 = vsel %vm5137, %v5088, %v4543
  %v5155 = vsel %vm5137, %v5090, %v4545
  %v5157 = vsel %vm5137, %v5092, %v4547
  %v5159 = vsel %vm5137, %v5094, %v4549
  %v5161 = vsel %vm5137, %v5096, %v4551
  %v5163 = vsel %vm5137, %v5098, %v4553
  %v5165 = vsel %vm5137, %v5100, %v4555
  %v5167 = vsel %vm5137, %v5102, %v4557
  %v5169 = vsel %vm5137, %v5104, %v4559
  %v5171 = vsel %vm5137, %v5106, %v4561
  %v5173 = vsel %vm5137, %v5108, %v4563
  %v5175 = vsel %vm5137, %v5110, %v4565
  %v5177 = vsel %vm5137, %v5112, %v4567
  %v5179 = vsel %vm5137, %v5114, %v4569
  %v5181 = vsel %vm5137, %v5116, %v4571
  %v5183 = vsel %vm5137, %v5118, %v4573
  %v5185 = vsel %vm5137, %v5120, %v4575
  %v5187 = vsel %vm5137, %v5122, %v4577
  %v5189 = vsel %vm5137, %v5124, %v4579
  %v5191 = vsel %vm5137, %v5126, %v4581
  %v5193 = vsel %vm5137, %v5128, %v4583
  %v5195 = vsel %vm5137, %v5130, %v4585
  %v5197 = vsel %vm5137, %v5132, %v4587
  %v5199 = vsel %vm5137, %v5134, %v4589
  %v5201 = vsel %vm5137, %v5136, %v4591
  %vm5202 = vcmask 457728
  %v5204 = vsel %vm5202, %v5139, %v4625
  %v5206 = vsel %vm5202, %v5141, %v4627
  %v5208 = vsel %vm5202, %v5143, %v4629
  %v5210 = vsel %vm5202, %v5145, %v4631
  %v5212 = vsel %vm5202, %v5147, %v4633
  %v5214 = vsel %vm5202, %v5149, %v4635
  %v5216 = vsel %vm5202, %v5151, %v4637
  %v5218 = vsel %vm5202, %v5153, %v4639
  %v5220 = vsel %vm5202, %v5155, %v4641
  %v5222 = vsel %vm5202, %v5157, %v4643
  %v5224 = vsel %vm5202, %v5159, %v4645
  %v5226 = vsel %vm5202, %v5161, %v4647
  %v5228 = vsel %vm5202, %v5163, %v4649
  %v5230 = vsel %vm5202, %v5165, %v4651
  %v5232 = vsel %vm5202, %v5167, %v4653
  %v5234 = vsel %vm5202, %v5169, %v4655
  %v5236 = vsel %vm5202, %v5171, %v4657
  %v5238 = vsel %vm5202, %v5173, %v4659
  %v5240 = vsel %vm5202, %v5175, %v4661
  %v5242 = vsel %vm5202, %v5177, %v4663
  %v5244 = vsel %vm5202, %v5179, %v4665
  %v5246 = vsel %vm5202, %v5181, %v4667
  %v5248 = vsel %vm5202, %v5183, %v4669
  %v5250 = vsel %vm5202, %v5185, %v4671
  %v5252 = vsel %vm5202, %v5187, %v4673
  %v5254 = vsel %vm5202, %v5189, %v4675
  %v5256 = vsel %vm5202, %v5191, %v4677
  %v5258 = vsel %vm5202, %v5193, %v4679
  %v5260 = vsel %vm5202, %v5195, %v4681
  %v5262 = vsel %vm5202, %v5197, %v4683
  %v5264 = vsel %vm5202, %v5199, %v4685
  %v5266 = vsel %vm5202, %v5201, %v4687
  %vm5267 = vcmask 523264
  %v5269 = vsel %vm5267, %v5204, %v4721
  %v5272 = vsel %vm5267, %v5206, %v4723
  %v5275 = vsel %vm5267, %v5208, %v4725
  %v5278 = vsel %vm5267, %v5210, %v4727
  %v5281 = vsel %vm5267, %v5212, %v4729
  %v5284 = vsel %vm5267, %v5214, %v4731
  %v5287 = vsel %vm5267, %v5216, %v4733
  %v5290 = vsel %vm5267, %v5218, %v4735
  %v5293 = vsel %vm5267, %v5220, %v4737
  %v5296 = vsel %vm5267, %v5222, %v4739
  %v5299 = vsel %vm5267, %v5224, %v4741
  %v5302 = vsel %vm5267, %v5226, %v4743
  %v5305 = vsel %vm5267, %v5228, %v4745
  %v5308 = vsel %vm5267, %v5230, %v4747
  %v5311 = vsel %vm5267, %v5232, %v4749
  %v5314 = vsel %vm5267, %v5234, %v4751
  %v5317 = vsel %vm5267, %v5236, %v4753
  %v5320 = vsel %vm5267, %v5238, %v4755
  %v5323 = vsel %vm5267, %v5240, %v4757
  %v5326 = vsel %vm5267, %v5242, %v4759
  %v5329 = vsel %vm5267, %v5244, %v4761
  %v5332 = vsel %vm5267, %v5246, %v4763
  %v5335 = vsel %vm5267, %v5248, %v4765
  %v5338 = vsel %vm5267, %v5250, %v4767
  %v5341 = vsel %vm5267, %v5252, %v4769
  %v5344 = vsel %vm5267, %v5254, %v4771
  %v5347 = vsel %vm5267, %v5256, %v4773
  %v5350 = vsel %vm5267, %v5258, %v4775
  %v5353 = vsel %vm5267, %v5260, %v4777
  %v5356 = vsel %vm5267, %v5262, %v4779
  %v5359 = vsel %vm5267, %v5264, %v4781
  %v5362 = vsel %vm5267, %v5266, %v4783
  %vm5364 = vcmask 588800
  %5365 = vst.msk [vmem:[#allocation5] sm:$0xff] %vm5364, %v5269
  %5366 = vst.msk [vmem:[#allocation5 + $0x8] sm:$0xff] %vm5364, %v5272
  %5367 = vst.msk [vmem:[#allocation5 + $0x10] sm:$0xff] %vm5364, %v5275
  %5368 = vst.msk [vmem:[#allocation5 + $0x18] sm:$0xff] %vm5364, %v5278
  %5369 = vst.msk [vmem:[#allocation5 + $0x20] sm:$0xff] %vm5364, %v5281
  %5370 = vst.msk [vmem:[#allocation5 + $0x28] sm:$0xff] %vm5364, %v5284
  %5371 = vst.msk [vmem:[#allocation5 + $0x30] sm:$0xff] %vm5364, %v5287
  %5372 = vst.msk [vmem:[#allocation5 + $0x38] sm:$0xff] %vm5364, %v5290
  %5373 = vst.msk [vmem:[#allocation5 + $0x40] sm:$0xff] %vm5364, %v5293
  %5374 = vst.msk [vmem:[#allocation5 + $0x48] sm:$0xff] %vm5364, %v5296
  %5375 = vst.msk [vmem:[#allocation5 + $0x50] sm:$0xff] %vm5364, %v5299
  %5376 = vst.msk [vmem:[#allocation5 + $0x58] sm:$0xff] %vm5364, %v5302
  %5377 = vst.msk [vmem:[#allocation5 + $0x60] sm:$0xff] %vm5364, %v5305
  %5378 = vst.msk [vmem:[#allocation5 + $0x68] sm:$0xff] %vm5364, %v5308
  %5379 = vst.msk [vmem:[#allocation5 + $0x70] sm:$0xff] %vm5364, %v5311
  %5380 = vst.msk [vmem:[#allocation5 + $0x78] sm:$0xff] %vm5364, %v5314
  %5381 = vst.msk [vmem:[#allocation5 + $0x80] sm:$0xff] %vm5364, %v5317
  %5382 = vst.msk [vmem:[#allocation5 + $0x88] sm:$0xff] %vm5364, %v5320
  %5383 = vst.msk [vmem:[#allocation5 + $0x90] sm:$0xff] %vm5364, %v5323
  %5384 = vst.msk [vmem:[#allocation5 + $0x98] sm:$0xff] %vm5364, %v5326
  %5385 = vst.msk [vmem:[#allocation5 + $0xa0] sm:$0xff] %vm5364, %v5329
  %5386 = vst.msk [vmem:[#allocation5 + $0xa8] sm:$0xff] %vm5364, %v5332
  %5387 = vst.msk [vmem:[#allocation5 + $0xb0] sm:$0xff] %vm5364, %v5335
  %5388 = vst.msk [vmem:[#allocation5 + $0xb8] sm:$0xff] %vm5364, %v5338
  %5389 = vst.msk [vmem:[#allocation5 + $0xc0] sm:$0xff] %vm5364, %v5341
  %5390 = vst.msk [vmem:[#allocation5 + $0xc8] sm:$0xff] %vm5364, %v5344
  %5391 = vst.msk [vmem:[#allocation5 + $0xd0] sm:$0xff] %vm5364, %v5347
  %5392 = vst.msk [vmem:[#allocation5 + $0xd8] sm:$0xff] %vm5364, %v5350
  %5393 = vst.msk [vmem:[#allocation5 + $0xe0] sm:$0xff] %vm5364, %v5353
  %5394 = vst.msk [vmem:[#allocation5 + $0xe8] sm:$0xff] %vm5364, %v5356
  %5395 = vst.msk [vmem:[#allocation5 + $0xf0] sm:$0xff] %vm5364, %v5359
  %5396 = vst.msk [vmem:[#allocation5 + $0xf8] sm:$0xff] %vm5364, %v5362
  %v5397 = vld [vmem:[%s3] sm:$0xf]
  %v5398 = vld [vmem:[#allocation5] sm:$0xff]
  %v5399 = vld [vmem:[#allocation5 + $0x8] sm:$0xff]
  %v5400 = vld [vmem:[#allocation5 + $0x10] sm:$0xff]
  %v5401 = vld [vmem:[#allocation5 + $0x18] sm:$0xff]
  %v5402 = vld [vmem:[#allocation5 + $0x20] sm:$0xff]
  %v5403 = vld [vmem:[#allocation5 + $0x28] sm:$0xff]
  %v5404 = vld [vmem:[#allocation5 + $0x30] sm:$0xff]
  %v5405 = vld [vmem:[#allocation5 + $0x38] sm:$0xff]
  %v5406 = vld [vmem:[#allocation5 + $0x40] sm:$0xff]
  %v5407 = vld [vmem:[#allocation5 + $0x48] sm:$0xff]
  %v5408 = vld [vmem:[#allocation5 + $0x50] sm:$0xff]
  %v5409 = vld [vmem:[#allocation5 + $0x58] sm:$0xff]
  %v5410 = vld [vmem:[#allocation5 + $0x60] sm:$0xff]
  %v5411 = vld [vmem:[#allocation5 + $0x68] sm:$0xff]
  %v5412 = vld [vmem:[#allocation5 + $0x70] sm:$0xff]
  %v5413 = vld [vmem:[#allocation5 + $0x78] sm:$0xff]
  %v5414 = vld [vmem:[%s4] sm:$0xff]
  %5416 = vset.pattern.permute.xlu0 0
  %5417 = vperm.xlu0 %5416, %v5414
  %v5418 = vpop.permute.xlu0 %5417
  %v5421 = vsel %vm5364, %v5397, 0
  %v5424 = vsel %vm5364, %v5398, 0
  %v5427 = vsel %vm5364, %v5399, 0
  %v5430 = vsel %vm5364, %v5400, 0
  %v5433 = vsel %vm5364, %v5401, 0
  %v5436 = vsel %vm5364, %v5402, 0
  %v5439 = vsel %vm5364, %v5403, 0
  %v5442 = vsel %vm5364, %v5404, 0
  %v5445 = vsel %vm5364, %v5405, 0
  %v5448 = vsel %vm5364, %v5406, 0
  %v5451 = vsel %vm5364, %v5407, 0
  %v5454 = vsel %vm5364, %v5408, 0
  %v5457 = vsel %vm5364, %v5409, 0
  %v5460 = vsel %vm5364, %v5410, 0
  %v5463 = vsel %vm5364, %v5411, 0
  %v5466 = vsel %vm5364, %v5412, 0
  %v5469 = vsel %vm5364, %v5413, 0
  %5471 = vmatprep.subr.bf16.mxu0 0
  %5472 = vmatpush1.bf16.xpose.msra.mxu0 %v5424
  %5473 = vmatprep.subr.bf16.mxu0 0
  %5474 = vmatpush1.bf16.xpose.msra.mxu0 %v5427
  %5475 = vmatprep.subr.bf16.mxu0 0
  %5476 = vmatpush1.bf16.xpose.msra.mxu0 %v5430
  %5477 = vmatprep.subr.bf16.mxu0 0
  %5478 = vmatpush1.bf16.xpose.msra.mxu0 %v5433
  %5479 = vmatprep.subr.bf16.mxu0 0
  %5480 = vmatpush1.bf16.xpose.msra.mxu0 %v5436
  %5481 = vmatprep.subr.bf16.mxu0 0
  %5482 = vmatpush1.bf16.xpose.msra.mxu0 %v5439
  %5483 = vmatprep.subr.bf16.mxu0 0
  %5484 = vmatpush1.bf16.xpose.msra.mxu0 %v5442
  %5485 = vmatprep.subr.bf16.mxu0 0
  %5486 = vmatpush1.bf16.xpose.msra.mxu0 %v5445
  %5487 = vmatprep.subr.bf16.mxu0 0
  %5488 = vmatpush1.bf16.xpose.msra.mxu0 %v5448
  %5489 = vmatprep.subr.bf16.mxu0 0
  %5490 = vmatpush1.bf16.xpose.msra.mxu0 %v5451
  %5491 = vmatprep.subr.bf16.mxu0 0
  %5492 = vmatpush1.bf16.xpose.msra.mxu0 %v5454
  %5493 = vmatprep.subr.bf16.mxu0 0
  %5494 = vmatpush1.bf16.xpose.msra.mxu0 %v5457
  %5495 = vmatprep.subr.bf16.mxu0 0
  %5496 = vmatpush1.bf16.xpose.msra.mxu0 %v5460
  %5497 = vmatprep.subr.bf16.mxu0 0
  %5498 = vmatpush1.bf16.xpose.msra.mxu0 %v5463
  %5499 = vmatprep.subr.bf16.mxu0 0
  %5500 = vmatpush1.bf16.xpose.msra.mxu0 %v5466
  %5501 = vmatprep.subr.bf16.mxu0 0
  %5502 = vmatpush1.bf16.xpose.msra.mxu0 %v5469
  %5503 = vmatprep.mubr.bf16.mxu0 0
  %5504 = vmatmul.mubr.bf16.gmra.mrb[0].mxu0 %v5421
  %v5505 = vpop.f32.mrb[0].mxu0
  %v5506 = vadd.f32 %v5418, %v5505
  %v5507 = vpop.f32.mrb[0].mxu0
  %v5508 = vadd.f32 %v5418, %v5507
  %v5509 = vpop.f32.mrb[0].mxu0
  %v5510 = vpop.f32.mrb[0].mxu0
  %5511 = vdwg.mxu0
  %v5512 = vmax.f32 %v5506, 0.0
  %v5513 = vmax.f32 %v5508, 0.0
  %5514 = vst [vmem:[%s5] sm:$0xff] %v5512
  %5515 = vst [vmem:[%s5 + $0x8] sm:$0xff] %v5513
  %v5516 = vld [vmem:[%s3] sm:$0xf]
  %v5517 = vld [vmem:[#allocation5 + $0x80] sm:$0xff]
  %v5518 = vld [vmem:[#allocation5 + $0x88] sm:$0xff]
  %v5519 = vld [vmem:[#allocation5 + $0x90] sm:$0xff]
  %v5520 = vld [vmem:[#allocation5 + $0x98] sm:$0xff]
  %v5521 = vld [vmem:[#allocation5 + $0xa0] sm:$0xff]
  %v5522 = vld [vmem:[#allocation5 + $0xa8] sm:$0xff]
  %v5523 = vld [vmem:[#allocation5 + $0xb0] sm:$0xff]
  %v5524 = vld [vmem:[#allocation5 + $0xb8] sm:$0xff]
  %v5525 = vld [vmem:[#allocation5 + $0xc0] sm:$0xff]
  %v5526 = vld [vmem:[#allocation5 + $0xc8] sm:$0xff]
  %v5527 = vld [vmem:[#allocation5 + $0xd0] sm:$0xff]
  %v5528 = vld [vmem:[#allocation5 + $0xd8] sm:$0xff]
  %v5529 = vld [vmem:[#allocation5 + $0xe0] sm:$0xff]
  %v5530 = vld [vmem:[#allocation5 + $0xe8] sm:$0xff]
  %v5531 = vld [vmem:[#allocation5 + $0xf0] sm:$0xff]
  %v5532 = vld [vmem:[#allocation5 + $0xf8] sm:$0xff]
  %v5533 = vld [vmem:[%s4] sm:$0xff]
  %5535 = vset.pattern.permute.xlu0 0
  %5536 = vperm.xlu0 %5535, %v5533
  %v5537 = vpop.permute.xlu0 %5536
  %v5540 = vsel %vm5364, %v5516, 0
  %v5543 = vsel %vm5364, %v5517, 0
  %v5546 = vsel %vm5364, %v5518, 0
  %v5549 = vsel %vm5364, %v5519, 0
  %v5552 = vsel %vm5364, %v5520, 0
  %v5555 = vsel %vm5364, %v5521, 0
  %v5558 = vsel %vm5364, %v5522, 0
  %v5561 = vsel %vm5364, %v5523, 0
  %v5564 = vsel %vm5364, %v5524, 0
  %v5567 = vsel %vm5364, %v5525, 0
  %v5570 = vsel %vm5364, %v5526, 0
  %v5573 = vsel %vm5364, %v5527, 0
  %v5576 = vsel %vm5364, %v5528, 0
  %v5579 = vsel %vm5364, %v5529, 0
  %v5582 = vsel %vm5364, %v5530, 0
  %v5585 = vsel %vm5364, %v5531, 0
  %v5588 = vsel %vm5364, %v5532, 0
  %5590 = vmatprep.subr.bf16.mxu0 0
  %5591 = vmatpush1.bf16.xpose.msra.mxu0 %v5543
  %5592 = vmatprep.subr.bf16.mxu0 0
  %5593 = vmatpush1.bf16.xpose.msra.mxu0 %v5546
  %5594 = vmatprep.subr.bf16.mxu0 0
  %5595 = vmatpush1.bf16.xpose.msra.mxu0 %v5549
  %5596 = vmatprep.subr.bf16.mxu0 0
  %5597 = vmatpush1.bf16.xpose.msra.mxu0 %v5552
  %5598 = vmatprep.subr.bf16.mxu0 0
  %5599 = vmatpush1.bf16.xpose.msra.mxu0 %v5555
  %5600 = vmatprep.subr.bf16.mxu0 0
  %5601 = vmatpush1.bf16.xpose.msra.mxu0 %v5558
  %5602 = vmatprep.subr.bf16.mxu0 0
  %5603 = vmatpush1.bf16.xpose.msra.mxu0 %v5561
  %5604 = vmatprep.subr.bf16.mxu0 0
  %5605 = vmatpush1.bf16.xpose.msra.mxu0 %v5564
  %5606 = vmatprep.subr.bf16.mxu0 0
  %5607 = vmatpush1.bf16.xpose.msra.mxu0 %v5567
  %5608 = vmatprep.subr.bf16.mxu0 0
  %5609 = vmatpush1.bf16.xpose.msra.mxu0 %v5570
  %5610 = vmatprep.subr.bf16.mxu0 0
  %5611 = vmatpush1.bf16.xpose.msra.mxu0 %v5573
  %5612 = vmatprep.subr.bf16.mxu0 0
  %5613 = vmatpush1.bf16.xpose.msra.mxu0 %v5576
  %5614 = vmatprep.subr.bf16.mxu0 0
  %5615 = vmatpush1.bf16.xpose.msra.mxu0 %v5579
  %5616 = vmatprep.subr.bf16.mxu0 0
  %5617 = vmatpush1.bf16.xpose.msra.mxu0 %v5582
  %5618 = vmatprep.subr.bf16.mxu0 0
  %5619 = vmatpush1.bf16.xpose.msra.mxu0 %v5585
  %5620 = vmatprep.subr.bf16.mxu0 0
  %5621 = vmatpush1.bf16.xpose.msra.mxu0 %v5588
  %5622 = vmatprep.mubr.bf16.mxu0 0
  %5623 = vmatmul.mubr.bf16.gmra.mrb[0].mxu0 %v5540
  %v5624 = vpop.f32.mrb[0].mxu0
  %v5625 = vadd.f32 %v5537, %v5624
  %v5626 = vpop.f32.mrb[0].mxu0
  %v5627 = vadd.f32 %v5537, %v5626
  %v5628 = vpop.f32.mrb[0].mxu0
  %v5629 = vpop.f32.mrb[0].mxu0
  %5630 = vdwg.mxu0
  %v5631 = vmax.f32 %v5625, 0.0
  %v5632 = vmax.f32 %v5627, 0.0
  %s5633 = scalar_lea.vmem %s5, 16
  %5634 = vst [vmem:[%s5633] sm:$0xff] %v5631
  %5635 = vst [vmem:[%s5633 + $0x8] sm:$0xff] %v5632
  // Predicated region
  $region22: #{unet_conv2_forward.1} parent=0 // pred_check
    _
  $region23: #{unet_conv2_forward.1} parent=0 // pred_check_branch
    %5637 = sbr.rel (0) target = $region25
  $region24: #{unet_conv2_forward.1} parent=0 // pred_region
    _
  $region25: #{unet_conv2_forward.1} parent=0 // pred_fallthru
    _
  // Predicated region
  $region26: #{unet_conv2_forward.1} parent=0 // pred_check
    _
  $region27: #{unet_conv2_forward.1} parent=0 // pred_check_branch
    %5639 = sbr.rel (0) target = $region29
  $region28: #{unet_conv2_forward.1} parent=0 // pred_region
    _
  $region29: #{unet_conv2_forward.1} parent=0 // pred_fallthru
    _

</llo_original>
